<compile_context>
chip_gen: v5e
topology: v5e:2x2
jax: 0.10.0
libtpu: 0.0.40
codegen_flags: <defaults>
</compile_context>

<pallas_src>
import jax
import jax.numpy as jnp
import numpy as np
from jax.experimental import pallas as pl
from jax.experimental.pallas import tpu as pltpu


# 960 / 2 grid steps. Keeps weight DMA / output writeback pipelined with
# compute and gives v7x one step per TensorCore. On v5e/v6e a 1-step grid
# (C_OUT_TILE = 960) is worth benchmarking: it trades one exposed ~0.4-0.7 us
# weight DMA for the removal of one 0.35 us grid step; peak VMEM stays ~3.5 MB.
C_OUT_TILE = 480

_EPS = 1e-3  # BatchNorm2d(..., eps=0.001) for both layers, per the module.


def bn_conv_bn_kernel(x_ref, w_ref, p1_ref, p2_ref, o_ref):
    x = x_ref[...]                                     # [C_in, M] f32
    inv_m = 1.0 / x.shape[1]

    g1 = p1_ref[:, 0:1]                                # [C_in, 1]
    b1 = p1_ref[:, 1:2]

    # --- BatchNorm2d(160), training batch stats, two-pass (centered) variance ---
    mean1 = jnp.sum(x, axis=1, keepdims=True) * inv_m
    xc = x - mean1
    var1 = jnp.sum(xc * xc, axis=1, keepdims=True) * inv_m
    x_bn = xc * (g1 * jax.lax.rsqrt(var1 + _EPS)) + b1  # [C_in, M] f32

    # --- Conv2d(160, 960, 1x1, bias=False) == MXU matmul, bf16 in / f32 acc ---
    y = jnp.dot(w_ref[...], x_bn.astype(jnp.bfloat16),
                preferred_element_type=jnp.float32)     # [C_OUT_TILE, M] f32

    g2 = p2_ref[:, 0:1]                                 # [C_OUT_TILE, 1]
    b2 = p2_ref[:, 1:2]

    # --- BatchNorm2d(960), per output channel, two-pass (centered) variance ---
    mean2 = jnp.sum(y, axis=1, keepdims=True) * inv_m
    yc = y - mean2
    var2 = jnp.sum(yc * yc, axis=1, keepdims=True) * inv_m
    o_ref[...] = (yc * (g2 * jax.lax.rsqrt(var2 + _EPS)) + b2).astype(o_ref.dtype)


def bn_conv_bn(x_nchw, w_oi, g1, b1, g2, b2):
    """x_nchw: [N, C_in, H, W]; w_oi: [C_out, C_in] (1x1 conv weight squeezed)."""
    N, C_in, H, W = x_nchw.shape
    C_out = w_oi.shape[0]
    M = N * H * W

    # Channel-major flatten; for N==1 the transpose of a singleton axis is a
    # free reshape (no HBM round-trip).
    x2d = jnp.transpose(x_nchw, (1, 0, 2, 3)).reshape(C_in, M).astype(jnp.float32)

    # Weight in bf16 halves the single largest DMA; MXU consumes bf16 directly.
    w_bf16 = w_oi.astype(jnp.bfloat16)

    # Pack (gamma, beta) pairs into single [C, 2] inputs (one DMA each).
    p1 = jnp.stack([g1, b1], axis=1).astype(jnp.float32)   # [C_in, 2]
    p2 = jnp.stack([g2, b2], axis=1).astype(jnp.float32)   # [C_out, 2]

    n_tiles = C_out // C_OUT_TILE

    out2d = pl.pallas_call(
        bn_conv_bn_kernel,
        out_shape=jax.ShapeDtypeStruct((C_out, M), jnp.float32),
        grid_spec=pltpu.PrefetchScalarGridSpec(
            num_scalar_prefetch=0,
            grid=(n_tiles,),
            in_specs=[
                # x: identical block every step -> DMA'd once per core; BN1 is
                # recomputed per step (trivial) so the axis stays "parallel".
                pl.BlockSpec((C_in, M), lambda i: (0, 0)),
                pl.BlockSpec((C_OUT_TILE, C_in), lambda i: (i, 0)),  # bf16 W stream
                pl.BlockSpec((C_in, 2), lambda i: (0, 0)),           # gamma1|beta1
                pl.BlockSpec((C_OUT_TILE, 2), lambda i: (i, 0)),     # gamma2|beta2
            ],
            out_specs=pl.BlockSpec((C_OUT_TILE, M), lambda i: (i, 0)),
        ),
        compiler_params=pltpu.CompilerParams(
            dimension_semantics=("parallel",)),
    )(x2d, w_bf16, p1, p2)

    # [C_out, M] -> NCHW; free reshape for N==1.
    return jnp.transpose(out2d.reshape(C_out, N, H, W), (1, 0, 2, 3))


def reference(x_nchw, w_oi, g1, b1, g2, b2):
    eps = _EPS
    x = x_nchw.astype(jnp.float32)
    m1 = jnp.mean(x, axis=(0, 2, 3), keepdims=True)
    v1 = jnp.mean((x - m1) ** 2, axis=(0, 2, 3), keepdims=True)
    xbn = (x - m1) / jnp.sqrt(v1 + eps) * g1[None, :, None, None] + b1[None, :, None, None]
    y = jax.lax.conv_general_dilated(
        xbn, w_oi[:, :, None, None], window_strides=(1, 1), padding="VALID",
        dimension_numbers=("NCHW", "OIHW", "NCHW"))
    m2 = jnp.mean(y, axis=(0, 2, 3), keepdims=True)
    v2 = jnp.mean((y - m2) ** 2, axis=(0, 2, 3), keepdims=True)
    return (y - m2) / jnp.sqrt(v2 + eps) * g2[None, :, None, None] + b2[None, :, None, None]


if __name__ == "__main__":
    C_IN, C_OUT, N, H, W = 160, 960, 1, 14, 14

    key = jax.random.PRNGKey(0)
    kx, kw, kg1, kb1, kg2, kb2 = jax.random.split(key, 6)

    x = jax.random.normal(kx, (N, C_IN, H, W), dtype=jnp.float32)
    # Conv2d(160, 960, 1x1, bias=False) weight, squeezed to [C_out, C_in]
    w = jax.random.normal(kw, (C_OUT, C_IN), dtype=jnp.float32) * 0.05
    # BatchNorm affine params (deterministic, non-trivial)
    gamma1 = 1.0 + 0.1 * jax.random.normal(kg1, (C_IN,), dtype=jnp.float32)
    beta1 = 0.1 * jax.random.normal(kb1, (C_IN,), dtype=jnp.float32)
    gamma2 = 1.0 + 0.1 * jax.random.normal(kg2, (C_OUT,), dtype=jnp.float32)
    beta2 = 0.1 * jax.random.normal(kb2, (C_OUT,), dtype=jnp.float32)

    out = jax.block_until_ready(bn_conv_bn(x, w, gamma1, beta1, gamma2, beta2))
    ref = jax.block_until_ready(reference(x, w, gamma1, beta1, gamma2, beta2))

    assert out.shape == (N, C_OUT, H, W), out.shape
    # Kernel feeds bf16 operands to the MXU (f32 reference weight vs bf16 kernel
    # weight); BN2's renormalization bounds the resulting error well under 2e-2.
    np.testing.assert_allclose(np.asarray(out), np.asarray(ref), atol=2e-2, rtol=2e-2)

    print("KERNEL_OK")
</pallas_src>

<mosaic_0001>
module attributes {stable_mosaic.version = 11 : i64} {
  func.func @bn_conv_bn_kernel(%arg0: i32, %arg1: memref<160x196xf32, #tpu.memory_space<vmem>>, %arg2: memref<480x160xbf16, #tpu.memory_space<vmem>>, %arg3: memref<160x2xf32, #tpu.memory_space<vmem>>, %arg4: memref<480x2xf32, #tpu.memory_space<vmem>>, %arg5: memref<480x196xf32, #tpu.memory_space<vmem>>) attributes {dimension_semantics = [#tpu.dimension_semantics<parallel>], iteration_bounds = array<i64: 2>, scalar_prefetch = 0 : i64, scratch_operands = 0 : i64, tpu.core_type = #tpu.core_type<tc>, window_params = [{pipeline_mode = #tpu.pipeline_mode<synchronous>, transform_indices = @transform_0, window_bounds = array<i64: 160, 196>}, {transform_indices = @transform_1, window_bounds = array<i64: 480, 160>}, {pipeline_mode = #tpu.pipeline_mode<synchronous>, transform_indices = @transform_2, window_bounds = array<i64: 160, 2>}, {transform_indices = @transform_3, window_bounds = array<i64: 480, 2>}, {transform_indices = @transform_4, window_bounds = array<i64: 480, 196>}]} {
    %c0 = arith.constant 0 : index
    %c0_0 = arith.constant 0 : index
    %0 = vector.load %arg1[%c0, %c0_0] : memref<160x196xf32, #tpu.memory_space<vmem>>, vector<160x196xf32>
    %c0_1 = arith.constant 0 : index
    %c0_2 = arith.constant 0 : index
    %1 = vector.load %arg3[%c0_1, %c0_2] : memref<160x2xf32, #tpu.memory_space<vmem>>, vector<160x1xf32>
    %c0_3 = arith.constant 0 : index
    %c1 = arith.constant 1 : index
    %2 = vector.load %arg3[%c0_3, %c1] : memref<160x2xf32, #tpu.memory_space<vmem>>, vector<160x1xf32>
    %cst = arith.constant dense<0.000000e+00> : vector<160xf32>
    %3 = vector.multi_reduction <add>, %0, %cst [1] : vector<160x196xf32> to vector<160xf32>
    %4 = vector.shape_cast %3 : vector<160xf32> to vector<160x1xf32>
    %cst_4 = arith.constant 0.00510204071 : f32
    %5 = vector.broadcast %cst_4 : f32 to vector<160x1xf32>
    %6 = arith.mulf %4, %5 : vector<160x1xf32>
    %7 = vector.broadcast %6 : vector<160x1xf32> to vector<160x196xf32>
    %8 = arith.subf %0, %7 : vector<160x196xf32>
    %9 = arith.mulf %8, %8 : vector<160x196xf32>
    %cst_5 = arith.constant dense<0.000000e+00> : vector<160xf32>
    %10 = vector.multi_reduction <add>, %9, %cst_5 [1] : vector<160x196xf32> to vector<160xf32>
    %11 = vector.shape_cast %10 : vector<160xf32> to vector<160x1xf32>
    %cst_6 = arith.constant 0.00510204071 : f32
    %12 = vector.broadcast %cst_6 : f32 to vector<160x1xf32>
    %13 = arith.mulf %11, %12 : vector<160x1xf32>
    %cst_7 = arith.constant 1.000000e-03 : f32
    %14 = vector.broadcast %cst_7 : f32 to vector<160x1xf32>
    %15 = arith.addf %13, %14 : vector<160x1xf32>
    %16 = math.rsqrt %15 : vector<160x1xf32>
    %17 = arith.mulf %1, %16 : vector<160x1xf32>
    %18 = vector.broadcast %17 : vector<160x1xf32> to vector<160x196xf32>
    %19 = arith.mulf %8, %18 : vector<160x196xf32>
    %20 = vector.broadcast %2 : vector<160x1xf32> to vector<160x196xf32>
    %21 = arith.addf %19, %20 : vector<160x196xf32>
    %c0_8 = arith.constant 0 : index
    %c0_9 = arith.constant 0 : index
    %22 = vector.load %arg2[%c0_8, %c0_9] : memref<480x160xbf16, #tpu.memory_space<vmem>>, vector<480x160xbf16>
    %23 = arith.truncf %21 : vector<160x196xf32> to vector<160x196xbf16>
    %cst_10 = arith.constant dense<0.000000e+00> : vector<480x196xf32>
    %24 = tpu.matmul %22, %23, %cst_10 {dimension_numbers = #tpu.dot_dimension_numbers<[1], [0], [0], [1], [0, 0, 1, 1], [], []>} : vector<480x160xbf16>, vector<160x196xbf16>, vector<480x196xf32> -> vector<480x196xf32>
    %c0_11 = arith.constant 0 : index
    %c0_12 = arith.constant 0 : index
    %25 = vector.load %arg4[%c0_11, %c0_12] : memref<480x2xf32, #tpu.memory_space<vmem>>, vector<480x1xf32>
    %c0_13 = arith.constant 0 : index
    %c1_14 = arith.constant 1 : index
    %26 = vector.load %arg4[%c0_13, %c1_14] : memref<480x2xf32, #tpu.memory_space<vmem>>, vector<480x1xf32>
    %cst_15 = arith.constant dense<0.000000e+00> : vector<480xf32>
    %27 = vector.multi_reduction <add>, %24, %cst_15 [1] : vector<480x196xf32> to vector<480xf32>
    %28 = vector.shape_cast %27 : vector<480xf32> to vector<480x1xf32>
    %cst_16 = arith.constant 0.00510204071 : f32
    %29 = vector.broadcast %cst_16 : f32 to vector<480x1xf32>
    %30 = arith.mulf %28, %29 : vector<480x1xf32>
    %31 = vector.broadcast %30 : vector<480x1xf32> to vector<480x196xf32>
    %32 = arith.subf %24, %31 : vector<480x196xf32>
    %33 = arith.mulf %32, %32 : vector<480x196xf32>
    %cst_17 = arith.constant dense<0.000000e+00> : vector<480xf32>
    %34 = vector.multi_reduction <add>, %33, %cst_17 [1] : vector<480x196xf32> to vector<480xf32>
    %35 = vector.shape_cast %34 : vector<480xf32> to vector<480x1xf32>
    %cst_18 = arith.constant 0.00510204071 : f32
    %36 = vector.broadcast %cst_18 : f32 to vector<480x1xf32>
    %37 = arith.mulf %35, %36 : vector<480x1xf32>
    %cst_19 = arith.constant 1.000000e-03 : f32
    %38 = vector.broadcast %cst_19 : f32 to vector<480x1xf32>
    %39 = arith.addf %37, %38 : vector<480x1xf32>
    %40 = math.rsqrt %39 : vector<480x1xf32>
    %41 = arith.mulf %25, %40 : vector<480x1xf32>
    %42 = vector.broadcast %41 : vector<480x1xf32> to vector<480x196xf32>
    %43 = arith.mulf %32, %42 : vector<480x196xf32>
    %44 = vector.broadcast %26 : vector<480x1xf32> to vector<480x196xf32>
    %45 = arith.addf %43, %44 : vector<480x196xf32>
    %c0_20 = arith.constant 0 : index
    %c0_21 = arith.constant 0 : index
    %46 = vector.load %arg5[%c0_20, %c0_21] : memref<480x196xf32, #tpu.memory_space<vmem>>, vector<480x196xf32>
    tpu.vector_store %arg5[%c0_20, %c0_21], %45 {strides = array<i32>} : memref<480x196xf32, #tpu.memory_space<vmem>>, vector<480x196xf32>,
    return
  }
  func.func @transform_0(%arg0: i32) -> (i32, i32) {
    %c0_i32 = arith.constant 0 : i32
    %c0_i32_0 = arith.constant 0 : i32
    %c0_i32_1 = arith.constant 0 : i32
    return %c0_i32, %c0_i32_0 : i32, i32
  }
  func.func @transform_1(%arg0: i32) -> (i32, i32) {
    %c0_i32 = arith.constant 0 : i32
    %c0_i32_0 = arith.constant 0 : i32
    return %arg0, %c0_i32 : i32, i32
  }
  func.func @transform_2(%arg0: i32) -> (i32, i32) {
    %c0_i32 = arith.constant 0 : i32
    %c0_i32_0 = arith.constant 0 : i32
    %c0_i32_1 = arith.constant 0 : i32
    return %c0_i32, %c0_i32_0 : i32, i32
  }
  func.func @transform_3(%arg0: i32) -> (i32, i32) {
    %c0_i32 = arith.constant 0 : i32
    %c0_i32_0 = arith.constant 0 : i32
    return %arg0, %c0_i32 : i32, i32
  }
  func.func @transform_4(%arg0: i32) -> (i32, i32) {
    %c0_i32 = arith.constant 0 : i32
    %c0_i32_0 = arith.constant 0 : i32
    return %arg0, %c0_i32 : i32, i32
  }
}

</mosaic_0001>

<llo_original>
// kernel: tpu_custom_call.1
$region0: #{tpu_custom_call.1}
  #allocation0 [shape = 'u32[]', space=smem, size = 0x4, offset = 0x4, fixed_abs, tag = 'smem constant byte address 0x4 - core index']
  #allocation1 [shape = 'u32[72,128]{1,0:T(1,128)}', space=vmem, size = 0x9000, scoped, tag = 'internal scratch']
  %s0 = inlined_call_operand.vmem [shape: f32[160,196], index: 0, kind: input, shape index: {}]
  %s1 = inlined_call_operand.vmem [shape: bf16[960,160], index: 1, kind: input, shape index: {}]
  %s2 = inlined_call_operand.vmem [shape: f32[160,2], index: 2, kind: input, shape index: {}]
  %s3 = inlined_call_operand.vmem [shape: f32[960,2], index: 3, kind: input, shape index: {}]
  %s4 = inlined_call_operand.vmem [shape: f32[960,196], index: 4, kind: output, shape index: {}]
  %s5 = sld [smem:[#allocation0]]
  $region49: #{tpu_custom_call.1} parent=0
    _
  %s7 = ssub.s32 1, %s5
  %s8 = scalar_select 0, %s7, %s5
  loop: start=0, step=1, limit=4
  $region2: #{tpu_custom_call.1} parent=0 // loop_pre_header
    _
  $region3: #{tpu_custom_call.1} parent=0 // loop_header
    %s10 = sphi 0, %s14
    %p11 = scmp.ge.s32.totalorder %s10, 4
    %s18 = sphi 0, %s18
    %s20 = sphi 0, %s18
    %s21 = sphi 0, %s20
    %s35 = sphi 0, %s21
    %s41 = sphi 0, %s43
    %s44 = sphi 0, %s41
    %s45 = sphi 0, %s44
    %s61 = sphi 0, %s45
    %s65 = sphi 0, %s65
    %s67 = sphi 0, %s65
    %s68 = sphi 0, %s67
    %s82 = sphi 0, %s68
    %s88 = sphi 0, %s90
    %s91 = sphi 0, %s88
    %s92 = sphi 0, %s91
    %s108 = sphi 0, %s92
    %s114 = sphi 0, %s116
    %s117 = sphi 0, %s114
    %s118 = sphi 0, %s117
    %s134 = sphi 0, %s118
  $region4: #{tpu_custom_call.1} parent=0 // loop_header_branch
    %13 = sbr.rel (%p11) target = $region8
  $region5: #{tpu_custom_call.1} parent=0 // loop_body
    %s15 = ssub.s32 %s10, 1
    %s16 = ssub.s32 %s10, 2
    %s17 = sadd.s32 %s10, 1
    %s19 = sadd.s32 %s18, 1
    %p22 = scmp.eq.s32.totalorder %s10, 1
    %p23 = scmp.ne.s32.totalorder %s18, %s20
    %p24 = scmp.eq.s32.totalorder %s10, 0
    %p25 = por %p23, %p24
    %p26 = scmp.ne.s32.totalorder %s18, %s20
    %p27 = scmp.eq.s32.totalorder %s15, 1
    %p28 = por %p26, %p27
    %p29 = scmp.ne.s32.totalorder %s20, %s21
    %p30 = scmp.eq.s32.totalorder %s15, 0
    %p31 = por %p29, %p30
    %p32 = scmp.ne.s32.totalorder %s20, %s21
    %p33 = scmp.eq.s32.totalorder %s16, 1
    %p34 = por %p32, %p33
    %p36 = scmp.ne.s32.totalorder %s21, %s35
    %p37 = scmp.eq.s32.totalorder %s16, 0
    %p38 = por %p36, %p37
    %s39 = ssub.s32 %s10, %s17
    %p40 = scmp.eq.s32.totalorder %s39, 0
    %s42 = sadd.s32 %s41, 1
    %s43 = scalar_select %p40, %s41, %s42
    %p46 = pneg %p40
    %p47 = scmp.eq.s32.totalorder %s10, 1
    %p48 = por %p46, %p47
    %p49 = scmp.ne.s32.totalorder %s41, %s44
    %p50 = scmp.eq.s32.totalorder %s10, 0
    %p51 = por %p49, %p50
    %p52 = scmp.ne.s32.totalorder %s41, %s44
    %p53 = scmp.eq.s32.totalorder %s15, 1
    %p54 = por %p52, %p53
    %p55 = scmp.ne.s32.totalorder %s44, %s45
    %p56 = scmp.eq.s32.totalorder %s15, 0
    %p57 = por %p55, %p56
    %p58 = scmp.ne.s32.totalorder %s44, %s45
    %p59 = scmp.eq.s32.totalorder %s16, 1
    %p60 = por %p58, %p59
    %p62 = scmp.ne.s32.totalorder %s45, %s61
    %p63 = scmp.eq.s32.totalorder %s16, 0
    %p64 = por %p62, %p63
    %s66 = sadd.s32 %s65, 1
    %p69 = scmp.eq.s32.totalorder %s10, 1
    %p70 = scmp.ne.s32.totalorder %s65, %s67
    %p71 = scmp.eq.s32.totalorder %s10, 0
    %p72 = por %p70, %p71
    %p73 = scmp.ne.s32.totalorder %s65, %s67
    %p74 = scmp.eq.s32.totalorder %s15, 1
    %p75 = por %p73, %p74
    %p76 = scmp.ne.s32.totalorder %s67, %s68
    %p77 = scmp.eq.s32.totalorder %s15, 0
    %p78 = por %p76, %p77
    %p79 = scmp.ne.s32.totalorder %s67, %s68
    %p80 = scmp.eq.s32.totalorder %s16, 1
    %p81 = por %p79, %p80
    %p83 = scmp.ne.s32.totalorder %s68, %s82
    %p84 = scmp.eq.s32.totalorder %s16, 0
    %p85 = por %p83, %p84
    %s86 = ssub.s32 %s10, %s17
    %p87 = scmp.eq.s32.totalorder %s86, 0
    %s89 = sadd.s32 %s88, 1
    %s90 = scalar_select %p87, %s88, %s89
    %p93 = pneg %p87
    %p94 = scmp.eq.s32.totalorder %s10, 1
    %p95 = por %p93, %p94
    %p96 = scmp.ne.s32.totalorder %s88, %s91
    %p97 = scmp.eq.s32.totalorder %s10, 0
    %p98 = por %p96, %p97
    %p99 = scmp.ne.s32.totalorder %s88, %s91
    %p100 = scmp.eq.s32.totalorder %s15, 1
    %p101 = por %p99, %p100
    %p102 = scmp.ne.s32.totalorder %s91, %s92
    %p103 = scmp.eq.s32.totalorder %s15, 0
    %p104 = por %p102, %p103
    %p105 = scmp.ne.s32.totalorder %s91, %s92
    %p106 = scmp.eq.s32.totalorder %s16, 1
    %p107 = por %p105, %p106
    %p109 = scmp.ne.s32.totalorder %s92, %s108
    %p110 = scmp.eq.s32.totalorder %s16, 0
    %p111 = por %p109, %p110
    %s112 = ssub.s32 %s10, %s17
    %p113 = scmp.eq.s32.totalorder %s112, 0
    %s115 = sadd.s32 %s114, 1
    %s116 = scalar_select %p113, %s114, %s115
    %p119 = pneg %p113
    %p120 = scmp.eq.s32.totalorder %s10, 1
    %p121 = por %p119, %p120
    %p122 = scmp.ne.s32.totalorder %s114, %s117
    %p123 = scmp.eq.s32.totalorder %s10, 0
    %p124 = por %p122, %p123
    %p125 = scmp.ne.s32.totalorder %s114, %s117
    %p126 = scmp.eq.s32.totalorder %s15, 1
    %p127 = por %p125, %p126
    %p128 = scmp.ne.s32.totalorder %s117, %s118
    %p129 = scmp.eq.s32.totalorder %s15, 0
    %p130 = por %p128, %p129
    %p131 = scmp.ne.s32.totalorder %s117, %s118
    %p132 = scmp.eq.s32.totalorder %s16, 1
    %p133 = por %p131, %p132
    %p135 = scmp.ne.s32.totalorder %s118, %s134
    %p136 = scmp.eq.s32.totalorder %s16, 0
    %p137 = por %p135, %p136
    %p138 = scmp.le.s32.totalorder 1, %s10
    %p139 = scmp.lt.s32.totalorder %s10, 3
    %p140 = pnand %p138, %p139
    %p141 = pneg %p140
    // Predicated region
    $region9: #{tpu_custom_call.1} parent=5 // pred_check
      _
    $region10: #{tpu_custom_call.1} parent=5 // pred_check_branch
      %143 = sbr.rel (%p140) target = $region12
    $region11: #{tpu_custom_call.1} parent=5 // pred_region
      %s144 = ssub.s32 %s10, 1
      // Predicated region
      $region13: #{tpu_custom_call.1} parent=11 // pred_check
        %p145 = pneg %p31
      $region14: #{tpu_custom_call.1} parent=11 // pred_check_branch
        %147 = sbr.rel (%p145) target = $region16
      $region15: #{tpu_custom_call.1} parent=11 // pred_region
        _
      $region16: #{tpu_custom_call.1} parent=11 // pred_fallthru
        _
      // Predicated region
      $region17: #{tpu_custom_call.1} parent=11 // pred_check
        %p148 = pneg %p78
      $region18: #{tpu_custom_call.1} parent=11 // pred_check_branch
        %150 = sbr.rel (%p148) target = $region20
      $region19: #{tpu_custom_call.1} parent=11 // pred_region
        _
      $region20: #{tpu_custom_call.1} parent=11 // pred_fallthru
        _
    $region12: #{tpu_custom_call.1} parent=5 // pred_fallthru
      _
    %p151 = scmp.lt.s32.totalorder %s10, 2
    // Predicated region
    $region21: #{tpu_custom_call.1} parent=5 // pred_check
      %p152 = pneg %p151
    $region22: #{tpu_custom_call.1} parent=5 // pred_check_branch
      %154 = sbr.rel (%p152) target = $region24
    $region23: #{tpu_custom_call.1} parent=5 // pred_region
      // Predicated region
      $region25: #{tpu_custom_call.1} parent=23 // pred_check
        %p155 = pneg %p51
      $region26: #{tpu_custom_call.1} parent=23 // pred_check_branch
        %157 = sbr.rel (%p155) target = $region28
      $region27: #{tpu_custom_call.1} parent=23 // pred_region
        %s158 = smul.u32 60, %s10
        %p159 = scmp.lt.s32.totalorder %s158, 119
        %s160 = scalar_select %p159, %s158, 119
        %s161 = smul.addr %s160, 2
        %s162 = smul.addr %s161, 4
        %s163 = scalar_lea.vmem %s1, %s162
        %s164 = smul.u32 60, %s10
      $region28: #{tpu_custom_call.1} parent=23 // pred_fallthru
        _
      // Predicated region
      $region29: #{tpu_custom_call.1} parent=23 // pred_check
        %p165 = pneg %p98
      $region30: #{tpu_custom_call.1} parent=23 // pred_check_branch
        %167 = sbr.rel (%p165) target = $region32
      $region31: #{tpu_custom_call.1} parent=23 // pred_region
        %s168 = smul.u32 60, %s10
        %p169 = scmp.lt.s32.totalorder %s168, 119
        %s170 = scalar_select %p169, %s168, 119
        %s171 = smul.addr %s170, 8
        %s172 = scalar_lea.vmem %s3, %s171
        %s173 = smul.u32 60, %s10
      $region32: #{tpu_custom_call.1} parent=23 // pred_fallthru
        _
    $region24: #{tpu_custom_call.1} parent=5 // pred_fallthru
      _
    %p174 = scmp.le.s32.totalorder 1, %s10
    %p175 = scmp.lt.s32.totalorder %s10, 3
    %p176 = pnand %p174, %p175
    %p177 = pneg %p176
    // Predicated region
    $region33: #{tpu_custom_call.1} parent=5 // pred_check
      _
    $region34: #{tpu_custom_call.1} parent=5 // pred_check_branch
      %179 = sbr.rel (%p176) target = $region36
    $region35: #{tpu_custom_call.1} parent=5 // pred_region
      %s180 = ssub.s32 %s10, 1
      %p181 = pneg %p31
      %p182 = pneg %p28
      %s183 = smul.u32 60, %s15
      %p184 = scmp.lt.s32.totalorder %s183, 119
      %s185 = scalar_select %p184, %s183, 119
      %s186 = smul.addr %s185, 2
      %s187 = smul.addr %s186, 4
      %s188 = scalar_lea.vmem %s1, %s187
      %p189 = pneg %p57
      %p190 = pneg %p54
      %p191 = pneg %p78
      %p192 = pneg %p75
      %s193 = smul.u32 60, %s15
      %p194 = scmp.lt.s32.totalorder %s193, 119
      %s195 = scalar_select %p194, %s193, 119
      %s196 = smul.addr %s195, 8
      %s197 = scalar_lea.vmem %s3, %s196
      %p198 = pneg %p104
      %p199 = pneg %p101
      %p200 = pneg %p130
      %p201 = pneg %p127
      %s202 = smul.u32 60, %s15
      %p203 = scmp.lt.s32.totalorder %s202, 119
      %s204 = scalar_select %p203, %s202, 119
      %s205 = smul.addr %s204, 2
      %s206 = smul.addr %s205, 8
      %s207 = scalar_lea.vmem %s4, %s206
      %s208 = smul.u32 60, %s15
      %p209 = scmp.lt.s32.totalorder %s208, 119
      %s210 = scalar_select %p209, %s208, 119
      %s211 = smul.addr %s210, 2
      %s212 = smul.addr %s211, 4
      %s213 = scalar_lea.vmem %s1, %s212
      %s214 = smul.u32 60, %s15
      %s215 = smul.u32 60, %s15
      %p216 = scmp.lt.s32.totalorder %s215, 119
      %s217 = scalar_select %p216, %s215, 119
      %s218 = smul.addr %s217, 8
      %s219 = scalar_lea.vmem %s3, %s218
      %s220 = smul.u32 60, %s15
      %s221 = smul.u32 60, %s15
      %p222 = scmp.lt.s32.totalorder %s221, 119
      %s223 = scalar_select %p222, %s221, 119
      %s224 = smul.addr %s223, 2
      %s225 = smul.addr %s224, 8
      %s226 = scalar_lea.vmem %s4, %s225
      %s227 = smul.u32 60, %s15
      %v229 = vld [vmem:[%s0] sm:$0xff]
      %v230 = vld [vmem:[%s0 + $0x8] sm:$0xff]
      %v231 = vld [vmem:[%s0 + $0x10] sm:$0xff]
      %v232 = vld [vmem:[%s0 + $0x18] sm:$0xff]
      %v233 = vld [vmem:[%s0 + $0x20] sm:$0xff]
      %v234 = vld [vmem:[%s0 + $0x28] sm:$0xff]
      %v235 = vld [vmem:[%s0 + $0x30] sm:$0xff]
      %v236 = vld [vmem:[%s0 + $0x38] sm:$0xff]
      %v237 = vld [vmem:[%s0 + $0x40] sm:$0xff]
      %v238 = vld [vmem:[%s0 + $0x48] sm:$0xff]
      %v239 = vld [vmem:[%s0 + $0x50] sm:$0xff]
      %v240 = vld [vmem:[%s0 + $0x58] sm:$0xff]
      %v241 = vld [vmem:[%s0 + $0x60] sm:$0xff]
      %v242 = vld [vmem:[%s0 + $0x68] sm:$0xff]
      %v243 = vld [vmem:[%s0 + $0x70] sm:$0xff]
      %v244 = vld [vmem:[%s0 + $0x78] sm:$0xff]
      %v245 = vld [vmem:[%s0 + $0x80] sm:$0xff]
      %v246 = vld [vmem:[%s0 + $0x88] sm:$0xff]
      %v247 = vld [vmem:[%s0 + $0x90] sm:$0xff]
      %v248 = vld [vmem:[%s0 + $0x98] sm:$0xff]
      %v249 = vld [vmem:[%s0 + $0xa0] sm:$0xff]
      %v250 = vld [vmem:[%s0 + $0xa8] sm:$0xff]
      %v251 = vld [vmem:[%s0 + $0xb0] sm:$0xff]
      %v252 = vld [vmem:[%s0 + $0xb8] sm:$0xff]
      %v253 = vld [vmem:[%s0 + $0xc0] sm:$0xff]
      %v254 = vld [vmem:[%s0 + $0xc8] sm:$0xff]
      %v255 = vld [vmem:[%s0 + $0xd0] sm:$0xff]
      %v256 = vld [vmem:[%s0 + $0xd8] sm:$0xff]
      %v257 = vld [vmem:[%s0 + $0xe0] sm:$0xff]
      %v258 = vld [vmem:[%s0 + $0xe8] sm:$0xff]
      %v259 = vld [vmem:[%s0 + $0xf0] sm:$0xff]
      %v260 = vld [vmem:[%s0 + $0xf8] sm:$0xff]
      %v261 = vld [vmem:[%s0 + $0x100] sm:$0xff]
      %v262 = vld [vmem:[%s0 + $0x108] sm:$0xff]
      %v263 = vld [vmem:[%s0 + $0x110] sm:$0xff]
      %v264 = vld [vmem:[%s0 + $0x118] sm:$0xff]
      %v265 = vld [vmem:[%s0 + $0x120] sm:$0xff]
      %v266 = vld [vmem:[%s0 + $0x128] sm:$0xff]
      %v267 = vld [vmem:[%s0 + $0x130] sm:$0xff]
      %v268 = vld [vmem:[%s0 + $0x138] sm:$0xff]
      %v269 = vld [vmem:[%s2] sm:$0xff]
      %v270 = vld [vmem:[%s2 + $0x8] sm:$0xff]
      %v271 = vld [vmem:[%s2 + $0x10] sm:$0xff]
      %v272 = vld [vmem:[%s2 + $0x18] sm:$0xff]
      %v273 = vld [vmem:[%s2 + $0x20] sm:$0xff]
      %v274 = vld [vmem:[%s2 + $0x28] sm:$0xff]
      %v275 = vld [vmem:[%s2 + $0x30] sm:$0xff]
      %v276 = vld [vmem:[%s2 + $0x38] sm:$0xff]
      %v277 = vld [vmem:[%s2 + $0x40] sm:$0xff]
      %v278 = vld [vmem:[%s2 + $0x48] sm:$0xff]
      %v279 = vld [vmem:[%s2 + $0x50] sm:$0xff]
      %v280 = vld [vmem:[%s2 + $0x58] sm:$0xff]
      %v281 = vld [vmem:[%s2 + $0x60] sm:$0xff]
      %v282 = vld [vmem:[%s2 + $0x68] sm:$0xff]
      %v283 = vld [vmem:[%s2 + $0x70] sm:$0xff]
      %v284 = vld [vmem:[%s2 + $0x78] sm:$0xff]
      %v285 = vld [vmem:[%s2 + $0x80] sm:$0xff]
      %v286 = vld [vmem:[%s2 + $0x88] sm:$0xff]
      %v287 = vld [vmem:[%s2 + $0x90] sm:$0xff]
      %v288 = vld [vmem:[%s2 + $0x98] sm:$0xff]
      %vm289 = vcmask 556032
      %v290 = vsel %vm289, %v230, 0.0
      %v291 = vadd.f32 %v229, %v290
      %292 = vadd.xlane.f32.xlu0 %v291
      %v293 = vpop.xlane.xlu0 %292
      %v294 = vsel %vm289, %v232, 0.0
      %v295 = vadd.f32 %v231, %v294
      %296 = vadd.xlane.f32.xlu0 %v295
      %v297 = vpop.xlane.xlu0 %296
      %v298 = vsel %vm289, %v234, 0.0
      %v299 = vadd.f32 %v233, %v298
      %300 = vadd.xlane.f32.xlu0 %v299
      %v301 = vpop.xlane.xlu0 %300
      %v302 = vsel %vm289, %v236, 0.0
      %v303 = vadd.f32 %v235, %v302
      %304 = vadd.xlane.f32.xlu0 %v303
      %v305 = vpop.xlane.xlu0 %304
      %v306 = vsel %vm289, %v238, 0.0
      %v307 = vadd.f32 %v237, %v306
      %308 = vadd.xlane.f32.xlu0 %v307
      %v309 = vpop.xlane.xlu0 %308
      %v310 = vsel %vm289, %v240, 0.0
      %v311 = vadd.f32 %v239, %v310
      %312 = vadd.xlane.f32.xlu0 %v311
      %v313 = vpop.xlane.xlu0 %312
      %v314 = vsel %vm289, %v242, 0.0
      %v315 = vadd.f32 %v241, %v314
      %316 = vadd.xlane.f32.xlu0 %v315
      %v317 = vpop.xlane.xlu0 %316
      %v318 = vsel %vm289, %v244, 0.0
      %v319 = vadd.f32 %v243, %v318
      %320 = vadd.xlane.f32.xlu0 %v319
      %v321 = vpop.xlane.xlu0 %320
      %v322 = vsel %vm289, %v246, 0.0
      %v323 = vadd.f32 %v245, %v322
      %324 = vadd.xlane.f32.xlu0 %v323
      %v325 = vpop.xlane.xlu0 %324
      %v326 = vsel %vm289, %v248, 0.0
      %v327 = vadd.f32 %v247, %v326
      %328 = vadd.xlane.f32.xlu0 %v327
      %v329 = vpop.xlane.xlu0 %328
      %v330 = vsel %vm289, %v250, 0.0
      %v331 = vadd.f32 %v249, %v330
      %332 = vadd.xlane.f32.xlu0 %v331
      %v333 = vpop.xlane.xlu0 %332
      %v334 = vsel %vm289, %v252, 0.0
      %v335 = vadd.f32 %v251, %v334
      %336 = vadd.xlane.f32.xlu0 %v335
      %v337 = vpop.xlane.xlu0 %336
      %v338 = vsel %vm289, %v254, 0.0
      %v339 = vadd.f32 %v253, %v338
      %340 = vadd.xlane.f32.xlu0 %v339
      %v341 = vpop.xlane.xlu0 %340
      %v342 = vsel %vm289, %v256, 0.0
      %v343 = vadd.f32 %v255, %v342
      %344 = vadd.xlane.f32.xlu0 %v343
      %v345 = vpop.xlane.xlu0 %344
      %v346 = vsel %vm289, %v258, 0.0
      %v347 = vadd.f32 %v257, %v346
      %348 = vadd.xlane.f32.xlu0 %v347
      %v349 = vpop.xlane.xlu0 %348
      %v350 = vsel %vm289, %v260, 0.0
      %v351 = vadd.f32 %v259, %v350
      %352 = vadd.xlane.f32.xlu0 %v351
      %v353 = vpop.xlane.xlu0 %352
      %v354 = vsel %vm289, %v262, 0.0
      %v355 = vadd.f32 %v261, %v354
      %356 = vadd.xlane.f32.xlu0 %v355
      %v357 = vpop.xlane.xlu0 %356
      %v358 = vsel %vm289, %v264, 0.0
      %v359 = vadd.f32 %v263, %v358
      %360 = vadd.xlane.f32.xlu0 %v359
      %v361 = vpop.xlane.xlu0 %360
      %v362 = vsel %vm289, %v266, 0.0
      %v363 = vadd.f32 %v265, %v362
      %364 = vadd.xlane.f32.xlu0 %v363
      %v365 = vpop.xlane.xlu0 %364
      %v366 = vsel %vm289, %v268, 0.0
      %v367 = vadd.f32 %v267, %v366
      %368 = vadd.xlane.f32.xlu0 %v367
      %v369 = vpop.xlane.xlu0 %368
      %v370 = vmul.f32 %v293, 0.0051020407
      %v371 = vmul.f32 %v297, 0.0051020407
      %v372 = vmul.f32 %v301, 0.0051020407
      %v373 = vmul.f32 %v305, 0.0051020407
      %v374 = vmul.f32 %v309, 0.0051020407
      %v375 = vmul.f32 %v313, 0.0051020407
      %v376 = vmul.f32 %v317, 0.0051020407
      %v377 = vmul.f32 %v321, 0.0051020407
      %v378 = vmul.f32 %v325, 0.0051020407
      %v379 = vmul.f32 %v329, 0.0051020407
      %v380 = vmul.f32 %v333, 0.0051020407
      %v381 = vmul.f32 %v337, 0.0051020407
      %v382 = vmul.f32 %v341, 0.0051020407
      %v383 = vmul.f32 %v345, 0.0051020407
      %v384 = vmul.f32 %v349, 0.0051020407
      %v385 = vmul.f32 %v353, 0.0051020407
      %v386 = vmul.f32 %v357, 0.0051020407
      %v387 = vmul.f32 %v361, 0.0051020407
      %v388 = vmul.f32 %v365, 0.0051020407
      %v389 = vmul.f32 %v369, 0.0051020407
      %v390 = vsub.f32 %v229, %v370
      %v391 = vsub.f32 %v230, %v370
      %v392 = vsub.f32 %v231, %v371
      %v393 = vsub.f32 %v232, %v371
      %v394 = vsub.f32 %v233, %v372
      %v395 = vsub.f32 %v234, %v372
      %v396 = vsub.f32 %v235, %v373
      %v397 = vsub.f32 %v236, %v373
      %v398 = vsub.f32 %v237, %v374
      %v399 = vsub.f32 %v238, %v374
      %v400 = vsub.f32 %v239, %v375
      %v401 = vsub.f32 %v240, %v375
      %v402 = vsub.f32 %v241, %v376
      %v403 = vsub.f32 %v242, %v376
      %v404 = vsub.f32 %v243, %v377
      %v405 = vsub.f32 %v244, %v377
      %v406 = vsub.f32 %v245, %v378
      %v407 = vsub.f32 %v246, %v378
      %v408 = vsub.f32 %v247, %v379
      %v409 = vsub.f32 %v248, %v379
      %v410 = vsub.f32 %v249, %v380
      %v411 = vsub.f32 %v250, %v380
      %v412 = vsub.f32 %v251, %v381
      %v413 = vsub.f32 %v252, %v381
      %v414 = vsub.f32 %v253, %v382
      %v415 = vsub.f32 %v254, %v382
      %v416 = vsub.f32 %v255, %v383
      %v417 = vsub.f32 %v256, %v383
      %v418 = vsub.f32 %v257, %v384
      %v419 = vsub.f32 %v258, %v384
      %v420 = vsub.f32 %v259, %v385
      %v421 = vsub.f32 %v260, %v385
      %v422 = vsub.f32 %v261, %v386
      %v423 = vsub.f32 %v262, %v386
      %v424 = vsub.f32 %v263, %v387
      %v425 = vsub.f32 %v264, %v387
      %v426 = vsub.f32 %v265, %v388
      %v427 = vsub.f32 %v266, %v388
      %v428 = vsub.f32 %v267, %v389
      %v429 = vsub.f32 %v268, %v389
      %v430 = vmul.f32 %v390, %v390
      %v431 = vmul.f32 %v391, %v391
      %v432 = vmul.f32 %v392, %v392
      %v433 = vmul.f32 %v393, %v393
      %v434 = vmul.f32 %v394, %v394
      %v435 = vmul.f32 %v395, %v395
      %v436 = vmul.f32 %v396, %v396
      %v437 = vmul.f32 %v397, %v397
      %v438 = vmul.f32 %v398, %v398
      %v439 = vmul.f32 %v399, %v399
      %v440 = vmul.f32 %v400, %v400
      %v441 = vmul.f32 %v401, %v401
      %v442 = vmul.f32 %v402, %v402
      %v443 = vmul.f32 %v403, %v403
      %v444 = vmul.f32 %v404, %v404
      %v445 = vmul.f32 %v405, %v405
      %v446 = vmul.f32 %v406, %v406
      %v447 = vmul.f32 %v407, %v407
      %v448 = vmul.f32 %v408, %v408
      %v449 = vmul.f32 %v409, %v409
      %v450 = vmul.f32 %v410, %v410
      %v451 = vmul.f32 %v411, %v411
      %v452 = vmul.f32 %v412, %v412
      %v453 = vmul.f32 %v413, %v413
      %v454 = vmul.f32 %v414, %v414
      %v455 = vmul.f32 %v415, %v415
      %v456 = vmul.f32 %v416, %v416
      %v457 = vmul.f32 %v417, %v417
      %v458 = vmul.f32 %v418, %v418
      %v459 = vmul.f32 %v419, %v419
      %v460 = vmul.f32 %v420, %v420
      %v461 = vmul.f32 %v421, %v421
      %v462 = vmul.f32 %v422, %v422
      %v463 = vmul.f32 %v423, %v423
      %v464 = vmul.f32 %v424, %v424
      %v465 = vmul.f32 %v425, %v425
      %v466 = vmul.f32 %v426, %v426
      %v467 = vmul.f32 %v427, %v427
      %v468 = vmul.f32 %v428, %v428
      %v469 = vmul.f32 %v429, %v429
      %v470 = vsel %vm289, %v431, 0.0
      %v471 = vadd.f32 %v430, %v470
      %472 = vadd.xlane.f32.xlu0 %v471
      %v473 = vpop.xlane.xlu0 %472
      %v474 = vsel %vm289, %v433, 0.0
      %v475 = vadd.f32 %v432, %v474
      %476 = vadd.xlane.f32.xlu0 %v475
      %v477 = vpop.xlane.xlu0 %476
      %v478 = vsel %vm289, %v435, 0.0
      %v479 = vadd.f32 %v434, %v478
      %480 = vadd.xlane.f32.xlu0 %v479
      %v481 = vpop.xlane.xlu0 %480
      %v482 = vsel %vm289, %v437, 0.0
      %v483 = vadd.f32 %v436, %v482
      %484 = vadd.xlane.f32.xlu0 %v483
      %v485 = vpop.xlane.xlu0 %484
      %v486 = vsel %vm289, %v439, 0.0
      %v487 = vadd.f32 %v438, %v486
      %488 = vadd.xlane.f32.xlu0 %v487
      %v489 = vpop.xlane.xlu0 %488
      %v490 = vsel %vm289, %v441, 0.0
      %v491 = vadd.f32 %v440, %v490
      %492 = vadd.xlane.f32.xlu0 %v491
      %v493 = vpop.xlane.xlu0 %492
      %v494 = vsel %vm289, %v443, 0.0
      %v495 = vadd.f32 %v442, %v494
      %496 = vadd.xlane.f32.xlu0 %v495
      %v497 = vpop.xlane.xlu0 %496
      %v498 = vsel %vm289, %v445, 0.0
      %v499 = vadd.f32 %v444, %v498
      %500 = vadd.xlane.f32.xlu0 %v499
      %v501 = vpop.xlane.xlu0 %500
      %v502 = vsel %vm289, %v447, 0.0
      %v503 = vadd.f32 %v446, %v502
      %504 = vadd.xlane.f32.xlu0 %v503
      %v505 = vpop.xlane.xlu0 %504
      %v506 = vsel %vm289, %v449, 0.0
      %v507 = vadd.f32 %v448, %v506
      %508 = vadd.xlane.f32.xlu0 %v507
      %v509 = vpop.xlane.xlu0 %508
      %v510 = vsel %vm289, %v451, 0.0
      %v511 = vadd.f32 %v450, %v510
      %512 = vadd.xlane.f32.xlu0 %v511
      %v513 = vpop.xlane.xlu0 %512
      %v514 = vsel %vm289, %v453, 0.0
      %v515 = vadd.f32 %v452, %v514
      %516 = vadd.xlane.f32.xlu0 %v515
      %v517 = vpop.xlane.xlu0 %516
      %v518 = vsel %vm289, %v455, 0.0
      %v519 = vadd.f32 %v454, %v518
      %520 = vadd.xlane.f32.xlu0 %v519
      %v521 = vpop.xlane.xlu0 %520
      %v522 = vsel %vm289, %v457, 0.0
      %v523 = vadd.f32 %v456, %v522
      %524 = vadd.xlane.f32.xlu0 %v523
      %v525 = vpop.xlane.xlu0 %524
      %v526 = vsel %vm289, %v459, 0.0
      %v527 = vadd.f32 %v458, %v526
      %528 = vadd.xlane.f32.xlu0 %v527
      %v529 = vpop.xlane.xlu0 %528
      %v530 = vsel %vm289, %v461, 0.0
      %v531 = vadd.f32 %v460, %v530
      %532 = vadd.xlane.f32.xlu0 %v531
      %v533 = vpop.xlane.xlu0 %532
      %v534 = vsel %vm289, %v463, 0.0
      %v535 = vadd.f32 %v462, %v534
      %536 = vadd.xlane.f32.xlu0 %v535
      %v537 = vpop.xlane.xlu0 %536
      %v538 = vsel %vm289, %v465, 0.0
      %v539 = vadd.f32 %v464, %v538
      %540 = vadd.xlane.f32.xlu0 %v539
      %v541 = vpop.xlane.xlu0 %540
      %v542 = vsel %vm289, %v467, 0.0
      %v543 = vadd.f32 %v466, %v542
      %544 = vadd.xlane.f32.xlu0 %v543
      %v545 = vpop.xlane.xlu0 %544
      %v546 = vsel %vm289, %v469, 0.0
      %v547 = vadd.f32 %v468, %v546
      %548 = vadd.xlane.f32.xlu0 %v547
      %v549 = vpop.xlane.xlu0 %548
      %v550 = vmul.f32 %v473, 0.0051020407
      %v551 = vmul.f32 %v477, 0.0051020407
      %v552 = vmul.f32 %v481, 0.0051020407
      %v553 = vmul.f32 %v485, 0.0051020407
      %v554 = vmul.f32 %v489, 0.0051020407
      %v555 = vmul.f32 %v493, 0.0051020407
      %v556 = vmul.f32 %v497, 0.0051020407
      %v557 = vmul.f32 %v501, 0.0051020407
      %v558 = vmul.f32 %v505, 0.0051020407
      %v559 = vmul.f32 %v509, 0.0051020407
      %v560 = vmul.f32 %v513, 0.0051020407
      %v561 = vmul.f32 %v517, 0.0051020407
      %v562 = vmul.f32 %v521, 0.0051020407
      %v563 = vmul.f32 %v525, 0.0051020407
      %v564 = vmul.f32 %v529, 0.0051020407
      %v565 = vmul.f32 %v533, 0.0051020407
      %v566 = vmul.f32 %v537, 0.0051020407
      %v567 = vmul.f32 %v541, 0.0051020407
      %v568 = vmul.f32 %v545, 0.0051020407
      %v569 = vmul.f32 %v549, 0.0051020407
      %v570 = vadd.f32 %v550, 0.001
      %v571 = vadd.f32 %v551, 0.001
      %v572 = vadd.f32 %v552, 0.001
      %v573 = vadd.f32 %v553, 0.001
      %v574 = vadd.f32 %v554, 0.001
      %v575 = vadd.f32 %v555, 0.001
      %v576 = vadd.f32 %v556, 0.001
      %v577 = vadd.f32 %v557, 0.001
      %v578 = vadd.f32 %v558, 0.001
      %v579 = vadd.f32 %v559, 0.001
      %v580 = vadd.f32 %v560, 0.001
      %v581 = vadd.f32 %v561, 0.001
      %v582 = vadd.f32 %v562, 0.001
      %v583 = vadd.f32 %v563, 0.001
      %v584 = vadd.f32 %v564, 0.001
      %v585 = vadd.f32 %v565, 0.001
      %v586 = vadd.f32 %v566, 0.001
      %v587 = vadd.f32 %v567, 0.001
      %v588 = vadd.f32 %v568, 0.001
      %v589 = vadd.f32 %v569, 0.001
      %v590 = vrsqrt.pop %v570
      %v591 = vmul.f32 %v590, %v570
      %v592 = vmul.f32 %v591, %v590
      %v593 = vmul.f32 0.5, %v592
      %v594 = vsub.f32 1.5, %v593
      %v595 = vmul.f32 %v590, %v594
      %vm596 = vweird.f32 %v570
      %vm597 = vweird.f32 %v590
      %vm598 = vmor %vm596, %vm597
      %v599 = vsel %vm598, %v590, %v595
      %v600 = vrsqrt.pop %v571
      %v601 = vmul.f32 %v600, %v571
      %v602 = vmul.f32 %v601, %v600
      %v603 = vmul.f32 0.5, %v602
      %v604 = vsub.f32 1.5, %v603
      %v605 = vmul.f32 %v600, %v604
      %vm606 = vweird.f32 %v571
      %vm607 = vweird.f32 %v600
      %vm608 = vmor %vm606, %vm607
      %v609 = vsel %vm608, %v600, %v605
      %v610 = vrsqrt.pop %v572
      %v611 = vmul.f32 %v610, %v572
      %v612 = vmul.f32 %v611, %v610
      %v613 = vmul.f32 0.5, %v612
      %v614 = vsub.f32 1.5, %v613
      %v615 = vmul.f32 %v610, %v614
      %vm616 = vweird.f32 %v572
      %vm617 = vweird.f32 %v610
      %vm618 = vmor %vm616, %vm617
      %v619 = vsel %vm618, %v610, %v615
      %v620 = vrsqrt.pop %v573
      %v621 = vmul.f32 %v620, %v573
      %v622 = vmul.f32 %v621, %v620
      %v623 = vmul.f32 0.5, %v622
      %v624 = vsub.f32 1.5, %v623
      %v625 = vmul.f32 %v620, %v624
      %vm626 = vweird.f32 %v573
      %vm627 = vweird.f32 %v620
      %vm628 = vmor %vm626, %vm627
      %v629 = vsel %vm628, %v620, %v625
      %v630 = vrsqrt.pop %v574
      %v631 = vmul.f32 %v630, %v574
      %v632 = vmul.f32 %v631, %v630
      %v633 = vmul.f32 0.5, %v632
      %v634 = vsub.f32 1.5, %v633
      %v635 = vmul.f32 %v630, %v634
      %vm636 = vweird.f32 %v574
      %vm637 = vweird.f32 %v630
      %vm638 = vmor %vm636, %vm637
      %v639 = vsel %vm638, %v630, %v635
      %v640 = vrsqrt.pop %v575
      %v641 = vmul.f32 %v640, %v575
      %v642 = vmul.f32 %v641, %v640
      %v643 = vmul.f32 0.5, %v642
      %v644 = vsub.f32 1.5, %v643
      %v645 = vmul.f32 %v640, %v644
      %vm646 = vweird.f32 %v575
      %vm647 = vweird.f32 %v640
      %vm648 = vmor %vm646, %vm647
      %v649 = vsel %vm648, %v640, %v645
      %v650 = vrsqrt.pop %v576
      %v651 = vmul.f32 %v650, %v576
      %v652 = vmul.f32 %v651, %v650
      %v653 = vmul.f32 0.5, %v652
      %v654 = vsub.f32 1.5, %v653
      %v655 = vmul.f32 %v650, %v654
      %vm656 = vweird.f32 %v576
      %vm657 = vweird.f32 %v650
      %vm658 = vmor %vm656, %vm657
      %v659 = vsel %vm658, %v650, %v655
      %v660 = vrsqrt.pop %v577
      %v661 = vmul.f32 %v660, %v577
      %v662 = vmul.f32 %v661, %v660
      %v663 = vmul.f32 0.5, %v662
      %v664 = vsub.f32 1.5, %v663
      %v665 = vmul.f32 %v660, %v664
      %vm666 = vweird.f32 %v577
      %vm667 = vweird.f32 %v660
      %vm668 = vmor %vm666, %vm667
      %v669 = vsel %vm668, %v660, %v665
      %v670 = vrsqrt.pop %v578
      %v671 = vmul.f32 %v670, %v578
      %v672 = vmul.f32 %v671, %v670
      %v673 = vmul.f32 0.5, %v672
      %v674 = vsub.f32 1.5, %v673
      %v675 = vmul.f32 %v670, %v674
      %vm676 = vweird.f32 %v578
      %vm677 = vweird.f32 %v670
      %vm678 = vmor %vm676, %vm677
      %v679 = vsel %vm678, %v670, %v675
      %v680 = vrsqrt.pop %v579
      %v681 = vmul.f32 %v680, %v579
      %v682 = vmul.f32 %v681, %v680
      %v683 = vmul.f32 0.5, %v682
      %v684 = vsub.f32 1.5, %v683
      %v685 = vmul.f32 %v680, %v684
      %vm686 = vweird.f32 %v579
      %vm687 = vweird.f32 %v680
      %vm688 = vmor %vm686, %vm687
      %v689 = vsel %vm688, %v680, %v685
      %v690 = vrsqrt.pop %v580
      %v691 = vmul.f32 %v690, %v580
      %v692 = vmul.f32 %v691, %v690
      %v693 = vmul.f32 0.5, %v692
      %v694 = vsub.f32 1.5, %v693
      %v695 = vmul.f32 %v690, %v694
      %vm696 = vweird.f32 %v580
      %vm697 = vweird.f32 %v690
      %vm698 = vmor %vm696, %vm697
      %v699 = vsel %vm698, %v690, %v695
      %v700 = vrsqrt.pop %v581
      %v701 = vmul.f32 %v700, %v581
      %v702 = vmul.f32 %v701, %v700
      %v703 = vmul.f32 0.5, %v702
      %v704 = vsub.f32 1.5, %v703
      %v705 = vmul.f32 %v700, %v704
      %vm706 = vweird.f32 %v581
      %vm707 = vweird.f32 %v700
      %vm708 = vmor %vm706, %vm707
      %v709 = vsel %vm708, %v700, %v705
      %v710 = vrsqrt.pop %v582
      %v711 = vmul.f32 %v710, %v582
      %v712 = vmul.f32 %v711, %v710
      %v713 = vmul.f32 0.5, %v712
      %v714 = vsub.f32 1.5, %v713
      %v715 = vmul.f32 %v710, %v714
      %vm716 = vweird.f32 %v582
      %vm717 = vweird.f32 %v710
      %vm718 = vmor %vm716, %vm717
      %v719 = vsel %vm718, %v710, %v715
      %v720 = vrsqrt.pop %v583
      %v721 = vmul.f32 %v720, %v583
      %v722 = vmul.f32 %v721, %v720
      %v723 = vmul.f32 0.5, %v722
      %v724 = vsub.f32 1.5, %v723
      %v725 = vmul.f32 %v720, %v724
      %vm726 = vweird.f32 %v583
      %vm727 = vweird.f32 %v720
      %vm728 = vmor %vm726, %vm727
      %v729 = vsel %vm728, %v720, %v725
      %v730 = vrsqrt.pop %v584
      %v731 = vmul.f32 %v730, %v584
      %v732 = vmul.f32 %v731, %v730
      %v733 = vmul.f32 0.5, %v732
      %v734 = vsub.f32 1.5, %v733
      %v735 = vmul.f32 %v730, %v734
      %vm736 = vweird.f32 %v584
      %vm737 = vweird.f32 %v730
      %vm738 = vmor %vm736, %vm737
      %v739 = vsel %vm738, %v730, %v735
      %v740 = vrsqrt.pop %v585
      %v741 = vmul.f32 %v740, %v585
      %v742 = vmul.f32 %v741, %v740
      %v743 = vmul.f32 0.5, %v742
      %v744 = vsub.f32 1.5, %v743
      %v745 = vmul.f32 %v740, %v744
      %vm746 = vweird.f32 %v585
      %vm747 = vweird.f32 %v740
      %vm748 = vmor %vm746, %vm747
      %v749 = vsel %vm748, %v740, %v745
      %v750 = vrsqrt.pop %v586
      %v751 = vmul.f32 %v750, %v586
      %v752 = vmul.f32 %v751, %v750
      %v753 = vmul.f32 0.5, %v752
      %v754 = vsub.f32 1.5, %v753
      %v755 = vmul.f32 %v750, %v754
      %vm756 = vweird.f32 %v586
      %vm757 = vweird.f32 %v750
      %vm758 = vmor %vm756, %vm757
      %v759 = vsel %vm758, %v750, %v755
      %v760 = vrsqrt.pop %v587
      %v761 = vmul.f32 %v760, %v587
      %v762 = vmul.f32 %v761, %v760
      %v763 = vmul.f32 0.5, %v762
      %v764 = vsub.f32 1.5, %v763
      %v765 = vmul.f32 %v760, %v764
      %vm766 = vweird.f32 %v587
      %vm767 = vweird.f32 %v760
      %vm768 = vmor %vm766, %vm767
      %v769 = vsel %vm768, %v760, %v765
      %v770 = vrsqrt.pop %v588
      %v771 = vmul.f32 %v770, %v588
      %v772 = vmul.f32 %v771, %v770
      %v773 = vmul.f32 0.5, %v772
      %v774 = vsub.f32 1.5, %v773
      %v775 = vmul.f32 %v770, %v774
      %vm776 = vweird.f32 %v588
      %vm777 = vweird.f32 %v770
      %vm778 = vmor %vm776, %vm777
      %v779 = vsel %vm778, %v770, %v775
      %v780 = vrsqrt.pop %v589
      %v781 = vmul.f32 %v780, %v589
      %v782 = vmul.f32 %v781, %v780
      %v783 = vmul.f32 0.5, %v782
      %v784 = vsub.f32 1.5, %v783
      %v785 = vmul.f32 %v780, %v784
      %vm786 = vweird.f32 %v589
      %vm787 = vweird.f32 %v780
      %vm788 = vmor %vm786, %vm787
      %v789 = vsel %vm788, %v780, %v785
      %v790 = vmul.f32 %v269, %v599
      %v791 = vmul.f32 %v270, %v609
      %v792 = vmul.f32 %v271, %v619
      %v793 = vmul.f32 %v272, %v629
      %v794 = vmul.f32 %v273, %v639
      %v795 = vmul.f32 %v274, %v649
      %v796 = vmul.f32 %v275, %v659
      %v797 = vmul.f32 %v276, %v669
      %v798 = vmul.f32 %v277, %v679
      %v799 = vmul.f32 %v278, %v689
      %v800 = vmul.f32 %v279, %v699
      %v801 = vmul.f32 %v280, %v709
      %v802 = vmul.f32 %v281, %v719
      %v803 = vmul.f32 %v282, %v729
      %v804 = vmul.f32 %v283, %v739
      %v805 = vmul.f32 %v284, %v749
      %v806 = vmul.f32 %v285, %v759
      %v807 = vmul.f32 %v286, %v769
      %v808 = vmul.f32 %v287, %v779
      %v809 = vmul.f32 %v288, %v789
      %811 = vset.pattern.permute.xlu0 0
      %812 = vperm.xlu0 %811, %v790
      %v813 = vpop.permute.xlu0 %812
      %816 = vset.pattern.permute.xlu0 0
      %817 = vperm.xlu0 %816, %v791
      %v818 = vpop.permute.xlu0 %817
      %821 = vset.pattern.permute.xlu0 0
      %822 = vperm.xlu0 %821, %v792
      %v823 = vpop.permute.xlu0 %822
      %826 = vset.pattern.permute.xlu0 0
      %827 = vperm.xlu0 %826, %v793
      %v828 = vpop.permute.xlu0 %827
      %831 = vset.pattern.permute.xlu0 0
      %832 = vperm.xlu0 %831, %v794
      %v833 = vpop.permute.xlu0 %832
      %836 = vset.pattern.permute.xlu0 0
      %837 = vperm.xlu0 %836, %v795
      %v838 = vpop.permute.xlu0 %837
      %841 = vset.pattern.permute.xlu0 0
      %842 = vperm.xlu0 %841, %v796
      %v843 = vpop.permute.xlu0 %842
      %846 = vset.pattern.permute.xlu0 0
      %847 = vperm.xlu0 %846, %v797
      %v848 = vpop.permute.xlu0 %847
      %851 = vset.pattern.permute.xlu0 0
      %852 = vperm.xlu0 %851, %v798
      %v853 = vpop.permute.xlu0 %852
      %856 = vset.pattern.permute.xlu0 0
      %857 = vperm.xlu0 %856, %v799
      %v858 = vpop.permute.xlu0 %857
      %861 = vset.pattern.permute.xlu0 0
      %862 = vperm.xlu0 %861, %v800
      %v863 = vpop.permute.xlu0 %862
      %866 = vset.pattern.permute.xlu0 0
      %867 = vperm.xlu0 %866, %v801
      %v868 = vpop.permute.xlu0 %867
      %871 = vset.pattern.permute.xlu0 0
      %872 = vperm.xlu0 %871, %v802
      %v873 = vpop.permute.xlu0 %872
      %876 = vset.pattern.permute.xlu0 0
      %877 = vperm.xlu0 %876, %v803
      %v878 = vpop.permute.xlu0 %877
      %881 = vset.pattern.permute.xlu0 0
      %882 = vperm.xlu0 %881, %v804
      %v883 = vpop.permute.xlu0 %882
      %886 = vset.pattern.permute.xlu0 0
      %887 = vperm.xlu0 %886, %v805
      %v888 = vpop.permute.xlu0 %887
      %891 = vset.pattern.permute.xlu0 0
      %892 = vperm.xlu0 %891, %v806
      %v893 = vpop.permute.xlu0 %892
      %896 = vset.pattern.permute.xlu0 0
      %897 = vperm.xlu0 %896, %v807
      %v898 = vpop.permute.xlu0 %897
      %901 = vset.pattern.permute.xlu0 0
      %902 = vperm.xlu0 %901, %v808
      %v903 = vpop.permute.xlu0 %902
      %906 = vset.pattern.permute.xlu0 0
      %907 = vperm.xlu0 %906, %v809
      %v908 = vpop.permute.xlu0 %907
      %v910 = vmul.f32 %v390, %v813
      %v911 = vmul.f32 %v391, %v813
      %v912 = vmul.f32 %v392, %v818
      %v913 = vmul.f32 %v393, %v818
      %v914 = vmul.f32 %v394, %v823
      %v915 = vmul.f32 %v395, %v823
      %v916 = vmul.f32 %v396, %v828
      %v917 = vmul.f32 %v397, %v828
      %v918 = vmul.f32 %v398, %v833
      %v919 = vmul.f32 %v399, %v833
      %v920 = vmul.f32 %v400, %v838
      %v921 = vmul.f32 %v401, %v838
      %v922 = vmul.f32 %v402, %v843
      %v923 = vmul.f32 %v403, %v843
      %v924 = vmul.f32 %v404, %v848
      %v925 = vmul.f32 %v405, %v848
      %v926 = vmul.f32 %v406, %v853
      %v927 = vmul.f32 %v407, %v853
      %v928 = vmul.f32 %v408, %v858
      %v929 = vmul.f32 %v409, %v858
      %v930 = vmul.f32 %v410, %v863
      %v931 = vmul.f32 %v411, %v863
      %v932 = vmul.f32 %v412, %v868
      %v933 = vmul.f32 %v413, %v868
      %v934 = vmul.f32 %v414, %v873
      %v935 = vmul.f32 %v415, %v873
      %v936 = vmul.f32 %v416, %v878
      %v937 = vmul.f32 %v417, %v878
      %v938 = vmul.f32 %v418, %v883
      %v939 = vmul.f32 %v419, %v883
      %v940 = vmul.f32 %v420, %v888
      %v941 = vmul.f32 %v421, %v888
      %v942 = vmul.f32 %v422, %v893
      %v943 = vmul.f32 %v423, %v893
      %v944 = vmul.f32 %v424, %v898
      %v945 = vmul.f32 %v425, %v898
      %v946 = vmul.f32 %v426, %v903
      %v947 = vmul.f32 %v427, %v903
      %v948 = vmul.f32 %v428, %v908
      %v949 = vmul.f32 %v429, %v908
      %951 = vset.pattern.permute.xlu0 1
      %952 = vperm.xlu0 %951, %v269
      %v953 = vpop.permute.xlu0 %952
      %956 = vset.pattern.permute.xlu0 1
      %957 = vperm.xlu0 %956, %v270
      %v958 = vpop.permute.xlu0 %957
      %961 = vset.pattern.permute.xlu0 1
      %962 = vperm.xlu0 %961, %v271
      %v963 = vpop.permute.xlu0 %962
      %966 = vset.pattern.permute.xlu0 1
      %967 = vperm.xlu0 %966, %v272
      %v968 = vpop.permute.xlu0 %967
      %971 = vset.pattern.permute.xlu0 1
      %972 = vperm.xlu0 %971, %v273
      %v973 = vpop.permute.xlu0 %972
      %976 = vset.pattern.permute.xlu0 1
      %977 = vperm.xlu0 %976, %v274
      %v978 = vpop.permute.xlu0 %977
      %981 = vset.pattern.permute.xlu0 1
      %982 = vperm.xlu0 %981, %v275
      %v983 = vpop.permute.xlu0 %982
      %986 = vset.pattern.permute.xlu0 1
      %987 = vperm.xlu0 %986, %v276
      %v988 = vpop.permute.xlu0 %987
      %991 = vset.pattern.permute.xlu0 1
      %992 = vperm.xlu0 %991, %v277
      %v993 = vpop.permute.xlu0 %992
      %996 = vset.pattern.permute.xlu0 1
      %997 = vperm.xlu0 %996, %v278
      %v998 = vpop.permute.xlu0 %997
      %1001 = vset.pattern.permute.xlu0 1
      %1002 = vperm.xlu0 %1001, %v279
      %v1003 = vpop.permute.xlu0 %1002
      %1006 = vset.pattern.permute.xlu0 1
      %1007 = vperm.xlu0 %1006, %v280
      %v1008 = vpop.permute.xlu0 %1007
      %1011 = vset.pattern.permute.xlu0 1
      %1012 = vperm.xlu0 %1011, %v281
      %v1013 = vpop.permute.xlu0 %1012
      %1016 = vset.pattern.permute.xlu0 1
      %1017 = vperm.xlu0 %1016, %v282
      %v1018 = vpop.permute.xlu0 %1017
      %1021 = vset.pattern.permute.xlu0 1
      %1022 = vperm.xlu0 %1021, %v283
      %v1023 = vpop.permute.xlu0 %1022
      %1026 = vset.pattern.permute.xlu0 1
      %1027 = vperm.xlu0 %1026, %v284
      %v1028 = vpop.permute.xlu0 %1027
      %1031 = vset.pattern.permute.xlu0 1
      %1032 = vperm.xlu0 %1031, %v285
      %v1033 = vpop.permute.xlu0 %1032
      %1036 = vset.pattern.permute.xlu0 1
      %1037 = vperm.xlu0 %1036, %v286
      %v1038 = vpop.permute.xlu0 %1037
      %1041 = vset.pattern.permute.xlu0 1
      %1042 = vperm.xlu0 %1041, %v287
      %v1043 = vpop.permute.xlu0 %1042
      %1046 = vset.pattern.permute.xlu0 1
      %1047 = vperm.xlu0 %1046, %v288
      %v1048 = vpop.permute.xlu0 %1047
      %v1050 = vadd.f32 %v910, %v953
      %v1051 = vadd.f32 %v911, %v953
      %v1052 = vadd.f32 %v912, %v958
      %v1053 = vadd.f32 %v913, %v958
      %v1054 = vadd.f32 %v914, %v963
      %v1055 = vadd.f32 %v915, %v963
      %v1056 = vadd.f32 %v916, %v968
      %v1057 = vadd.f32 %v917, %v968
      %v1058 = vadd.f32 %v918, %v973
      %v1059 = vadd.f32 %v919, %v973
      %v1060 = vadd.f32 %v920, %v978
      %v1061 = vadd.f32 %v921, %v978
      %v1062 = vadd.f32 %v922, %v983
      %v1063 = vadd.f32 %v923, %v983
      %v1064 = vadd.f32 %v924, %v988
      %v1065 = vadd.f32 %v925, %v988
      %v1066 = vadd.f32 %v926, %v993
      %v1067 = vadd.f32 %v927, %v993
      %v1068 = vadd.f32 %v928, %v998
      %v1069 = vadd.f32 %v929, %v998
      %v1070 = vadd.f32 %v930, %v1003
      %v1071 = vadd.f32 %v931, %v1003
      %v1072 = vadd.f32 %v932, %v1008
      %v1073 = vadd.f32 %v933, %v1008
      %v1074 = vadd.f32 %v934, %v1013
      %v1075 = vadd.f32 %v935, %v1013
      %v1076 = vadd.f32 %v936, %v1018
      %v1077 = vadd.f32 %v937, %v1018
      %v1078 = vadd.f32 %v938, %v1023
      %v1079 = vadd.f32 %v939, %v1023
      %v1080 = vadd.f32 %v940, %v1028
      %v1081 = vadd.f32 %v941, %v1028
      %v1082 = vadd.f32 %v942, %v1033
      %v1083 = vadd.f32 %v943, %v1033
      %v1084 = vadd.f32 %v944, %v1038
      %v1085 = vadd.f32 %v945, %v1038
      %v1086 = vadd.f32 %v946, %v1043
      %v1087 = vadd.f32 %v947, %v1043
      %v1088 = vadd.f32 %v948, %v1048
      %v1089 = vadd.f32 %v949, %v1048
      %v1090 = vld [vmem:[%s213] sm:$0xff]
      %v1091 = vld [vmem:[%s213 + $0x8] sm:$0xff]
      %v1092 = vld [vmem:[%s213 + $0x10] sm:$0xff]
      %v1093 = vld [vmem:[%s213 + $0x18] sm:$0xff]
      %v1094 = vld [vmem:[%s213 + $0x20] sm:$0xff]
      %v1095 = vld [vmem:[%s213 + $0x28] sm:$0xff]
      %v1096 = vld [vmem:[%s213 + $0x30] sm:$0xff]
      %v1097 = vld [vmem:[%s213 + $0x38] sm:$0xff]
      %v1098 = vld [vmem:[%s213 + $0x40] sm:$0xff]
      %v1099 = vld [vmem:[%s213 + $0x48] sm:$0xff]
      %v1100 = vld [vmem:[%s213 + $0x50] sm:$0xff]
      %v1101 = vld [vmem:[%s213 + $0x58] sm:$0xff]
      %v1102 = vld [vmem:[%s213 + $0x60] sm:$0xff]
      %v1103 = vld [vmem:[%s213 + $0x68] sm:$0xff]
      %v1104 = vld [vmem:[%s213 + $0x70] sm:$0xff]
      %v1105 = vld [vmem:[%s213 + $0x78] sm:$0xff]
      %v1106 = vld [vmem:[%s213 + $0x80] sm:$0xff]
      %v1107 = vld [vmem:[%s213 + $0x88] sm:$0xff]
      %v1108 = vld [vmem:[%s213 + $0x90] sm:$0xff]
      %v1109 = vld [vmem:[%s213 + $0x98] sm:$0xff]
      %v1110 = vld [vmem:[%s213 + $0xa0] sm:$0xff]
      %v1111 = vld [vmem:[%s213 + $0xa8] sm:$0xff]
      %v1112 = vld [vmem:[%s213 + $0xb0] sm:$0xff]
      %v1113 = vld [vmem:[%s213 + $0xb8] sm:$0xff]
      %v1114 = vld [vmem:[%s213 + $0xc0] sm:$0xff]
      %v1115 = vld [vmem:[%s213 + $0xc8] sm:$0xff]
      %v1116 = vld [vmem:[%s213 + $0xd0] sm:$0xff]
      %v1117 = vld [vmem:[%s213 + $0xd8] sm:$0xff]
      %v1118 = vld [vmem:[%s213 + $0xe0] sm:$0xff]
      %v1119 = vld [vmem:[%s213 + $0xe8] sm:$0xff]
      %v1120 = vld [vmem:[%s213 + $0xf0] sm:$0xff]
      %v1121 = vld [vmem:[%s213 + $0xf8] sm:$0xff]
      %v1122 = vld [vmem:[%s213 + $0x100] sm:$0xff]
      %v1123 = vld [vmem:[%s213 + $0x108] sm:$0xff]
      %v1124 = vld [vmem:[%s213 + $0x110] sm:$0xff]
      %v1125 = vld [vmem:[%s213 + $0x118] sm:$0xff]
      %v1126 = vld [vmem:[%s213 + $0x120] sm:$0xff]
      %v1127 = vld [vmem:[%s213 + $0x128] sm:$0xff]
      %v1128 = vld [vmem:[%s213 + $0x130] sm:$0xff]
      %v1129 = vld [vmem:[%s213 + $0x138] sm:$0xff]
      %v1130 = vld [vmem:[%s213 + $0x140] sm:$0xff]
      %v1131 = vld [vmem:[%s213 + $0x148] sm:$0xff]
      %v1132 = vld [vmem:[%s213 + $0x150] sm:$0xff]
      %v1133 = vld [vmem:[%s213 + $0x158] sm:$0xff]
      %v1134 = vld [vmem:[%s213 + $0x160] sm:$0xff]
      %v1135 = vld [vmem:[%s213 + $0x168] sm:$0xff]
      %v1136 = vld [vmem:[%s213 + $0x170] sm:$0xff]
      %v1137 = vld [vmem:[%s213 + $0x178] sm:$0xff]
      %v1138 = vld [vmem:[%s213 + $0x180] sm:$0xff]
      %v1139 = vld [vmem:[%s213 + $0x188] sm:$0xff]
      %v1140 = vld [vmem:[%s213 + $0x190] sm:$0xff]
      %v1141 = vld [vmem:[%s213 + $0x198] sm:$0xff]
      %v1142 = vld [vmem:[%s213 + $0x1a0] sm:$0xff]
      %v1143 = vld [vmem:[%s213 + $0x1a8] sm:$0xff]
      %v1144 = vld [vmem:[%s213 + $0x1b0] sm:$0xff]
      %v1145 = vld [vmem:[%s213 + $0x1b8] sm:$0xff]
      %v1146 = vld [vmem:[%s213 + $0x1c0] sm:$0xff]
      %v1147 = vld [vmem:[%s213 + $0x1c8] sm:$0xff]
      %v1148 = vld [vmem:[%s213 + $0x1d0] sm:$0xff]
      %v1149 = vld [vmem:[%s213 + $0x1d8] sm:$0xff]
      %v1150 = vpack.c.bf16 %v1052, %v1050
      %v1151 = vpack.c.bf16 %v1053, %v1051
      %v1152 = vpack.c.bf16 %v1056, %v1054
      %v1153 = vpack.c.bf16 %v1057, %v1055
      %v1154 = vpack.c.bf16 %v1060, %v1058
      %v1155 = vpack.c.bf16 %v1061, %v1059
      %v1156 = vpack.c.bf16 %v1064, %v1062
      %v1157 = vpack.c.bf16 %v1065, %v1063
      %v1158 = vpack.c.bf16 %v1068, %v1066
      %v1159 = vpack.c.bf16 %v1069, %v1067
      %v1160 = vpack.c.bf16 %v1072, %v1070
      %v1161 = vpack.c.bf16 %v1073, %v1071
      %v1162 = vpack.c.bf16 %v1076, %v1074
      %v1163 = vpack.c.bf16 %v1077, %v1075
      %v1164 = vpack.c.bf16 %v1080, %v1078
      %v1165 = vpack.c.bf16 %v1081, %v1079
      %v1166 = vpack.c.bf16 %v1084, %v1082
      %v1167 = vpack.c.bf16 %v1085, %v1083
      %v1168 = vpack.c.bf16 %v1088, %v1086
      %v1169 = vpack.c.bf16 %v1089, %v1087
      %v1230 = vunpack.c.l.b16 %v1090
      %v1231 = vunpack.c.h.b16 %v1090
      %v1232 = vunpack.c.l.b16 %v1091
      %v1233 = vunpack.c.h.b16 %v1091
      %v1234 = vunpack.c.l.b16 %v1092
      %v1235 = vunpack.c.h.b16 %v1092
      %v1236 = vunpack.c.l.b16 %v1093
      %v1237 = vunpack.c.h.b16 %v1093
      %v1238 = vunpack.c.l.b16 %v1094
      %v1239 = vunpack.c.h.b16 %v1094
      %v1240 = vunpack.c.l.b16 %v1095
      %v1241 = vunpack.c.h.b16 %v1095
      %v1242 = vunpack.c.l.b16 %v1096
      %v1243 = vunpack.c.h.b16 %v1096
      %v1244 = vunpack.c.l.b16 %v1097
      %v1245 = vunpack.c.h.b16 %v1097
      %v1246 = vunpack.c.l.b16 %v1098
      %v1247 = vunpack.c.h.b16 %v1098
      %v1248 = vunpack.c.l.b16 %v1099
      %v1249 = vunpack.c.h.b16 %v1099
      %v1250 = vunpack.c.l.b16 %v1100
      %v1251 = vunpack.c.h.b16 %v1100
      %v1252 = vunpack.c.l.b16 %v1101
      %v1253 = vunpack.c.h.b16 %v1101
      %v1254 = vunpack.c.l.b16 %v1102
      %v1255 = vunpack.c.h.b16 %v1102
      %v1256 = vunpack.c.l.b16 %v1103
      %v1257 = vunpack.c.h.b16 %v1103
      %v1258 = vunpack.c.l.b16 %v1104
      %v1259 = vunpack.c.h.b16 %v1104
      %v1260 = vunpack.c.l.b16 %v1105
      %v1261 = vunpack.c.h.b16 %v1105
      %v1262 = vunpack.c.l.b16 %v1106
      %v1263 = vunpack.c.h.b16 %v1106
      %v1264 = vunpack.c.l.b16 %v1107
      %v1265 = vunpack.c.h.b16 %v1107
      %v1266 = vunpack.c.l.b16 %v1108
      %v1267 = vunpack.c.h.b16 %v1108
      %v1268 = vunpack.c.l.b16 %v1109
      %v1269 = vunpack.c.h.b16 %v1109
      %v1270 = vunpack.c.l.b16 %v1110
      %v1271 = vunpack.c.h.b16 %v1110
      %v1272 = vunpack.c.l.b16 %v1111
      %v1273 = vunpack.c.h.b16 %v1111
      %v1274 = vunpack.c.l.b16 %v1112
      %v1275 = vunpack.c.h.b16 %v1112
      %v1276 = vunpack.c.l.b16 %v1113
      %v1277 = vunpack.c.h.b16 %v1113
      %v1278 = vunpack.c.l.b16 %v1114
      %v1279 = vunpack.c.h.b16 %v1114
      %v1280 = vunpack.c.l.b16 %v1115
      %v1281 = vunpack.c.h.b16 %v1115
      %v1282 = vunpack.c.l.b16 %v1116
      %v1283 = vunpack.c.h.b16 %v1116
      %v1284 = vunpack.c.l.b16 %v1117
      %v1285 = vunpack.c.h.b16 %v1117
      %v1286 = vunpack.c.l.b16 %v1118
      %v1287 = vunpack.c.h.b16 %v1118
      %v1288 = vunpack.c.l.b16 %v1119
      %v1289 = vunpack.c.h.b16 %v1119
      %v1290 = vunpack.c.l.b16 %v1120
      %v1291 = vunpack.c.h.b16 %v1120
      %v1292 = vunpack.c.l.b16 %v1121
      %v1293 = vunpack.c.h.b16 %v1121
      %v1294 = vunpack.c.l.b16 %v1122
      %v1295 = vunpack.c.h.b16 %v1122
      %v1296 = vunpack.c.l.b16 %v1123
      %v1297 = vunpack.c.h.b16 %v1123
      %v1298 = vunpack.c.l.b16 %v1124
      %v1299 = vunpack.c.h.b16 %v1124
      %v1300 = vunpack.c.l.b16 %v1125
      %v1301 = vunpack.c.h.b16 %v1125
      %v1302 = vunpack.c.l.b16 %v1126
      %v1303 = vunpack.c.h.b16 %v1126
      %v1304 = vunpack.c.l.b16 %v1127
      %v1305 = vunpack.c.h.b16 %v1127
      %v1306 = vunpack.c.l.b16 %v1128
      %v1307 = vunpack.c.h.b16 %v1128
      %v1308 = vunpack.c.l.b16 %v1129
      %v1309 = vunpack.c.h.b16 %v1129
      %v1310 = vunpack.c.l.b16 %v1130
      %v1311 = vunpack.c.h.b16 %v1130
      %v1312 = vunpack.c.l.b16 %v1131
      %v1313 = vunpack.c.h.b16 %v1131
      %v1314 = vunpack.c.l.b16 %v1132
      %v1315 = vunpack.c.h.b16 %v1132
      %v1316 = vunpack.c.l.b16 %v1133
      %v1317 = vunpack.c.h.b16 %v1133
      %v1318 = vunpack.c.l.b16 %v1134
      %v1319 = vunpack.c.h.b16 %v1134
      %v1320 = vunpack.c.l.b16 %v1135
      %v1321 = vunpack.c.h.b16 %v1135
      %v1322 = vunpack.c.l.b16 %v1136
      %v1323 = vunpack.c.h.b16 %v1136
      %v1324 = vunpack.c.l.b16 %v1137
      %v1325 = vunpack.c.h.b16 %v1137
      %v1326 = vunpack.c.l.b16 %v1138
      %v1327 = vunpack.c.h.b16 %v1138
      %v1328 = vunpack.c.l.b16 %v1139
      %v1329 = vunpack.c.h.b16 %v1139
      %v1330 = vunpack.c.l.b16 %v1140
      %v1331 = vunpack.c.h.b16 %v1140
      %v1332 = vunpack.c.l.b16 %v1141
      %v1333 = vunpack.c.h.b16 %v1141
      %v1334 = vunpack.c.l.b16 %v1142
      %v1335 = vunpack.c.h.b16 %v1142
      %v1336 = vunpack.c.l.b16 %v1143
      %v1337 = vunpack.c.h.b16 %v1143
      %v1338 = vunpack.c.l.b16 %v1144
      %v1339 = vunpack.c.h.b16 %v1144
      %v1340 = vunpack.c.l.b16 %v1145
      %v1341 = vunpack.c.h.b16 %v1145
      %v1342 = vunpack.c.l.b16 %v1146
      %v1343 = vunpack.c.h.b16 %v1146
      %v1344 = vunpack.c.l.b16 %v1147
      %v1345 = vunpack.c.h.b16 %v1147
      %v1346 = vunpack.c.l.b16 %v1148
      %v1347 = vunpack.c.h.b16 %v1148
      %v1348 = vunpack.c.l.b16 %v1149
      %v1349 = vunpack.c.h.b16 %v1149
      %v1350 = vpack.c.b16 %v1232, %v1230
      %v1351 = vpack.c.b16 %v1233, %v1231
      %v1352 = vpack.c.b16 %v1236, %v1234
      %v1353 = vpack.c.b16 %v1237, %v1235
      %v1354 = vpack.c.b16 %v1240, %v1238
      %v1355 = vpack.c.b16 %v1241, %v1239
      %v1356 = vpack.c.b16 %v1244, %v1242
      %v1357 = vpack.c.b16 %v1245, %v1243
      %v1358 = vpack.c.b16 %v1248, %v1246
      %v1359 = vpack.c.b16 %v1249, %v1247
      %v1360 = vpack.c.b16 %v1252, %v1250
      %v1361 = vpack.c.b16 %v1253, %v1251
      %v1362 = vpack.c.b16 %v1256, %v1254
      %v1363 = vpack.c.b16 %v1257, %v1255
      %v1364 = vpack.c.b16 %v1260, %v1258
      %v1365 = vpack.c.b16 %v1261, %v1259
      %v1366 = vpack.c.b16 %v1264, %v1262
      %v1367 = vpack.c.b16 %v1265, %v1263
      %v1368 = vpack.c.b16 %v1268, %v1266
      %v1369 = vpack.c.b16 %v1269, %v1267
      %v1370 = vpack.c.b16 %v1272, %v1270
      %v1371 = vpack.c.b16 %v1273, %v1271
      %v1372 = vpack.c.b16 %v1276, %v1274
      %v1373 = vpack.c.b16 %v1277, %v1275
      %v1374 = vpack.c.b16 %v1280, %v1278
      %v1375 = vpack.c.b16 %v1281, %v1279
      %v1376 = vpack.c.b16 %v1284, %v1282
      %v1377 = vpack.c.b16 %v1285, %v1283
      %v1378 = vpack.c.b16 %v1288, %v1286
      %v1379 = vpack.c.b16 %v1289, %v1287
      %v1380 = vpack.c.b16 %v1292, %v1290
      %v1381 = vpack.c.b16 %v1293, %v1291
      %v1382 = vpack.c.b16 %v1296, %v1294
      %v1383 = vpack.c.b16 %v1297, %v1295
      %v1384 = vpack.c.b16 %v1300, %v1298
      %v1385 = vpack.c.b16 %v1301, %v1299
      %v1386 = vpack.c.b16 %v1304, %v1302
      %v1387 = vpack.c.b16 %v1305, %v1303
      %v1388 = vpack.c.b16 %v1308, %v1306
      %v1389 = vpack.c.b16 %v1309, %v1307
      %v1390 = vpack.c.b16 %v1312, %v1310
      %v1391 = vpack.c.b16 %v1313, %v1311
      %v1392 = vpack.c.b16 %v1316, %v1314
      %v1393 = vpack.c.b16 %v1317, %v1315
      %v1394 = vpack.c.b16 %v1320, %v1318
      %v1395 = vpack.c.b16 %v1321, %v1319
      %v1396 = vpack.c.b16 %v1324, %v1322
      %v1397 = vpack.c.b16 %v1325, %v1323
      %v1398 = vpack.c.b16 %v1328, %v1326
      %v1399 = vpack.c.b16 %v1329, %v1327
      %v1400 = vpack.c.b16 %v1332, %v1330
      %v1401 = vpack.c.b16 %v1333, %v1331
      %v1402 = vpack.c.b16 %v1336, %v1334
      %v1403 = vpack.c.b16 %v1337, %v1335
      %v1404 = vpack.c.b16 %v1340, %v1338
      %v1405 = vpack.c.b16 %v1341, %v1339
      %v1406 = vpack.c.b16 %v1344, %v1342
      %v1407 = vpack.c.b16 %v1345, %v1343
      %v1408 = vpack.c.b16 %v1348, %v1346
      %v1409 = vpack.c.b16 %v1349, %v1347
      %vm1440 = vcmask 261120
      %v1442 = vsel %vm1440, %v1351, 0
      %v1445 = vsel %vm1440, %v1353, 0
      %v1448 = vsel %vm1440, %v1355, 0
      %v1451 = vsel %vm1440, %v1357, 0
      %v1454 = vsel %vm1440, %v1359, 0
      %v1457 = vsel %vm1440, %v1361, 0
      %v1460 = vsel %vm1440, %v1363, 0
      %v1463 = vsel %vm1440, %v1365, 0
      %v1466 = vsel %vm1440, %v1367, 0
      %v1469 = vsel %vm1440, %v1369, 0
      %v1472 = vsel %vm1440, %v1371, 0
      %v1475 = vsel %vm1440, %v1373, 0
      %v1478 = vsel %vm1440, %v1375, 0
      %v1481 = vsel %vm1440, %v1377, 0
      %v1484 = vsel %vm1440, %v1379, 0
      %v1487 = vsel %vm1440, %v1381, 0
      %v1490 = vsel %vm1440, %v1383, 0
      %v1493 = vsel %vm1440, %v1385, 0
      %v1496 = vsel %vm1440, %v1387, 0
      %v1499 = vsel %vm1440, %v1389, 0
      %v1502 = vsel %vm1440, %v1391, 0
      %v1505 = vsel %vm1440, %v1393, 0
      %v1508 = vsel %vm1440, %v1395, 0
      %v1511 = vsel %vm1440, %v1397, 0
      %v1514 = vsel %vm1440, %v1399, 0
      %v1517 = vsel %vm1440, %v1401, 0
      %v1520 = vsel %vm1440, %v1403, 0
      %v1523 = vsel %vm1440, %v1405, 0
      %v1526 = vsel %vm1440, %v1407, 0
      %v1529 = vsel %vm1440, %v1409, 0
      %1531 = vmatpush.bf16.msra.mxu0 %v1164
      %1532 = vmatpush.bf16.msra.mxu0 %v1162
      %1533 = vmatpush.bf16.msra.mxu0 %v1160
      %1534 = vmatpush.bf16.msra.mxu0 %v1158
      %1535 = vmatpush.bf16.msra.mxu0 %v1156
      %1536 = vmatpush.bf16.msra.mxu0 %v1154
      %1537 = vmatpush.bf16.msra.mxu0 %v1152
      %1538 = vmatpush.bf16.msra.mxu0 %v1150
      %1539 = vmatmul.bf16.gmra.mxu0 %v1350
      %v1540 = vpop.f32.mrf.mxu0
      %v1541 = vadd.f32 0.0, %v1540
      %v1542 = vpop.f32.mrf.mxu0
      %v1543 = vadd.f32 0.0, %v1542
      %1544 = vmatmul.bf16.gmra.mxu0 %v1352
      %v1545 = vpop.f32.mrf.mxu0
      %v1546 = vadd.f32 0.0, %v1545
      %v1547 = vpop.f32.mrf.mxu0
      %v1548 = vadd.f32 0.0, %v1547
      %1549 = vmatmul.bf16.gmra.mxu0 %v1354
      %v1550 = vpop.f32.mrf.mxu0
      %v1551 = vadd.f32 0.0, %v1550
      %v1552 = vpop.f32.mrf.mxu0
      %v1553 = vadd.f32 0.0, %v1552
      %1554 = vmatmul.bf16.gmra.mxu0 %v1356
      %v1555 = vpop.f32.mrf.mxu0
      %v1556 = vadd.f32 0.0, %v1555
      %v1557 = vpop.f32.mrf.mxu0
      %v1558 = vadd.f32 0.0, %v1557
      %1559 = vmatmul.bf16.gmra.mxu0 %v1358
      %v1560 = vpop.f32.mrf.mxu0
      %v1561 = vadd.f32 0.0, %v1560
      %v1562 = vpop.f32.mrf.mxu0
      %v1563 = vadd.f32 0.0, %v1562
      %1564 = vmatmul.bf16.gmra.mxu0 %v1360
      %v1565 = vpop.f32.mrf.mxu0
      %v1566 = vadd.f32 0.0, %v1565
      %v1567 = vpop.f32.mrf.mxu0
      %v1568 = vadd.f32 0.0, %v1567
      %1569 = vmatmul.bf16.gmra.mxu0 %v1362
      %v1570 = vpop.f32.mrf.mxu0
      %v1571 = vadd.f32 0.0, %v1570
      %v1572 = vpop.f32.mrf.mxu0
      %v1573 = vadd.f32 0.0, %v1572
      %1574 = vmatmul.bf16.gmra.mxu0 %v1364
      %v1575 = vpop.f32.mrf.mxu0
      %v1576 = vadd.f32 0.0, %v1575
      %v1577 = vpop.f32.mrf.mxu0
      %v1578 = vadd.f32 0.0, %v1577
      %1579 = vmatmul.bf16.gmra.mxu0 %v1366
      %v1580 = vpop.f32.mrf.mxu0
      %v1581 = vadd.f32 0.0, %v1580
      %v1582 = vpop.f32.mrf.mxu0
      %v1583 = vadd.f32 0.0, %v1582
      %1584 = vmatmul.bf16.gmra.mxu0 %v1368
      %v1585 = vpop.f32.mrf.mxu0
      %v1586 = vadd.f32 0.0, %v1585
      %v1587 = vpop.f32.mrf.mxu0
      %v1588 = vadd.f32 0.0, %v1587
      %1589 = vmatmul.bf16.gmra.mxu0 %v1370
      %v1590 = vpop.f32.mrf.mxu0
      %v1591 = vadd.f32 0.0, %v1590
      %v1592 = vpop.f32.mrf.mxu0
      %v1593 = vadd.f32 0.0, %v1592
      %1594 = vmatmul.bf16.gmra.mxu0 %v1372
      %v1595 = vpop.f32.mrf.mxu0
      %v1596 = vadd.f32 0.0, %v1595
      %v1597 = vpop.f32.mrf.mxu0
      %v1598 = vadd.f32 0.0, %v1597
      %1599 = vmatmul.bf16.gmra.mxu0 %v1374
      %v1600 = vpop.f32.mrf.mxu0
      %v1601 = vadd.f32 0.0, %v1600
      %v1602 = vpop.f32.mrf.mxu0
      %v1603 = vadd.f32 0.0, %v1602
      %1604 = vmatmul.bf16.gmra.mxu0 %v1376
      %v1605 = vpop.f32.mrf.mxu0
      %v1606 = vadd.f32 0.0, %v1605
      %v1607 = vpop.f32.mrf.mxu0
      %v1608 = vadd.f32 0.0, %v1607
      %1609 = vmatmul.bf16.gmra.mxu0 %v1378
      %v1610 = vpop.f32.mrf.mxu0
      %v1611 = vadd.f32 0.0, %v1610
      %v1612 = vpop.f32.mrf.mxu0
      %v1613 = vadd.f32 0.0, %v1612
      %1614 = vmatmul.bf16.gmra.mxu0 %v1380
      %v1615 = vpop.f32.mrf.mxu0
      %v1616 = vadd.f32 0.0, %v1615
      %v1617 = vpop.f32.mrf.mxu0
      %v1618 = vadd.f32 0.0, %v1617
      %1619 = vmatmul.bf16.gmra.mxu0 %v1382
      %v1620 = vpop.f32.mrf.mxu0
      %v1621 = vadd.f32 0.0, %v1620
      %v1622 = vpop.f32.mrf.mxu0
      %v1623 = vadd.f32 0.0, %v1622
      %1624 = vmatmul.bf16.gmra.mxu0 %v1384
      %v1625 = vpop.f32.mrf.mxu0
      %v1626 = vadd.f32 0.0, %v1625
      %v1627 = vpop.f32.mrf.mxu0
      %v1628 = vadd.f32 0.0, %v1627
      %1629 = vmatmul.bf16.gmra.mxu0 %v1386
      %v1630 = vpop.f32.mrf.mxu0
      %v1631 = vadd.f32 0.0, %v1630
      %v1632 = vpop.f32.mrf.mxu0
      %v1633 = vadd.f32 0.0, %v1632
      %1634 = vmatmul.bf16.gmra.mxu0 %v1388
      %v1635 = vpop.f32.mrf.mxu0
      %v1636 = vadd.f32 0.0, %v1635
      %v1637 = vpop.f32.mrf.mxu0
      %v1638 = vadd.f32 0.0, %v1637
      %1639 = vmatmul.bf16.gmra.mxu0 %v1390
      %v1640 = vpop.f32.mrf.mxu0
      %v1641 = vadd.f32 0.0, %v1640
      %v1642 = vpop.f32.mrf.mxu0
      %v1643 = vadd.f32 0.0, %v1642
      %1644 = vmatmul.bf16.gmra.mxu0 %v1392
      %v1645 = vpop.f32.mrf.mxu0
      %v1646 = vadd.f32 0.0, %v1645
      %v1647 = vpop.f32.mrf.mxu0
      %v1648 = vadd.f32 0.0, %v1647
      %1649 = vmatmul.bf16.gmra.mxu0 %v1394
      %v1650 = vpop.f32.mrf.mxu0
      %v1651 = vadd.f32 0.0, %v1650
      %v1652 = vpop.f32.mrf.mxu0
      %v1653 = vadd.f32 0.0, %v1652
      %1654 = vmatmul.bf16.gmra.mxu0 %v1396
      %v1655 = vpop.f32.mrf.mxu0
      %v1656 = vadd.f32 0.0, %v1655
      %v1657 = vpop.f32.mrf.mxu0
      %v1658 = vadd.f32 0.0, %v1657
      %1659 = vmatmul.bf16.gmra.mxu0 %v1398
      %v1660 = vpop.f32.mrf.mxu0
      %v1661 = vadd.f32 0.0, %v1660
      %v1662 = vpop.f32.mrf.mxu0
      %v1663 = vadd.f32 0.0, %v1662
      %1664 = vmatmul.bf16.gmra.mxu0 %v1400
      %v1665 = vpop.f32.mrf.mxu0
      %v1666 = vadd.f32 0.0, %v1665
      %v1667 = vpop.f32.mrf.mxu0
      %v1668 = vadd.f32 0.0, %v1667
      %1669 = vmatmul.bf16.gmra.mxu0 %v1402
      %v1670 = vpop.f32.mrf.mxu0
      %v1671 = vadd.f32 0.0, %v1670
      %v1672 = vpop.f32.mrf.mxu0
      %v1673 = vadd.f32 0.0, %v1672
      %1674 = vmatmul.bf16.gmra.mxu0 %v1404
      %v1675 = vpop.f32.mrf.mxu0
      %v1676 = vadd.f32 0.0, %v1675
      %v1677 = vpop.f32.mrf.mxu0
      %v1678 = vadd.f32 0.0, %v1677
      %1679 = vmatmul.bf16.gmra.mxu0 %v1406
      %v1680 = vpop.f32.mrf.mxu0
      %v1681 = vadd.f32 0.0, %v1680
      %v1682 = vpop.f32.mrf.mxu0
      %v1683 = vadd.f32 0.0, %v1682
      %1684 = vmatmul.bf16.gmra.mxu0 %v1408
      %v1685 = vpop.f32.mrf.mxu0
      %v1686 = vadd.f32 0.0, %v1685
      %v1687 = vpop.f32.mrf.mxu0
      %v1688 = vadd.f32 0.0, %v1687
      %1689 = vdwg.mxu0
      %1690 = vmatpush.bf16.msra.mxu0 0
      %1691 = vmatpush.bf16.msra.mxu0 0
      %1692 = vmatpush.bf16.msra.mxu0 0
      %1693 = vmatpush.bf16.msra.mxu0 0
      %1694 = vmatpush.bf16.msra.mxu0 0
      %1695 = vmatpush.bf16.msra.mxu0 0
      %1696 = vmatpush.bf16.msra.mxu0 %v1168
      %1697 = vmatpush.bf16.msra.mxu0 %v1166
      %1698 = vmatmul.bf16.gmra.mxu0 %v1442
      %v1699 = vpop.f32.mrf.mxu0
      %v1700 = vadd.f32 %v1541, %v1699
      %v1701 = vpop.f32.mrf.mxu0
      %v1702 = vadd.f32 %v1543, %v1701
      %1703 = vmatmul.bf16.gmra.mxu0 %v1445
      %v1704 = vpop.f32.mrf.mxu0
      %v1705 = vadd.f32 %v1546, %v1704
      %v1706 = vpop.f32.mrf.mxu0
      %v1707 = vadd.f32 %v1548, %v1706
      %1708 = vmatmul.bf16.gmra.mxu0 %v1448
      %v1709 = vpop.f32.mrf.mxu0
      %v1710 = vadd.f32 %v1551, %v1709
      %v1711 = vpop.f32.mrf.mxu0
      %v1712 = vadd.f32 %v1553, %v1711
      %1713 = vmatmul.bf16.gmra.mxu0 %v1451
      %v1714 = vpop.f32.mrf.mxu0
      %v1715 = vadd.f32 %v1556, %v1714
      %v1716 = vpop.f32.mrf.mxu0
      %v1717 = vadd.f32 %v1558, %v1716
      %1718 = vmatmul.bf16.gmra.mxu0 %v1454
      %v1719 = vpop.f32.mrf.mxu0
      %v1720 = vadd.f32 %v1561, %v1719
      %v1721 = vpop.f32.mrf.mxu0
      %v1722 = vadd.f32 %v1563, %v1721
      %1723 = vmatmul.bf16.gmra.mxu0 %v1457
      %v1724 = vpop.f32.mrf.mxu0
      %v1725 = vadd.f32 %v1566, %v1724
      %v1726 = vpop.f32.mrf.mxu0
      %v1727 = vadd.f32 %v1568, %v1726
      %1728 = vmatmul.bf16.gmra.mxu0 %v1460
      %v1729 = vpop.f32.mrf.mxu0
      %v1730 = vadd.f32 %v1571, %v1729
      %v1731 = vpop.f32.mrf.mxu0
      %v1732 = vadd.f32 %v1573, %v1731
      %1733 = vmatmul.bf16.gmra.mxu0 %v1463
      %v1734 = vpop.f32.mrf.mxu0
      %v1735 = vadd.f32 %v1576, %v1734
      %v1736 = vpop.f32.mrf.mxu0
      %v1737 = vadd.f32 %v1578, %v1736
      %1738 = vmatmul.bf16.gmra.mxu0 %v1466
      %v1739 = vpop.f32.mrf.mxu0
      %v1740 = vadd.f32 %v1581, %v1739
      %v1741 = vpop.f32.mrf.mxu0
      %v1742 = vadd.f32 %v1583, %v1741
      %1743 = vmatmul.bf16.gmra.mxu0 %v1469
      %v1744 = vpop.f32.mrf.mxu0
      %v1745 = vadd.f32 %v1586, %v1744
      %v1746 = vpop.f32.mrf.mxu0
      %v1747 = vadd.f32 %v1588, %v1746
      %1748 = vmatmul.bf16.gmra.mxu0 %v1472
      %v1749 = vpop.f32.mrf.mxu0
      %v1750 = vadd.f32 %v1591, %v1749
      %v1751 = vpop.f32.mrf.mxu0
      %v1752 = vadd.f32 %v1593, %v1751
      %1753 = vmatmul.bf16.gmra.mxu0 %v1475
      %v1754 = vpop.f32.mrf.mxu0
      %v1755 = vadd.f32 %v1596, %v1754
      %v1756 = vpop.f32.mrf.mxu0
      %v1757 = vadd.f32 %v1598, %v1756
      %1758 = vmatmul.bf16.gmra.mxu0 %v1478
      %v1759 = vpop.f32.mrf.mxu0
      %v1760 = vadd.f32 %v1601, %v1759
      %v1761 = vpop.f32.mrf.mxu0
      %v1762 = vadd.f32 %v1603, %v1761
      %1763 = vmatmul.bf16.gmra.mxu0 %v1481
      %v1764 = vpop.f32.mrf.mxu0
      %v1765 = vadd.f32 %v1606, %v1764
      %v1766 = vpop.f32.mrf.mxu0
      %v1767 = vadd.f32 %v1608, %v1766
      %1768 = vmatmul.bf16.gmra.mxu0 %v1484
      %v1769 = vpop.f32.mrf.mxu0
      %v1770 = vadd.f32 %v1611, %v1769
      %v1771 = vpop.f32.mrf.mxu0
      %v1772 = vadd.f32 %v1613, %v1771
      %1773 = vmatmul.bf16.gmra.mxu0 %v1487
      %v1774 = vpop.f32.mrf.mxu0
      %v1775 = vadd.f32 %v1616, %v1774
      %v1776 = vpop.f32.mrf.mxu0
      %v1777 = vadd.f32 %v1618, %v1776
      %1778 = vmatmul.bf16.gmra.mxu0 %v1490
      %v1779 = vpop.f32.mrf.mxu0
      %v1780 = vadd.f32 %v1621, %v1779
      %v1781 = vpop.f32.mrf.mxu0
      %v1782 = vadd.f32 %v1623, %v1781
      %1783 = vmatmul.bf16.gmra.mxu0 %v1493
      %v1784 = vpop.f32.mrf.mxu0
      %v1785 = vadd.f32 %v1626, %v1784
      %v1786 = vpop.f32.mrf.mxu0
      %v1787 = vadd.f32 %v1628, %v1786
      %1788 = vmatmul.bf16.gmra.mxu0 %v1496
      %v1789 = vpop.f32.mrf.mxu0
      %v1790 = vadd.f32 %v1631, %v1789
      %v1791 = vpop.f32.mrf.mxu0
      %v1792 = vadd.f32 %v1633, %v1791
      %1793 = vmatmul.bf16.gmra.mxu0 %v1499
      %v1794 = vpop.f32.mrf.mxu0
      %v1795 = vadd.f32 %v1636, %v1794
      %v1796 = vpop.f32.mrf.mxu0
      %v1797 = vadd.f32 %v1638, %v1796
      %1798 = vmatmul.bf16.gmra.mxu0 %v1502
      %v1799 = vpop.f32.mrf.mxu0
      %v1800 = vadd.f32 %v1641, %v1799
      %v1801 = vpop.f32.mrf.mxu0
      %v1802 = vadd.f32 %v1643, %v1801
      %1803 = vmatmul.bf16.gmra.mxu0 %v1505
      %v1804 = vpop.f32.mrf.mxu0
      %v1805 = vadd.f32 %v1646, %v1804
      %v1806 = vpop.f32.mrf.mxu0
      %v1807 = vadd.f32 %v1648, %v1806
      %1808 = vmatmul.bf16.gmra.mxu0 %v1508
      %v1809 = vpop.f32.mrf.mxu0
      %v1810 = vadd.f32 %v1651, %v1809
      %v1811 = vpop.f32.mrf.mxu0
      %v1812 = vadd.f32 %v1653, %v1811
      %1813 = vmatmul.bf16.gmra.mxu0 %v1511
      %v1814 = vpop.f32.mrf.mxu0
      %v1815 = vadd.f32 %v1656, %v1814
      %v1816 = vpop.f32.mrf.mxu0
      %v1817 = vadd.f32 %v1658, %v1816
      %1818 = vmatmul.bf16.gmra.mxu0 %v1514
      %v1819 = vpop.f32.mrf.mxu0
      %v1820 = vadd.f32 %v1661, %v1819
      %v1821 = vpop.f32.mrf.mxu0
      %v1822 = vadd.f32 %v1663, %v1821
      %1823 = vmatmul.bf16.gmra.mxu0 %v1517
      %v1824 = vpop.f32.mrf.mxu0
      %v1825 = vadd.f32 %v1666, %v1824
      %v1826 = vpop.f32.mrf.mxu0
      %v1827 = vadd.f32 %v1668, %v1826
      %1828 = vmatmul.bf16.gmra.mxu0 %v1520
      %v1829 = vpop.f32.mrf.mxu0
      %v1830 = vadd.f32 %v1671, %v1829
      %v1831 = vpop.f32.mrf.mxu0
      %v1832 = vadd.f32 %v1673, %v1831
      %1833 = vmatmul.bf16.gmra.mxu0 %v1523
      %v1834 = vpop.f32.mrf.mxu0
      %v1835 = vadd.f32 %v1676, %v1834
      %v1836 = vpop.f32.mrf.mxu0
      %v1837 = vadd.f32 %v1678, %v1836
      %1838 = vmatmul.bf16.gmra.mxu0 %v1526
      %v1839 = vpop.f32.mrf.mxu0
      %v1840 = vadd.f32 %v1681, %v1839
      %v1841 = vpop.f32.mrf.mxu0
      %v1842 = vadd.f32 %v1683, %v1841
      %1843 = vmatmul.bf16.gmra.mxu0 %v1529
      %v1844 = vpop.f32.mrf.mxu0
      %v1845 = vadd.f32 %v1686, %v1844
      %v1846 = vpop.f32.mrf.mxu0
      %v1847 = vadd.f32 %v1688, %v1846
      %1848 = vdwg.mxu0
      %1849 = vmatpush.bf16.msra.mxu0 %v1165
      %1850 = vmatpush.bf16.msra.mxu0 %v1163
      %1851 = vmatpush.bf16.msra.mxu0 %v1161
      %1852 = vmatpush.bf16.msra.mxu0 %v1159
      %1853 = vmatpush.bf16.msra.mxu0 %v1157
      %1854 = vmatpush.bf16.msra.mxu0 %v1155
      %1855 = vmatpush.bf16.msra.mxu0 %v1153
      %1856 = vmatpush.bf16.msra.mxu0 %v1151
      %1857 = vmatmul.bf16.gmra.mxu0 %v1350
      %v1858 = vpop.f32.mrf.mxu0
      %v1859 = vadd.f32 0.0, %v1858
      %v1860 = vpop.f32.mrf.mxu0
      %v1861 = vadd.f32 0.0, %v1860
      %1862 = vmatmul.bf16.gmra.mxu0 %v1352
      %v1863 = vpop.f32.mrf.mxu0
      %v1864 = vadd.f32 0.0, %v1863
      %v1865 = vpop.f32.mrf.mxu0
      %v1866 = vadd.f32 0.0, %v1865
      %1867 = vmatmul.bf16.gmra.mxu0 %v1354
      %v1868 = vpop.f32.mrf.mxu0
      %v1869 = vadd.f32 0.0, %v1868
      %v1870 = vpop.f32.mrf.mxu0
      %v1871 = vadd.f32 0.0, %v1870
      %1872 = vmatmul.bf16.gmra.mxu0 %v1356
      %v1873 = vpop.f32.mrf.mxu0
      %v1874 = vadd.f32 0.0, %v1873
      %v1875 = vpop.f32.mrf.mxu0
      %v1876 = vadd.f32 0.0, %v1875
      %1877 = vmatmul.bf16.gmra.mxu0 %v1358
      %v1878 = vpop.f32.mrf.mxu0
      %v1879 = vadd.f32 0.0, %v1878
      %v1880 = vpop.f32.mrf.mxu0
      %v1881 = vadd.f32 0.0, %v1880
      %1882 = vmatmul.bf16.gmra.mxu0 %v1360
      %v1883 = vpop.f32.mrf.mxu0
      %v1884 = vadd.f32 0.0, %v1883
      %v1885 = vpop.f32.mrf.mxu0
      %v1886 = vadd.f32 0.0, %v1885
      %1887 = vmatmul.bf16.gmra.mxu0 %v1362
      %v1888 = vpop.f32.mrf.mxu0
      %v1889 = vadd.f32 0.0, %v1888
      %v1890 = vpop.f32.mrf.mxu0
      %v1891 = vadd.f32 0.0, %v1890
      %1892 = vmatmul.bf16.gmra.mxu0 %v1364
      %v1893 = vpop.f32.mrf.mxu0
      %v1894 = vadd.f32 0.0, %v1893
      %v1895 = vpop.f32.mrf.mxu0
      %v1896 = vadd.f32 0.0, %v1895
      %1897 = vmatmul.bf16.gmra.mxu0 %v1366
      %v1898 = vpop.f32.mrf.mxu0
      %v1899 = vadd.f32 0.0, %v1898
      %v1900 = vpop.f32.mrf.mxu0
      %v1901 = vadd.f32 0.0, %v1900
      %1902 = vmatmul.bf16.gmra.mxu0 %v1368
      %v1903 = vpop.f32.mrf.mxu0
      %v1904 = vadd.f32 0.0, %v1903
      %v1905 = vpop.f32.mrf.mxu0
      %v1906 = vadd.f32 0.0, %v1905
      %1907 = vmatmul.bf16.gmra.mxu0 %v1370
      %v1908 = vpop.f32.mrf.mxu0
      %v1909 = vadd.f32 0.0, %v1908
      %v1910 = vpop.f32.mrf.mxu0
      %v1911 = vadd.f32 0.0, %v1910
      %1912 = vmatmul.bf16.gmra.mxu0 %v1372
      %v1913 = vpop.f32.mrf.mxu0
      %v1914 = vadd.f32 0.0, %v1913
      %v1915 = vpop.f32.mrf.mxu0
      %v1916 = vadd.f32 0.0, %v1915
      %1917 = vmatmul.bf16.gmra.mxu0 %v1374
      %v1918 = vpop.f32.mrf.mxu0
      %v1919 = vadd.f32 0.0, %v1918
      %v1920 = vpop.f32.mrf.mxu0
      %v1921 = vadd.f32 0.0, %v1920
      %1922 = vmatmul.bf16.gmra.mxu0 %v1376
      %v1923 = vpop.f32.mrf.mxu0
      %v1924 = vadd.f32 0.0, %v1923
      %v1925 = vpop.f32.mrf.mxu0
      %v1926 = vadd.f32 0.0, %v1925
      %1927 = vmatmul.bf16.gmra.mxu0 %v1378
      %v1928 = vpop.f32.mrf.mxu0
      %v1929 = vadd.f32 0.0, %v1928
      %v1930 = vpop.f32.mrf.mxu0
      %v1931 = vadd.f32 0.0, %v1930
      %1932 = vmatmul.bf16.gmra.mxu0 %v1380
      %v1933 = vpop.f32.mrf.mxu0
      %v1934 = vadd.f32 0.0, %v1933
      %v1935 = vpop.f32.mrf.mxu0
      %v1936 = vadd.f32 0.0, %v1935
      %1937 = vmatmul.bf16.gmra.mxu0 %v1382
      %v1938 = vpop.f32.mrf.mxu0
      %v1939 = vadd.f32 0.0, %v1938
      %v1940 = vpop.f32.mrf.mxu0
      %v1941 = vadd.f32 0.0, %v1940
      %1942 = vmatmul.bf16.gmra.mxu0 %v1384
      %v1943 = vpop.f32.mrf.mxu0
      %v1944 = vadd.f32 0.0, %v1943
      %v1945 = vpop.f32.mrf.mxu0
      %v1946 = vadd.f32 0.0, %v1945
      %1947 = vmatmul.bf16.gmra.mxu0 %v1386
      %v1948 = vpop.f32.mrf.mxu0
      %v1949 = vadd.f32 0.0, %v1948
      %v1950 = vpop.f32.mrf.mxu0
      %v1951 = vadd.f32 0.0, %v1950
      %1952 = vmatmul.bf16.gmra.mxu0 %v1388
      %v1953 = vpop.f32.mrf.mxu0
      %v1954 = vadd.f32 0.0, %v1953
      %v1955 = vpop.f32.mrf.mxu0
      %v1956 = vadd.f32 0.0, %v1955
      %1957 = vmatmul.bf16.gmra.mxu0 %v1390
      %v1958 = vpop.f32.mrf.mxu0
      %v1959 = vadd.f32 0.0, %v1958
      %v1960 = vpop.f32.mrf.mxu0
      %v1961 = vadd.f32 0.0, %v1960
      %1962 = vmatmul.bf16.gmra.mxu0 %v1392
      %v1963 = vpop.f32.mrf.mxu0
      %v1964 = vadd.f32 0.0, %v1963
      %v1965 = vpop.f32.mrf.mxu0
      %v1966 = vadd.f32 0.0, %v1965
      %1967 = vmatmul.bf16.gmra.mxu0 %v1394
      %v1968 = vpop.f32.mrf.mxu0
      %v1969 = vadd.f32 0.0, %v1968
      %v1970 = vpop.f32.mrf.mxu0
      %v1971 = vadd.f32 0.0, %v1970
      %1972 = vmatmul.bf16.gmra.mxu0 %v1396
      %v1973 = vpop.f32.mrf.mxu0
      %v1974 = vadd.f32 0.0, %v1973
      %v1975 = vpop.f32.mrf.mxu0
      %v1976 = vadd.f32 0.0, %v1975
      %1977 = vmatmul.bf16.gmra.mxu0 %v1398
      %v1978 = vpop.f32.mrf.mxu0
      %v1979 = vadd.f32 0.0, %v1978
      %v1980 = vpop.f32.mrf.mxu0
      %v1981 = vadd.f32 0.0, %v1980
      %1982 = vmatmul.bf16.gmra.mxu0 %v1400
      %v1983 = vpop.f32.mrf.mxu0
      %v1984 = vadd.f32 0.0, %v1983
      %v1985 = vpop.f32.mrf.mxu0
      %v1986 = vadd.f32 0.0, %v1985
      %1987 = vmatmul.bf16.gmra.mxu0 %v1402
      %v1988 = vpop.f32.mrf.mxu0
      %v1989 = vadd.f32 0.0, %v1988
      %v1990 = vpop.f32.mrf.mxu0
      %v1991 = vadd.f32 0.0, %v1990
      %1992 = vmatmul.bf16.gmra.mxu0 %v1404
      %v1993 = vpop.f32.mrf.mxu0
      %v1994 = vadd.f32 0.0, %v1993
      %v1995 = vpop.f32.mrf.mxu0
      %v1996 = vadd.f32 0.0, %v1995
      %1997 = vmatmul.bf16.gmra.mxu0 %v1406
      %v1998 = vpop.f32.mrf.mxu0
      %v1999 = vadd.f32 0.0, %v1998
      %v2000 = vpop.f32.mrf.mxu0
      %v2001 = vadd.f32 0.0, %v2000
      %2002 = vmatmul.bf16.gmra.mxu0 %v1408
      %v2003 = vpop.f32.mrf.mxu0
      %v2004 = vadd.f32 0.0, %v2003
      %v2005 = vpop.f32.mrf.mxu0
      %v2006 = vadd.f32 0.0, %v2005
      %2007 = vdwg.mxu0
      %2008 = vmatpush.bf16.msra.mxu0 0
      %2009 = vmatpush.bf16.msra.mxu0 0
      %2010 = vmatpush.bf16.msra.mxu0 0
      %2011 = vmatpush.bf16.msra.mxu0 0
      %2012 = vmatpush.bf16.msra.mxu0 0
      %2013 = vmatpush.bf16.msra.mxu0 0
      %2014 = vmatpush.bf16.msra.mxu0 %v1169
      %2015 = vmatpush.bf16.msra.mxu0 %v1167
      %2016 = vmatmul.bf16.gmra.mxu0 %v1442
      %v2017 = vpop.f32.mrf.mxu0
      %v2018 = vadd.f32 %v1859, %v2017
      %v2019 = vpop.f32.mrf.mxu0
      %v2020 = vadd.f32 %v1861, %v2019
      %2021 = vmatmul.bf16.gmra.mxu0 %v1445
      %v2022 = vpop.f32.mrf.mxu0
      %v2023 = vadd.f32 %v1864, %v2022
      %v2024 = vpop.f32.mrf.mxu0
      %v2025 = vadd.f32 %v1866, %v2024
      %2026 = vmatmul.bf16.gmra.mxu0 %v1448
      %v2027 = vpop.f32.mrf.mxu0
      %v2028 = vadd.f32 %v1869, %v2027
      %v2029 = vpop.f32.mrf.mxu0
      %v2030 = vadd.f32 %v1871, %v2029
      %2031 = vmatmul.bf16.gmra.mxu0 %v1451
      %v2032 = vpop.f32.mrf.mxu0
      %v2033 = vadd.f32 %v1874, %v2032
      %v2034 = vpop.f32.mrf.mxu0
      %v2035 = vadd.f32 %v1876, %v2034
      %2036 = vmatmul.bf16.gmra.mxu0 %v1454
      %v2037 = vpop.f32.mrf.mxu0
      %v2038 = vadd.f32 %v1879, %v2037
      %v2039 = vpop.f32.mrf.mxu0
      %v2040 = vadd.f32 %v1881, %v2039
      %2041 = vmatmul.bf16.gmra.mxu0 %v1457
      %v2042 = vpop.f32.mrf.mxu0
      %v2043 = vadd.f32 %v1884, %v2042
      %v2044 = vpop.f32.mrf.mxu0
      %v2045 = vadd.f32 %v1886, %v2044
      %2046 = vmatmul.bf16.gmra.mxu0 %v1460
      %v2047 = vpop.f32.mrf.mxu0
      %v2048 = vadd.f32 %v1889, %v2047
      %v2049 = vpop.f32.mrf.mxu0
      %v2050 = vadd.f32 %v1891, %v2049
      %2051 = vmatmul.bf16.gmra.mxu0 %v1463
      %v2052 = vpop.f32.mrf.mxu0
      %v2053 = vadd.f32 %v1894, %v2052
      %v2054 = vpop.f32.mrf.mxu0
      %v2055 = vadd.f32 %v1896, %v2054
      %2056 = vmatmul.bf16.gmra.mxu0 %v1466
      %v2057 = vpop.f32.mrf.mxu0
      %v2058 = vadd.f32 %v1899, %v2057
      %v2059 = vpop.f32.mrf.mxu0
      %v2060 = vadd.f32 %v1901, %v2059
      %2061 = vmatmul.bf16.gmra.mxu0 %v1469
      %v2062 = vpop.f32.mrf.mxu0
      %v2063 = vadd.f32 %v1904, %v2062
      %v2064 = vpop.f32.mrf.mxu0
      %v2065 = vadd.f32 %v1906, %v2064
      %2066 = vmatmul.bf16.gmra.mxu0 %v1472
      %v2067 = vpop.f32.mrf.mxu0
      %v2068 = vadd.f32 %v1909, %v2067
      %v2069 = vpop.f32.mrf.mxu0
      %v2070 = vadd.f32 %v1911, %v2069
      %2071 = vmatmul.bf16.gmra.mxu0 %v1475
      %v2072 = vpop.f32.mrf.mxu0
      %v2073 = vadd.f32 %v1914, %v2072
      %v2074 = vpop.f32.mrf.mxu0
      %v2075 = vadd.f32 %v1916, %v2074
      %2076 = vmatmul.bf16.gmra.mxu0 %v1478
      %v2077 = vpop.f32.mrf.mxu0
      %v2078 = vadd.f32 %v1919, %v2077
      %v2079 = vpop.f32.mrf.mxu0
      %v2080 = vadd.f32 %v1921, %v2079
      %2081 = vmatmul.bf16.gmra.mxu0 %v1481
      %v2082 = vpop.f32.mrf.mxu0
      %v2083 = vadd.f32 %v1924, %v2082
      %v2084 = vpop.f32.mrf.mxu0
      %v2085 = vadd.f32 %v1926, %v2084
      %2086 = vmatmul.bf16.gmra.mxu0 %v1484
      %v2087 = vpop.f32.mrf.mxu0
      %v2088 = vadd.f32 %v1929, %v2087
      %v2089 = vpop.f32.mrf.mxu0
      %v2090 = vadd.f32 %v1931, %v2089
      %2091 = vmatmul.bf16.gmra.mxu0 %v1487
      %v2092 = vpop.f32.mrf.mxu0
      %v2093 = vadd.f32 %v1934, %v2092
      %v2094 = vpop.f32.mrf.mxu0
      %v2095 = vadd.f32 %v1936, %v2094
      %2096 = vmatmul.bf16.gmra.mxu0 %v1490
      %v2097 = vpop.f32.mrf.mxu0
      %v2098 = vadd.f32 %v1939, %v2097
      %v2099 = vpop.f32.mrf.mxu0
      %v2100 = vadd.f32 %v1941, %v2099
      %2101 = vmatmul.bf16.gmra.mxu0 %v1493
      %v2102 = vpop.f32.mrf.mxu0
      %v2103 = vadd.f32 %v1944, %v2102
      %v2104 = vpop.f32.mrf.mxu0
      %v2105 = vadd.f32 %v1946, %v2104
      %2106 = vmatmul.bf16.gmra.mxu0 %v1496
      %v2107 = vpop.f32.mrf.mxu0
      %v2108 = vadd.f32 %v1949, %v2107
      %v2109 = vpop.f32.mrf.mxu0
      %v2110 = vadd.f32 %v1951, %v2109
      %2111 = vmatmul.bf16.gmra.mxu0 %v1499
      %v2112 = vpop.f32.mrf.mxu0
      %v2113 = vadd.f32 %v1954, %v2112
      %v2114 = vpop.f32.mrf.mxu0
      %v2115 = vadd.f32 %v1956, %v2114
      %2116 = vmatmul.bf16.gmra.mxu0 %v1502
      %v2117 = vpop.f32.mrf.mxu0
      %v2118 = vadd.f32 %v1959, %v2117
      %v2119 = vpop.f32.mrf.mxu0
      %v2120 = vadd.f32 %v1961, %v2119
      %2121 = vmatmul.bf16.gmra.mxu0 %v1505
      %v2122 = vpop.f32.mrf.mxu0
      %v2123 = vadd.f32 %v1964, %v2122
      %v2124 = vpop.f32.mrf.mxu0
      %v2125 = vadd.f32 %v1966, %v2124
      %2126 = vmatmul.bf16.gmra.mxu0 %v1508
      %v2127 = vpop.f32.mrf.mxu0
      %v2128 = vadd.f32 %v1969, %v2127
      %v2129 = vpop.f32.mrf.mxu0
      %v2130 = vadd.f32 %v1971, %v2129
      %2131 = vmatmul.bf16.gmra.mxu0 %v1511
      %v2132 = vpop.f32.mrf.mxu0
      %v2133 = vadd.f32 %v1974, %v2132
      %v2134 = vpop.f32.mrf.mxu0
      %v2135 = vadd.f32 %v1976, %v2134
      %2136 = vmatmul.bf16.gmra.mxu0 %v1514
      %v2137 = vpop.f32.mrf.mxu0
      %v2138 = vadd.f32 %v1979, %v2137
      %v2139 = vpop.f32.mrf.mxu0
      %v2140 = vadd.f32 %v1981, %v2139
      %2141 = vmatmul.bf16.gmra.mxu0 %v1517
      %v2142 = vpop.f32.mrf.mxu0
      %v2143 = vadd.f32 %v1984, %v2142
      %v2144 = vpop.f32.mrf.mxu0
      %v2145 = vadd.f32 %v1986, %v2144
      %2146 = vmatmul.bf16.gmra.mxu0 %v1520
      %v2147 = vpop.f32.mrf.mxu0
      %v2148 = vadd.f32 %v1989, %v2147
      %v2149 = vpop.f32.mrf.mxu0
      %v2150 = vadd.f32 %v1991, %v2149
      %2151 = vmatmul.bf16.gmra.mxu0 %v1523
      %v2152 = vpop.f32.mrf.mxu0
      %v2153 = vadd.f32 %v1994, %v2152
      %v2154 = vpop.f32.mrf.mxu0
      %v2155 = vadd.f32 %v1996, %v2154
      %2156 = vmatmul.bf16.gmra.mxu0 %v1526
      %v2157 = vpop.f32.mrf.mxu0
      %v2158 = vadd.f32 %v1999, %v2157
      %v2159 = vpop.f32.mrf.mxu0
      %v2160 = vadd.f32 %v2001, %v2159
      %2161 = vmatmul.bf16.gmra.mxu0 %v1529
      %v2162 = vpop.f32.mrf.mxu0
      %v2163 = vadd.f32 %v2004, %v2162
      %v2164 = vpop.f32.mrf.mxu0
      %v2165 = vadd.f32 %v2006, %v2164
      %2166 = vdwg.mxu0
      %v2167 = vld [vmem:[%s219] sm:$0xff]
      %v2168 = vld [vmem:[%s219 + $0x8] sm:$0xff]
      %v2169 = vld [vmem:[%s219 + $0x10] sm:$0xff]
      %v2170 = vld [vmem:[%s219 + $0x18] sm:$0xff]
      %v2171 = vld [vmem:[%s219 + $0x20] sm:$0xff]
      %v2172 = vld [vmem:[%s219 + $0x28] sm:$0xff]
      %v2173 = vld [vmem:[%s219 + $0x30] sm:$0xff]
      %v2174 = vld [vmem:[%s219 + $0x38] sm:$0xff]
      %v2175 = vld [vmem:[%s219 + $0x40] sm:$0xff]
      %v2176 = vld [vmem:[%s219 + $0x48] sm:$0xff]
      %v2177 = vld [vmem:[%s219 + $0x50] sm:$0xff]
      %v2178 = vld [vmem:[%s219 + $0x58] sm:$0xff]
      %v2179 = vld [vmem:[%s219 + $0x60] sm:$0xff]
      %v2180 = vld [vmem:[%s219 + $0x68] sm:$0xff]
      %v2181 = vld [vmem:[%s219 + $0x70] sm:$0xff]
      %v2182 = vld [vmem:[%s219 + $0x78] sm:$0xff]
      %v2183 = vld [vmem:[%s219 + $0x80] sm:$0xff]
      %v2184 = vld [vmem:[%s219 + $0x88] sm:$0xff]
      %v2185 = vld [vmem:[%s219 + $0x90] sm:$0xff]
      %v2186 = vld [vmem:[%s219 + $0x98] sm:$0xff]
      %v2187 = vld [vmem:[%s219 + $0xa0] sm:$0xff]
      %v2188 = vld [vmem:[%s219 + $0xa8] sm:$0xff]
      %v2189 = vld [vmem:[%s219 + $0xb0] sm:$0xff]
      %v2190 = vld [vmem:[%s219 + $0xb8] sm:$0xff]
      %v2191 = vld [vmem:[%s219 + $0xc0] sm:$0xff]
      %v2192 = vld [vmem:[%s219 + $0xc8] sm:$0xff]
      %v2193 = vld [vmem:[%s219 + $0xd0] sm:$0xff]
      %v2194 = vld [vmem:[%s219 + $0xd8] sm:$0xff]
      %v2195 = vld [vmem:[%s219 + $0xe0] sm:$0xff]
      %v2196 = vld [vmem:[%s219 + $0xe8] sm:$0xff]
      %v2197 = vld [vmem:[%s219 + $0xf0] sm:$0xff]
      %v2198 = vld [vmem:[%s219 + $0xf8] sm:$0xff]
      %v2199 = vld [vmem:[%s219 + $0x100] sm:$0xff]
      %v2200 = vld [vmem:[%s219 + $0x108] sm:$0xff]
      %v2201 = vld [vmem:[%s219 + $0x110] sm:$0xff]
      %v2202 = vld [vmem:[%s219 + $0x118] sm:$0xff]
      %v2203 = vld [vmem:[%s219 + $0x120] sm:$0xff]
      %v2204 = vld [vmem:[%s219 + $0x128] sm:$0xff]
      %v2205 = vld [vmem:[%s219 + $0x130] sm:$0xff]
      %v2206 = vld [vmem:[%s219 + $0x138] sm:$0xff]
      %v2207 = vld [vmem:[%s219 + $0x140] sm:$0xff]
      %v2208 = vld [vmem:[%s219 + $0x148] sm:$0xff]
      %v2209 = vld [vmem:[%s219 + $0x150] sm:$0xff]
      %v2210 = vld [vmem:[%s219 + $0x158] sm:$0xff]
      %v2211 = vld [vmem:[%s219 + $0x160] sm:$0xff]
      %v2212 = vld [vmem:[%s219 + $0x168] sm:$0xff]
      %v2213 = vld [vmem:[%s219 + $0x170] sm:$0xff]
      %v2214 = vld [vmem:[%s219 + $0x178] sm:$0xff]
      %v2215 = vld [vmem:[%s219 + $0x180] sm:$0xff]
      %v2216 = vld [vmem:[%s219 + $0x188] sm:$0xff]
      %v2217 = vld [vmem:[%s219 + $0x190] sm:$0xff]
      %v2218 = vld [vmem:[%s219 + $0x198] sm:$0xff]
      %v2219 = vld [vmem:[%s219 + $0x1a0] sm:$0xff]
      %v2220 = vld [vmem:[%s219 + $0x1a8] sm:$0xff]
      %v2221 = vld [vmem:[%s219 + $0x1b0] sm:$0xff]
      %v2222 = vld [vmem:[%s219 + $0x1b8] sm:$0xff]
      %v2223 = vld [vmem:[%s219 + $0x1c0] sm:$0xff]
      %v2224 = vld [vmem:[%s219 + $0x1c8] sm:$0xff]
      %v2225 = vld [vmem:[%s219 + $0x1d0] sm:$0xff]
      %v2226 = vld [vmem:[%s219 + $0x1d8] sm:$0xff]
      %v2227 = vsel %vm289, %v2018, 0.0
      %v2228 = vadd.f32 %v1700, %v2227
      %2229 = vadd.xlane.f32.xlu0 %v2228
      %v2230 = vpop.xlane.xlu0 %2229
      %v2231 = vsel %vm289, %v2020, 0.0
      %v2232 = vadd.f32 %v1702, %v2231
      %2233 = vadd.xlane.f32.xlu0 %v2232
      %v2234 = vpop.xlane.xlu0 %2233
      %v2235 = vsel %vm289, %v2023, 0.0
      %v2236 = vadd.f32 %v1705, %v2235
      %2237 = vadd.xlane.f32.xlu0 %v2236
      %v2238 = vpop.xlane.xlu0 %2237
      %v2239 = vsel %vm289, %v2025, 0.0
      %v2240 = vadd.f32 %v1707, %v2239
      %2241 = vadd.xlane.f32.xlu0 %v2240
      %v2242 = vpop.xlane.xlu0 %2241
      %v2243 = vsel %vm289, %v2028, 0.0
      %v2244 = vadd.f32 %v1710, %v2243
      %2245 = vadd.xlane.f32.xlu0 %v2244
      %v2246 = vpop.xlane.xlu0 %2245
      %v2247 = vsel %vm289, %v2030, 0.0
      %v2248 = vadd.f32 %v1712, %v2247
      %2249 = vadd.xlane.f32.xlu0 %v2248
      %v2250 = vpop.xlane.xlu0 %2249
      %v2251 = vsel %vm289, %v2033, 0.0
      %v2252 = vadd.f32 %v1715, %v2251
      %2253 = vadd.xlane.f32.xlu0 %v2252
      %v2254 = vpop.xlane.xlu0 %2253
      %v2255 = vsel %vm289, %v2035, 0.0
      %v2256 = vadd.f32 %v1717, %v2255
      %2257 = vadd.xlane.f32.xlu0 %v2256
      %v2258 = vpop.xlane.xlu0 %2257
      %v2259 = vsel %vm289, %v2038, 0.0
      %v2260 = vadd.f32 %v1720, %v2259
      %2261 = vadd.xlane.f32.xlu0 %v2260
      %v2262 = vpop.xlane.xlu0 %2261
      %v2263 = vsel %vm289, %v2040, 0.0
      %v2264 = vadd.f32 %v1722, %v2263
      %2265 = vadd.xlane.f32.xlu0 %v2264
      %v2266 = vpop.xlane.xlu0 %2265
      %v2267 = vsel %vm289, %v2043, 0.0
      %v2268 = vadd.f32 %v1725, %v2267
      %2269 = vadd.xlane.f32.xlu0 %v2268
      %v2270 = vpop.xlane.xlu0 %2269
      %v2271 = vsel %vm289, %v2045, 0.0
      %v2272 = vadd.f32 %v1727, %v2271
      %2273 = vadd.xlane.f32.xlu0 %v2272
      %v2274 = vpop.xlane.xlu0 %2273
      %v2275 = vsel %vm289, %v2048, 0.0
      %v2276 = vadd.f32 %v1730, %v2275
      %2277 = vadd.xlane.f32.xlu0 %v2276
      %v2278 = vpop.xlane.xlu0 %2277
      %v2279 = vsel %vm289, %v2050, 0.0
      %v2280 = vadd.f32 %v1732, %v2279
      %2281 = vadd.xlane.f32.xlu0 %v2280
      %v2282 = vpop.xlane.xlu0 %2281
      %v2283 = vsel %vm289, %v2053, 0.0
      %v2284 = vadd.f32 %v1735, %v2283
      %2285 = vadd.xlane.f32.xlu0 %v2284
      %v2286 = vpop.xlane.xlu0 %2285
      %v2287 = vsel %vm289, %v2055, 0.0
      %v2288 = vadd.f32 %v1737, %v2287
      %2289 = vadd.xlane.f32.xlu0 %v2288
      %v2290 = vpop.xlane.xlu0 %2289
      %v2291 = vsel %vm289, %v2058, 0.0
      %v2292 = vadd.f32 %v1740, %v2291
      %2293 = vadd.xlane.f32.xlu0 %v2292
      %v2294 = vpop.xlane.xlu0 %2293
      %v2295 = vsel %vm289, %v2060, 0.0
      %v2296 = vadd.f32 %v1742, %v2295
      %2297 = vadd.xlane.f32.xlu0 %v2296
      %v2298 = vpop.xlane.xlu0 %2297
      %v2299 = vsel %vm289, %v2063, 0.0
      %v2300 = vadd.f32 %v1745, %v2299
      %2301 = vadd.xlane.f32.xlu0 %v2300
      %v2302 = vpop.xlane.xlu0 %2301
      %v2303 = vsel %vm289, %v2065, 0.0
      %v2304 = vadd.f32 %v1747, %v2303
      %2305 = vadd.xlane.f32.xlu0 %v2304
      %v2306 = vpop.xlane.xlu0 %2305
      %v2307 = vsel %vm289, %v2068, 0.0
      %v2308 = vadd.f32 %v1750, %v2307
      %2309 = vadd.xlane.f32.xlu0 %v2308
      %v2310 = vpop.xlane.xlu0 %2309
      %v2311 = vsel %vm289, %v2070, 0.0
      %v2312 = vadd.f32 %v1752, %v2311
      %2313 = vadd.xlane.f32.xlu0 %v2312
      %v2314 = vpop.xlane.xlu0 %2313
      %v2315 = vsel %vm289, %v2073, 0.0
      %v2316 = vadd.f32 %v1755, %v2315
      %2317 = vadd.xlane.f32.xlu0 %v2316
      %v2318 = vpop.xlane.xlu0 %2317
      %v2319 = vsel %vm289, %v2075, 0.0
      %v2320 = vadd.f32 %v1757, %v2319
      %2321 = vadd.xlane.f32.xlu0 %v2320
      %v2322 = vpop.xlane.xlu0 %2321
      %v2323 = vsel %vm289, %v2078, 0.0
      %v2324 = vadd.f32 %v1760, %v2323
      %2325 = vadd.xlane.f32.xlu0 %v2324
      %v2326 = vpop.xlane.xlu0 %2325
      %v2327 = vsel %vm289, %v2080, 0.0
      %v2328 = vadd.f32 %v1762, %v2327
      %2329 = vadd.xlane.f32.xlu0 %v2328
      %v2330 = vpop.xlane.xlu0 %2329
      %v2331 = vsel %vm289, %v2083, 0.0
      %v2332 = vadd.f32 %v1765, %v2331
      %2333 = vadd.xlane.f32.xlu0 %v2332
      %v2334 = vpop.xlane.xlu0 %2333
      %v2335 = vsel %vm289, %v2085, 0.0
      %v2336 = vadd.f32 %v1767, %v2335
      %2337 = vadd.xlane.f32.xlu0 %v2336
      %v2338 = vpop.xlane.xlu0 %2337
      %v2339 = vsel %vm289, %v2088, 0.0
      %v2340 = vadd.f32 %v1770, %v2339
      %2341 = vadd.xlane.f32.xlu0 %v2340
      %v2342 = vpop.xlane.xlu0 %2341
      %v2343 = vsel %vm289, %v2090, 0.0
      %v2344 = vadd.f32 %v1772, %v2343
      %2345 = vadd.xlane.f32.xlu0 %v2344
      %v2346 = vpop.xlane.xlu0 %2345
      %v2347 = vsel %vm289, %v2093, 0.0
      %v2348 = vadd.f32 %v1775, %v2347
      %2349 = vadd.xlane.f32.xlu0 %v2348
      %v2350 = vpop.xlane.xlu0 %2349
      %v2351 = vsel %vm289, %v2095, 0.0
      %v2352 = vadd.f32 %v1777, %v2351
      %2353 = vadd.xlane.f32.xlu0 %v2352
      %v2354 = vpop.xlane.xlu0 %2353
      %v2355 = vsel %vm289, %v2098, 0.0
      %v2356 = vadd.f32 %v1780, %v2355
      %2357 = vadd.xlane.f32.xlu0 %v2356
      %v2358 = vpop.xlane.xlu0 %2357
      %v2359 = vsel %vm289, %v2100, 0.0
      %v2360 = vadd.f32 %v1782, %v2359
      %2361 = vadd.xlane.f32.xlu0 %v2360
      %v2362 = vpop.xlane.xlu0 %2361
      %v2363 = vsel %vm289, %v2103, 0.0
      %v2364 = vadd.f32 %v1785, %v2363
      %2365 = vadd.xlane.f32.xlu0 %v2364
      %v2366 = vpop.xlane.xlu0 %2365
      %v2367 = vsel %vm289, %v2105, 0.0
      %v2368 = vadd.f32 %v1787, %v2367
      %2369 = vadd.xlane.f32.xlu0 %v2368
      %v2370 = vpop.xlane.xlu0 %2369
      %v2371 = vsel %vm289, %v2108, 0.0
      %v2372 = vadd.f32 %v1790, %v2371
      %2373 = vadd.xlane.f32.xlu0 %v2372
      %v2374 = vpop.xlane.xlu0 %2373
      %v2375 = vsel %vm289, %v2110, 0.0
      %v2376 = vadd.f32 %v1792, %v2375
      %2377 = vadd.xlane.f32.xlu0 %v2376
      %v2378 = vpop.xlane.xlu0 %2377
      %v2379 = vsel %vm289, %v2113, 0.0
      %v2380 = vadd.f32 %v1795, %v2379
      %2381 = vadd.xlane.f32.xlu0 %v2380
      %v2382 = vpop.xlane.xlu0 %2381
      %v2383 = vsel %vm289, %v2115, 0.0
      %v2384 = vadd.f32 %v1797, %v2383
      %2385 = vadd.xlane.f32.xlu0 %v2384
      %v2386 = vpop.xlane.xlu0 %2385
      %v2387 = vsel %vm289, %v2118, 0.0
      %v2388 = vadd.f32 %v1800, %v2387
      %2389 = vadd.xlane.f32.xlu0 %v2388
      %v2390 = vpop.xlane.xlu0 %2389
      %v2391 = vsel %vm289, %v2120, 0.0
      %v2392 = vadd.f32 %v1802, %v2391
      %2393 = vadd.xlane.f32.xlu0 %v2392
      %v2394 = vpop.xlane.xlu0 %2393
      %v2395 = vsel %vm289, %v2123, 0.0
      %v2396 = vadd.f32 %v1805, %v2395
      %2397 = vadd.xlane.f32.xlu0 %v2396
      %v2398 = vpop.xlane.xlu0 %2397
      %v2399 = vsel %vm289, %v2125, 0.0
      %v2400 = vadd.f32 %v1807, %v2399
      %2401 = vadd.xlane.f32.xlu0 %v2400
      %v2402 = vpop.xlane.xlu0 %2401
      %v2403 = vsel %vm289, %v2128, 0.0
      %v2404 = vadd.f32 %v1810, %v2403
      %2405 = vadd.xlane.f32.xlu0 %v2404
      %v2406 = vpop.xlane.xlu0 %2405
      %v2407 = vsel %vm289, %v2130, 0.0
      %v2408 = vadd.f32 %v1812, %v2407
      %2409 = vadd.xlane.f32.xlu0 %v2408
      %v2410 = vpop.xlane.xlu0 %2409
      %v2411 = vsel %vm289, %v2133, 0.0
      %v2412 = vadd.f32 %v1815, %v2411
      %2413 = vadd.xlane.f32.xlu0 %v2412
      %v2414 = vpop.xlane.xlu0 %2413
      %v2415 = vsel %vm289, %v2135, 0.0
      %v2416 = vadd.f32 %v1817, %v2415
      %2417 = vadd.xlane.f32.xlu0 %v2416
      %v2418 = vpop.xlane.xlu0 %2417
      %v2419 = vsel %vm289, %v2138, 0.0
      %v2420 = vadd.f32 %v1820, %v2419
      %2421 = vadd.xlane.f32.xlu0 %v2420
      %v2422 = vpop.xlane.xlu0 %2421
      %v2423 = vsel %vm289, %v2140, 0.0
      %v2424 = vadd.f32 %v1822, %v2423
      %2425 = vadd.xlane.f32.xlu0 %v2424
      %v2426 = vpop.xlane.xlu0 %2425
      %v2427 = vsel %vm289, %v2143, 0.0
      %v2428 = vadd.f32 %v1825, %v2427
      %2429 = vadd.xlane.f32.xlu0 %v2428
      %v2430 = vpop.xlane.xlu0 %2429
      %v2431 = vsel %vm289, %v2145, 0.0
      %v2432 = vadd.f32 %v1827, %v2431
      %2433 = vadd.xlane.f32.xlu0 %v2432
      %v2434 = vpop.xlane.xlu0 %2433
      %v2435 = vsel %vm289, %v2148, 0.0
      %v2436 = vadd.f32 %v1830, %v2435
      %2437 = vadd.xlane.f32.xlu0 %v2436
      %v2438 = vpop.xlane.xlu0 %2437
      %v2439 = vsel %vm289, %v2150, 0.0
      %v2440 = vadd.f32 %v1832, %v2439
      %2441 = vadd.xlane.f32.xlu0 %v2440
      %v2442 = vpop.xlane.xlu0 %2441
      %v2443 = vsel %vm289, %v2153, 0.0
      %v2444 = vadd.f32 %v1835, %v2443
      %2445 = vadd.xlane.f32.xlu0 %v2444
      %v2446 = vpop.xlane.xlu0 %2445
      %v2447 = vsel %vm289, %v2155, 0.0
      %v2448 = vadd.f32 %v1837, %v2447
      %2449 = vadd.xlane.f32.xlu0 %v2448
      %v2450 = vpop.xlane.xlu0 %2449
      %v2451 = vsel %vm289, %v2158, 0.0
      %v2452 = vadd.f32 %v1840, %v2451
      %2453 = vadd.xlane.f32.xlu0 %v2452
      %v2454 = vpop.xlane.xlu0 %2453
      %v2455 = vsel %vm289, %v2160, 0.0
      %v2456 = vadd.f32 %v1842, %v2455
      %2457 = vadd.xlane.f32.xlu0 %v2456
      %v2458 = vpop.xlane.xlu0 %2457
      %v2459 = vsel %vm289, %v2163, 0.0
      %v2460 = vadd.f32 %v1845, %v2459
      %2461 = vadd.xlane.f32.xlu0 %v2460
      %v2462 = vpop.xlane.xlu0 %2461
      %v2463 = vsel %vm289, %v2165, 0.0
      %v2464 = vadd.f32 %v1847, %v2463
      %2465 = vadd.xlane.f32.xlu0 %v2464
      %v2466 = vpop.xlane.xlu0 %2465
      %v2467 = vmul.f32 %v2230, 0.0051020407
      %v2468 = vmul.f32 %v2234, 0.0051020407
      %v2469 = vmul.f32 %v2238, 0.0051020407
      %v2470 = vmul.f32 %v2242, 0.0051020407
      %v2471 = vmul.f32 %v2246, 0.0051020407
      %v2472 = vmul.f32 %v2250, 0.0051020407
      %v2473 = vmul.f32 %v2254, 0.0051020407
      %v2474 = vmul.f32 %v2258, 0.0051020407
      %v2475 = vmul.f32 %v2262, 0.0051020407
      %v2476 = vmul.f32 %v2266, 0.0051020407
      %v2477 = vmul.f32 %v2270, 0.0051020407
      %v2478 = vmul.f32 %v2274, 0.0051020407
      %v2479 = vmul.f32 %v2278, 0.0051020407
      %v2480 = vmul.f32 %v2282, 0.0051020407
      %v2481 = vmul.f32 %v2286, 0.0051020407
      %v2482 = vmul.f32 %v2290, 0.0051020407
      %v2483 = vmul.f32 %v2294, 0.0051020407
      %v2484 = vmul.f32 %v2298, 0.0051020407
      %v2485 = vmul.f32 %v2302, 0.0051020407
      %v2486 = vmul.f32 %v2306, 0.0051020407
      %v2487 = vmul.f32 %v2310, 0.0051020407
      %v2488 = vmul.f32 %v2314, 0.0051020407
      %v2489 = vmul.f32 %v2318, 0.0051020407
      %v2490 = vmul.f32 %v2322, 0.0051020407
      %v2491 = vmul.f32 %v2326, 0.0051020407
      %v2492 = vmul.f32 %v2330, 0.0051020407
      %v2493 = vmul.f32 %v2334, 0.0051020407
      %v2494 = vmul.f32 %v2338, 0.0051020407
      %v2495 = vmul.f32 %v2342, 0.0051020407
      %v2496 = vmul.f32 %v2346, 0.0051020407
      %v2497 = vmul.f32 %v2350, 0.0051020407
      %v2498 = vmul.f32 %v2354, 0.0051020407
      %v2499 = vmul.f32 %v2358, 0.0051020407
      %v2500 = vmul.f32 %v2362, 0.0051020407
      %v2501 = vmul.f32 %v2366, 0.0051020407
      %v2502 = vmul.f32 %v2370, 0.0051020407
      %v2503 = vmul.f32 %v2374, 0.0051020407
      %v2504 = vmul.f32 %v2378, 0.0051020407
      %v2505 = vmul.f32 %v2382, 0.0051020407
      %v2506 = vmul.f32 %v2386, 0.0051020407
      %v2507 = vmul.f32 %v2390, 0.0051020407
      %v2508 = vmul.f32 %v2394, 0.0051020407
      %v2509 = vmul.f32 %v2398, 0.0051020407
      %v2510 = vmul.f32 %v2402, 0.0051020407
      %v2511 = vmul.f32 %v2406, 0.0051020407
      %v2512 = vmul.f32 %v2410, 0.0051020407
      %v2513 = vmul.f32 %v2414, 0.0051020407
      %v2514 = vmul.f32 %v2418, 0.0051020407
      %v2515 = vmul.f32 %v2422, 0.0051020407
      %v2516 = vmul.f32 %v2426, 0.0051020407
      %v2517 = vmul.f32 %v2430, 0.0051020407
      %v2518 = vmul.f32 %v2434, 0.0051020407
      %v2519 = vmul.f32 %v2438, 0.0051020407
      %v2520 = vmul.f32 %v2442, 0.0051020407
      %v2521 = vmul.f32 %v2446, 0.0051020407
      %v2522 = vmul.f32 %v2450, 0.0051020407
      %v2523 = vmul.f32 %v2454, 0.0051020407
      %v2524 = vmul.f32 %v2458, 0.0051020407
      %v2525 = vmul.f32 %v2462, 0.0051020407
      %v2526 = vmul.f32 %v2466, 0.0051020407
      %v2527 = vsub.f32 %v1700, %v2467
      %v2528 = vsub.f32 %v2018, %v2467
      %v2529 = vsub.f32 %v1702, %v2468
      %v2530 = vsub.f32 %v2020, %v2468
      %v2531 = vsub.f32 %v1705, %v2469
      %v2532 = vsub.f32 %v2023, %v2469
      %v2533 = vsub.f32 %v1707, %v2470
      %v2534 = vsub.f32 %v2025, %v2470
      %v2535 = vsub.f32 %v1710, %v2471
      %v2536 = vsub.f32 %v2028, %v2471
      %v2537 = vsub.f32 %v1712, %v2472
      %v2538 = vsub.f32 %v2030, %v2472
      %v2539 = vsub.f32 %v1715, %v2473
      %v2540 = vsub.f32 %v2033, %v2473
      %v2541 = vsub.f32 %v1717, %v2474
      %v2542 = vsub.f32 %v2035, %v2474
      %v2543 = vsub.f32 %v1720, %v2475
      %v2544 = vsub.f32 %v2038, %v2475
      %v2545 = vsub.f32 %v1722, %v2476
      %v2546 = vsub.f32 %v2040, %v2476
      %v2547 = vsub.f32 %v1725, %v2477
      %v2548 = vsub.f32 %v2043, %v2477
      %v2549 = vsub.f32 %v1727, %v2478
      %v2550 = vsub.f32 %v2045, %v2478
      %v2551 = vsub.f32 %v1730, %v2479
      %v2552 = vsub.f32 %v2048, %v2479
      %v2553 = vsub.f32 %v1732, %v2480
      %v2554 = vsub.f32 %v2050, %v2480
      %v2555 = vsub.f32 %v1735, %v2481
      %v2556 = vsub.f32 %v2053, %v2481
      %v2557 = vsub.f32 %v1737, %v2482
      %v2558 = vsub.f32 %v2055, %v2482
      %v2559 = vsub.f32 %v1740, %v2483
      %v2560 = vsub.f32 %v2058, %v2483
      %v2561 = vsub.f32 %v1742, %v2484
      %v2562 = vsub.f32 %v2060, %v2484
      %v2563 = vsub.f32 %v1745, %v2485
      %v2564 = vsub.f32 %v2063, %v2485
      %v2565 = vsub.f32 %v1747, %v2486
      %v2566 = vsub.f32 %v2065, %v2486
      %v2567 = vsub.f32 %v1750, %v2487
      %v2568 = vsub.f32 %v2068, %v2487
      %v2569 = vsub.f32 %v1752, %v2488
      %v2570 = vsub.f32 %v2070, %v2488
      %v2571 = vsub.f32 %v1755, %v2489
      %v2572 = vsub.f32 %v2073, %v2489
      %v2573 = vsub.f32 %v1757, %v2490
      %v2574 = vsub.f32 %v2075, %v2490
      %v2575 = vsub.f32 %v1760, %v2491
      %v2576 = vsub.f32 %v2078, %v2491
      %v2577 = vsub.f32 %v1762, %v2492
      %v2578 = vsub.f32 %v2080, %v2492
      %v2579 = vsub.f32 %v1765, %v2493
      %v2580 = vsub.f32 %v2083, %v2493
      %v2581 = vsub.f32 %v1767, %v2494
      %v2582 = vsub.f32 %v2085, %v2494
      %v2583 = vsub.f32 %v1770, %v2495
      %v2584 = vsub.f32 %v2088, %v2495
      %v2585 = vsub.f32 %v1772, %v2496
      %v2586 = vsub.f32 %v2090, %v2496
      %v2587 = vsub.f32 %v1775, %v2497
      %v2588 = vsub.f32 %v2093, %v2497
      %v2589 = vsub.f32 %v1777, %v2498
      %v2590 = vsub.f32 %v2095, %v2498
      %v2591 = vsub.f32 %v1780, %v2499
      %v2592 = vsub.f32 %v2098, %v2499
      %v2593 = vsub.f32 %v1782, %v2500
      %v2594 = vsub.f32 %v2100, %v2500
      %v2595 = vsub.f32 %v1785, %v2501
      %v2596 = vsub.f32 %v2103, %v2501
      %v2597 = vsub.f32 %v1787, %v2502
      %v2598 = vsub.f32 %v2105, %v2502
      %v2599 = vsub.f32 %v1790, %v2503
      %v2600 = vsub.f32 %v2108, %v2503
      %v2601 = vsub.f32 %v1792, %v2504
      %v2602 = vsub.f32 %v2110, %v2504
      %v2603 = vsub.f32 %v1795, %v2505
      %v2604 = vsub.f32 %v2113, %v2505
      %v2605 = vsub.f32 %v1797, %v2506
      %v2606 = vsub.f32 %v2115, %v2506
      %v2607 = vsub.f32 %v1800, %v2507
      %v2608 = vsub.f32 %v2118, %v2507
      %v2609 = vsub.f32 %v1802, %v2508
      %v2610 = vsub.f32 %v2120, %v2508
      %v2611 = vsub.f32 %v1805, %v2509
      %v2612 = vsub.f32 %v2123, %v2509
      %v2613 = vsub.f32 %v1807, %v2510
      %v2614 = vsub.f32 %v2125, %v2510
      %v2615 = vsub.f32 %v1810, %v2511
      %v2616 = vsub.f32 %v2128, %v2511
      %v2617 = vsub.f32 %v1812, %v2512
      %v2618 = vsub.f32 %v2130, %v2512
      %v2619 = vsub.f32 %v1815, %v2513
      %v2620 = vsub.f32 %v2133, %v2513
      %v2621 = vsub.f32 %v1817, %v2514
      %v2622 = vsub.f32 %v2135, %v2514
      %v2623 = vsub.f32 %v1820, %v2515
      %v2624 = vsub.f32 %v2138, %v2515
      %v2625 = vsub.f32 %v1822, %v2516
      %v2626 = vsub.f32 %v2140, %v2516
      %v2627 = vsub.f32 %v1825, %v2517
      %v2628 = vsub.f32 %v2143, %v2517
      %v2629 = vsub.f32 %v1827, %v2518
      %v2630 = vsub.f32 %v2145, %v2518
      %v2631 = vsub.f32 %v1830, %v2519
      %v2632 = vsub.f32 %v2148, %v2519
      %v2633 = vsub.f32 %v1832, %v2520
      %v2634 = vsub.f32 %v2150, %v2520
      %v2635 = vsub.f32 %v1835, %v2521
      %v2636 = vsub.f32 %v2153, %v2521
      %v2637 = vsub.f32 %v1837, %v2522
      %v2638 = vsub.f32 %v2155, %v2522
      %v2639 = vsub.f32 %v1840, %v2523
      %v2640 = vsub.f32 %v2158, %v2523
      %v2641 = vsub.f32 %v1842, %v2524
      %v2642 = vsub.f32 %v2160, %v2524
      %v2643 = vsub.f32 %v1845, %v2525
      %v2644 = vsub.f32 %v2163, %v2525
      %v2645 = vsub.f32 %v1847, %v2526
      %v2646 = vsub.f32 %v2165, %v2526
      %v2647 = vmul.f32 %v2527, %v2527
      %v2648 = vmul.f32 %v2528, %v2528
      %v2649 = vmul.f32 %v2529, %v2529
      %v2650 = vmul.f32 %v2530, %v2530
      %v2651 = vmul.f32 %v2531, %v2531
      %v2652 = vmul.f32 %v2532, %v2532
      %v2653 = vmul.f32 %v2533, %v2533
      %v2654 = vmul.f32 %v2534, %v2534
      %v2655 = vmul.f32 %v2535, %v2535
      %v2656 = vmul.f32 %v2536, %v2536
      %v2657 = vmul.f32 %v2537, %v2537
      %v2658 = vmul.f32 %v2538, %v2538
      %v2659 = vmul.f32 %v2539, %v2539
      %v2660 = vmul.f32 %v2540, %v2540
      %v2661 = vmul.f32 %v2541, %v2541
      %v2662 = vmul.f32 %v2542, %v2542
      %v2663 = vmul.f32 %v2543, %v2543
      %v2664 = vmul.f32 %v2544, %v2544
      %v2665 = vmul.f32 %v2545, %v2545
      %v2666 = vmul.f32 %v2546, %v2546
      %v2667 = vmul.f32 %v2547, %v2547
      %v2668 = vmul.f32 %v2548, %v2548
      %v2669 = vmul.f32 %v2549, %v2549
      %v2670 = vmul.f32 %v2550, %v2550
      %v2671 = vmul.f32 %v2551, %v2551
      %v2672 = vmul.f32 %v2552, %v2552
      %v2673 = vmul.f32 %v2553, %v2553
      %v2674 = vmul.f32 %v2554, %v2554
      %v2675 = vmul.f32 %v2555, %v2555
      %v2676 = vmul.f32 %v2556, %v2556
      %v2677 = vmul.f32 %v2557, %v2557
      %v2678 = vmul.f32 %v2558, %v2558
      %v2679 = vmul.f32 %v2559, %v2559
      %v2680 = vmul.f32 %v2560, %v2560
      %v2681 = vmul.f32 %v2561, %v2561
      %v2682 = vmul.f32 %v2562, %v2562
      %v2683 = vmul.f32 %v2563, %v2563
      %v2684 = vmul.f32 %v2564, %v2564
      %v2685 = vmul.f32 %v2565, %v2565
      %v2686 = vmul.f32 %v2566, %v2566
      %v2687 = vmul.f32 %v2567, %v2567
      %v2688 = vmul.f32 %v2568, %v2568
      %v2689 = vmul.f32 %v2569, %v2569
      %v2690 = vmul.f32 %v2570, %v2570
      %v2691 = vmul.f32 %v2571, %v2571
      %v2692 = vmul.f32 %v2572, %v2572
      %v2693 = vmul.f32 %v2573, %v2573
      %v2694 = vmul.f32 %v2574, %v2574
      %v2695 = vmul.f32 %v2575, %v2575
      %v2696 = vmul.f32 %v2576, %v2576
      %v2697 = vmul.f32 %v2577, %v2577
      %v2698 = vmul.f32 %v2578, %v2578
      %v2699 = vmul.f32 %v2579, %v2579
      %v2700 = vmul.f32 %v2580, %v2580
      %v2701 = vmul.f32 %v2581, %v2581
      %v2702 = vmul.f32 %v2582, %v2582
      %v2703 = vmul.f32 %v2583, %v2583
      %v2704 = vmul.f32 %v2584, %v2584
      %v2705 = vmul.f32 %v2585, %v2585
      %v2706 = vmul.f32 %v2586, %v2586
      %v2707 = vmul.f32 %v2587, %v2587
      %v2708 = vmul.f32 %v2588, %v2588
      %v2709 = vmul.f32 %v2589, %v2589
      %v2710 = vmul.f32 %v2590, %v2590
      %v2711 = vmul.f32 %v2591, %v2591
      %v2712 = vmul.f32 %v2592, %v2592
      %v2713 = vmul.f32 %v2593, %v2593
      %v2714 = vmul.f32 %v2594, %v2594
      %v2715 = vmul.f32 %v2595, %v2595
      %v2716 = vmul.f32 %v2596, %v2596
      %v2717 = vmul.f32 %v2597, %v2597
      %v2718 = vmul.f32 %v2598, %v2598
      %v2719 = vmul.f32 %v2599, %v2599
      %v2720 = vmul.f32 %v2600, %v2600
      %v2721 = vmul.f32 %v2601, %v2601
      %v2722 = vmul.f32 %v2602, %v2602
      %v2723 = vmul.f32 %v2603, %v2603
      %v2724 = vmul.f32 %v2604, %v2604
      %v2725 = vmul.f32 %v2605, %v2605
      %v2726 = vmul.f32 %v2606, %v2606
      %v2727 = vmul.f32 %v2607, %v2607
      %v2728 = vmul.f32 %v2608, %v2608
      %v2729 = vmul.f32 %v2609, %v2609
      %v2730 = vmul.f32 %v2610, %v2610
      %v2731 = vmul.f32 %v2611, %v2611
      %v2732 = vmul.f32 %v2612, %v2612
      %v2733 = vmul.f32 %v2613, %v2613
      %v2734 = vmul.f32 %v2614, %v2614
      %v2735 = vmul.f32 %v2615, %v2615
      %v2736 = vmul.f32 %v2616, %v2616
      %v2737 = vmul.f32 %v2617, %v2617
      %v2738 = vmul.f32 %v2618, %v2618
      %v2739 = vmul.f32 %v2619, %v2619
      %v2740 = vmul.f32 %v2620, %v2620
      %v2741 = vmul.f32 %v2621, %v2621
      %v2742 = vmul.f32 %v2622, %v2622
      %v2743 = vmul.f32 %v2623, %v2623
      %v2744 = vmul.f32 %v2624, %v2624
      %v2745 = vmul.f32 %v2625, %v2625
      %v2746 = vmul.f32 %v2626, %v2626
      %v2747 = vmul.f32 %v2627, %v2627
      %v2748 = vmul.f32 %v2628, %v2628
      %v2749 = vmul.f32 %v2629, %v2629
      %v2750 = vmul.f32 %v2630, %v2630
      %v2751 = vmul.f32 %v2631, %v2631
      %v2752 = vmul.f32 %v2632, %v2632
      %v2753 = vmul.f32 %v2633, %v2633
      %v2754 = vmul.f32 %v2634, %v2634
      %v2755 = vmul.f32 %v2635, %v2635
      %v2756 = vmul.f32 %v2636, %v2636
      %v2757 = vmul.f32 %v2637, %v2637
      %v2758 = vmul.f32 %v2638, %v2638
      %v2759 = vmul.f32 %v2639, %v2639
      %v2760 = vmul.f32 %v2640, %v2640
      %v2761 = vmul.f32 %v2641, %v2641
      %v2762 = vmul.f32 %v2642, %v2642
      %v2763 = vmul.f32 %v2643, %v2643
      %v2764 = vmul.f32 %v2644, %v2644
      %v2765 = vmul.f32 %v2645, %v2645
      %v2766 = vmul.f32 %v2646, %v2646
      %v2767 = vsel %vm289, %v2648, 0.0
      %v2768 = vadd.f32 %v2647, %v2767
      %2769 = vadd.xlane.f32.xlu0 %v2768
      %v2770 = vpop.xlane.xlu0 %2769
      %v2771 = vsel %vm289, %v2650, 0.0
      %v2772 = vadd.f32 %v2649, %v2771
      %2773 = vadd.xlane.f32.xlu0 %v2772
      %v2774 = vpop.xlane.xlu0 %2773
      %v2775 = vsel %vm289, %v2652, 0.0
      %v2776 = vadd.f32 %v2651, %v2775
      %2777 = vadd.xlane.f32.xlu0 %v2776
      %v2778 = vpop.xlane.xlu0 %2777
      %v2779 = vsel %vm289, %v2654, 0.0
      %v2780 = vadd.f32 %v2653, %v2779
      %2781 = vadd.xlane.f32.xlu0 %v2780
      %v2782 = vpop.xlane.xlu0 %2781
      %v2783 = vsel %vm289, %v2656, 0.0
      %v2784 = vadd.f32 %v2655, %v2783
      %2785 = vadd.xlane.f32.xlu0 %v2784
      %v2786 = vpop.xlane.xlu0 %2785
      %v2787 = vsel %vm289, %v2658, 0.0
      %v2788 = vadd.f32 %v2657, %v2787
      %2789 = vadd.xlane.f32.xlu0 %v2788
      %v2790 = vpop.xlane.xlu0 %2789
      %v2791 = vsel %vm289, %v2660, 0.0
      %v2792 = vadd.f32 %v2659, %v2791
      %2793 = vadd.xlane.f32.xlu0 %v2792
      %v2794 = vpop.xlane.xlu0 %2793
      %v2795 = vsel %vm289, %v2662, 0.0
      %v2796 = vadd.f32 %v2661, %v2795
      %2797 = vadd.xlane.f32.xlu0 %v2796
      %v2798 = vpop.xlane.xlu0 %2797
      %v2799 = vsel %vm289, %v2664, 0.0
      %v2800 = vadd.f32 %v2663, %v2799
      %2801 = vadd.xlane.f32.xlu0 %v2800
      %v2802 = vpop.xlane.xlu0 %2801
      %v2803 = vsel %vm289, %v2666, 0.0
      %v2804 = vadd.f32 %v2665, %v2803
      %2805 = vadd.xlane.f32.xlu0 %v2804
      %v2806 = vpop.xlane.xlu0 %2805
      %v2807 = vsel %vm289, %v2668, 0.0
      %v2808 = vadd.f32 %v2667, %v2807
      %2809 = vadd.xlane.f32.xlu0 %v2808
      %v2810 = vpop.xlane.xlu0 %2809
      %v2811 = vsel %vm289, %v2670, 0.0
      %v2812 = vadd.f32 %v2669, %v2811
      %2813 = vadd.xlane.f32.xlu0 %v2812
      %v2814 = vpop.xlane.xlu0 %2813
      %v2815 = vsel %vm289, %v2672, 0.0
      %v2816 = vadd.f32 %v2671, %v2815
      %2817 = vadd.xlane.f32.xlu0 %v2816
      %v2818 = vpop.xlane.xlu0 %2817
      %v2819 = vsel %vm289, %v2674, 0.0
      %v2820 = vadd.f32 %v2673, %v2819
      %2821 = vadd.xlane.f32.xlu0 %v2820
      %v2822 = vpop.xlane.xlu0 %2821
      %v2823 = vsel %vm289, %v2676, 0.0
      %v2824 = vadd.f32 %v2675, %v2823
      %2825 = vadd.xlane.f32.xlu0 %v2824
      %v2826 = vpop.xlane.xlu0 %2825
      %v2827 = vsel %vm289, %v2678, 0.0
      %v2828 = vadd.f32 %v2677, %v2827
      %2829 = vadd.xlane.f32.xlu0 %v2828
      %v2830 = vpop.xlane.xlu0 %2829
      %v2831 = vsel %vm289, %v2680, 0.0
      %v2832 = vadd.f32 %v2679, %v2831
      %2833 = vadd.xlane.f32.xlu0 %v2832
      %v2834 = vpop.xlane.xlu0 %2833
      %v2835 = vsel %vm289, %v2682, 0.0
      %v2836 = vadd.f32 %v2681, %v2835
      %2837 = vadd.xlane.f32.xlu0 %v2836
      %v2838 = vpop.xlane.xlu0 %2837
      %v2839 = vsel %vm289, %v2684, 0.0
      %v2840 = vadd.f32 %v2683, %v2839
      %2841 = vadd.xlane.f32.xlu0 %v2840
      %v2842 = vpop.xlane.xlu0 %2841
      %v2843 = vsel %vm289, %v2686, 0.0
      %v2844 = vadd.f32 %v2685, %v2843
      %2845 = vadd.xlane.f32.xlu0 %v2844
      %v2846 = vpop.xlane.xlu0 %2845
      %v2847 = vsel %vm289, %v2688, 0.0
      %v2848 = vadd.f32 %v2687, %v2847
      %2849 = vadd.xlane.f32.xlu0 %v2848
      %v2850 = vpop.xlane.xlu0 %2849
      %v2851 = vsel %vm289, %v2690, 0.0
      %v2852 = vadd.f32 %v2689, %v2851
      %2853 = vadd.xlane.f32.xlu0 %v2852
      %v2854 = vpop.xlane.xlu0 %2853
      %v2855 = vsel %vm289, %v2692, 0.0
      %v2856 = vadd.f32 %v2691, %v2855
      %2857 = vadd.xlane.f32.xlu0 %v2856
      %v2858 = vpop.xlane.xlu0 %2857
      %v2859 = vsel %vm289, %v2694, 0.0
      %v2860 = vadd.f32 %v2693, %v2859
      %2861 = vadd.xlane.f32.xlu0 %v2860
      %v2862 = vpop.xlane.xlu0 %2861
      %v2863 = vsel %vm289, %v2696, 0.0
      %v2864 = vadd.f32 %v2695, %v2863
      %2865 = vadd.xlane.f32.xlu0 %v2864
      %v2866 = vpop.xlane.xlu0 %2865
      %v2867 = vsel %vm289, %v2698, 0.0
      %v2868 = vadd.f32 %v2697, %v2867
      %2869 = vadd.xlane.f32.xlu0 %v2868
      %v2870 = vpop.xlane.xlu0 %2869
      %v2871 = vsel %vm289, %v2700, 0.0
      %v2872 = vadd.f32 %v2699, %v2871
      %2873 = vadd.xlane.f32.xlu0 %v2872
      %v2874 = vpop.xlane.xlu0 %2873
      %v2875 = vsel %vm289, %v2702, 0.0
      %v2876 = vadd.f32 %v2701, %v2875
      %2877 = vadd.xlane.f32.xlu0 %v2876
      %v2878 = vpop.xlane.xlu0 %2877
      %v2879 = vsel %vm289, %v2704, 0.0
      %v2880 = vadd.f32 %v2703, %v2879
      %2881 = vadd.xlane.f32.xlu0 %v2880
      %v2882 = vpop.xlane.xlu0 %2881
      %v2883 = vsel %vm289, %v2706, 0.0
      %v2884 = vadd.f32 %v2705, %v2883
      %2885 = vadd.xlane.f32.xlu0 %v2884
      %v2886 = vpop.xlane.xlu0 %2885
      %v2887 = vsel %vm289, %v2708, 0.0
      %v2888 = vadd.f32 %v2707, %v2887
      %2889 = vadd.xlane.f32.xlu0 %v2888
      %v2890 = vpop.xlane.xlu0 %2889
      %v2891 = vsel %vm289, %v2710, 0.0
      %v2892 = vadd.f32 %v2709, %v2891
      %2893 = vadd.xlane.f32.xlu0 %v2892
      %v2894 = vpop.xlane.xlu0 %2893
      %v2895 = vsel %vm289, %v2712, 0.0
      %v2896 = vadd.f32 %v2711, %v2895
      %2897 = vadd.xlane.f32.xlu0 %v2896
      %v2898 = vpop.xlane.xlu0 %2897
      %v2899 = vsel %vm289, %v2714, 0.0
      %v2900 = vadd.f32 %v2713, %v2899
      %2901 = vadd.xlane.f32.xlu0 %v2900
      %v2902 = vpop.xlane.xlu0 %2901
      %v2903 = vsel %vm289, %v2716, 0.0
      %v2904 = vadd.f32 %v2715, %v2903
      %2905 = vadd.xlane.f32.xlu0 %v2904
      %v2906 = vpop.xlane.xlu0 %2905
      %v2907 = vsel %vm289, %v2718, 0.0
      %v2908 = vadd.f32 %v2717, %v2907
      %2909 = vadd.xlane.f32.xlu0 %v2908
      %v2910 = vpop.xlane.xlu0 %2909
      %v2911 = vsel %vm289, %v2720, 0.0
      %v2912 = vadd.f32 %v2719, %v2911
      %2913 = vadd.xlane.f32.xlu0 %v2912
      %v2914 = vpop.xlane.xlu0 %2913
      %v2915 = vsel %vm289, %v2722, 0.0
      %v2916 = vadd.f32 %v2721, %v2915
      %2917 = vadd.xlane.f32.xlu0 %v2916
      %v2918 = vpop.xlane.xlu0 %2917
      %v2919 = vsel %vm289, %v2724, 0.0
      %v2920 = vadd.f32 %v2723, %v2919
      %2921 = vadd.xlane.f32.xlu0 %v2920
      %v2922 = vpop.xlane.xlu0 %2921
      %v2923 = vsel %vm289, %v2726, 0.0
      %v2924 = vadd.f32 %v2725, %v2923
      %2925 = vadd.xlane.f32.xlu0 %v2924
      %v2926 = vpop.xlane.xlu0 %2925
      %v2927 = vsel %vm289, %v2728, 0.0
      %v2928 = vadd.f32 %v2727, %v2927
      %2929 = vadd.xlane.f32.xlu0 %v2928
      %v2930 = vpop.xlane.xlu0 %2929
      %v2931 = vsel %vm289, %v2730, 0.0
      %v2932 = vadd.f32 %v2729, %v2931
      %2933 = vadd.xlane.f32.xlu0 %v2932
      %v2934 = vpop.xlane.xlu0 %2933
      %v2935 = vsel %vm289, %v2732, 0.0
      %v2936 = vadd.f32 %v2731, %v2935
      %2937 = vadd.xlane.f32.xlu0 %v2936
      %v2938 = vpop.xlane.xlu0 %2937
      %v2939 = vsel %vm289, %v2734, 0.0
      %v2940 = vadd.f32 %v2733, %v2939
      %2941 = vadd.xlane.f32.xlu0 %v2940
      %v2942 = vpop.xlane.xlu0 %2941
      %v2943 = vsel %vm289, %v2736, 0.0
      %v2944 = vadd.f32 %v2735, %v2943
      %2945 = vadd.xlane.f32.xlu0 %v2944
      %v2946 = vpop.xlane.xlu0 %2945
      %v2947 = vsel %vm289, %v2738, 0.0
      %v2948 = vadd.f32 %v2737, %v2947
      %2949 = vadd.xlane.f32.xlu0 %v2948
      %v2950 = vpop.xlane.xlu0 %2949
      %v2951 = vsel %vm289, %v2740, 0.0
      %v2952 = vadd.f32 %v2739, %v2951
      %2953 = vadd.xlane.f32.xlu0 %v2952
      %v2954 = vpop.xlane.xlu0 %2953
      %v2955 = vsel %vm289, %v2742, 0.0
      %v2956 = vadd.f32 %v2741, %v2955
      %2957 = vadd.xlane.f32.xlu0 %v2956
      %v2958 = vpop.xlane.xlu0 %2957
      %v2959 = vsel %vm289, %v2744, 0.0
      %v2960 = vadd.f32 %v2743, %v2959
      %2961 = vadd.xlane.f32.xlu0 %v2960
      %v2962 = vpop.xlane.xlu0 %2961
      %v2963 = vsel %vm289, %v2746, 0.0
      %v2964 = vadd.f32 %v2745, %v2963
      %2965 = vadd.xlane.f32.xlu0 %v2964
      %v2966 = vpop.xlane.xlu0 %2965
      %v2967 = vsel %vm289, %v2748, 0.0
      %v2968 = vadd.f32 %v2747, %v2967
      %2969 = vadd.xlane.f32.xlu0 %v2968
      %v2970 = vpop.xlane.xlu0 %2969
      %v2971 = vsel %vm289, %v2750, 0.0
      %v2972 = vadd.f32 %v2749, %v2971
      %2973 = vadd.xlane.f32.xlu0 %v2972
      %v2974 = vpop.xlane.xlu0 %2973
      %v2975 = vsel %vm289, %v2752, 0.0
      %v2976 = vadd.f32 %v2751, %v2975
      %2977 = vadd.xlane.f32.xlu0 %v2976
      %v2978 = vpop.xlane.xlu0 %2977
      %v2979 = vsel %vm289, %v2754, 0.0
      %v2980 = vadd.f32 %v2753, %v2979
      %2981 = vadd.xlane.f32.xlu0 %v2980
      %v2982 = vpop.xlane.xlu0 %2981
      %v2983 = vsel %vm289, %v2756, 0.0
      %v2984 = vadd.f32 %v2755, %v2983
      %2985 = vadd.xlane.f32.xlu0 %v2984
      %v2986 = vpop.xlane.xlu0 %2985
      %v2987 = vsel %vm289, %v2758, 0.0
      %v2988 = vadd.f32 %v2757, %v2987
      %2989 = vadd.xlane.f32.xlu0 %v2988
      %v2990 = vpop.xlane.xlu0 %2989
      %v2991 = vsel %vm289, %v2760, 0.0
      %v2992 = vadd.f32 %v2759, %v2991
      %2993 = vadd.xlane.f32.xlu0 %v2992
      %v2994 = vpop.xlane.xlu0 %2993
      %v2995 = vsel %vm289, %v2762, 0.0
      %v2996 = vadd.f32 %v2761, %v2995
      %2997 = vadd.xlane.f32.xlu0 %v2996
      %v2998 = vpop.xlane.xlu0 %2997
      %v2999 = vsel %vm289, %v2764, 0.0
      %v3000 = vadd.f32 %v2763, %v2999
      %3001 = vadd.xlane.f32.xlu0 %v3000
      %v3002 = vpop.xlane.xlu0 %3001
      %v3003 = vsel %vm289, %v2766, 0.0
      %v3004 = vadd.f32 %v2765, %v3003
      %3005 = vadd.xlane.f32.xlu0 %v3004
      %v3006 = vpop.xlane.xlu0 %3005
      %v3007 = vmul.f32 %v2770, 0.0051020407
      %v3008 = vmul.f32 %v2774, 0.0051020407
      %v3009 = vmul.f32 %v2778, 0.0051020407
      %v3010 = vmul.f32 %v2782, 0.0051020407
      %v3011 = vmul.f32 %v2786, 0.0051020407
      %v3012 = vmul.f32 %v2790, 0.0051020407
      %v3013 = vmul.f32 %v2794, 0.0051020407
      %v3014 = vmul.f32 %v2798, 0.0051020407
      %v3015 = vmul.f32 %v2802, 0.0051020407
      %v3016 = vmul.f32 %v2806, 0.0051020407
      %v3017 = vmul.f32 %v2810, 0.0051020407
      %v3018 = vmul.f32 %v2814, 0.0051020407
      %v3019 = vmul.f32 %v2818, 0.0051020407
      %v3020 = vmul.f32 %v2822, 0.0051020407
      %v3021 = vmul.f32 %v2826, 0.0051020407
      %v3022 = vmul.f32 %v2830, 0.0051020407
      %v3023 = vmul.f32 %v2834, 0.0051020407
      %v3024 = vmul.f32 %v2838, 0.0051020407
      %v3025 = vmul.f32 %v2842, 0.0051020407
      %v3026 = vmul.f32 %v2846, 0.0051020407
      %v3027 = vmul.f32 %v2850, 0.0051020407
      %v3028 = vmul.f32 %v2854, 0.0051020407
      %v3029 = vmul.f32 %v2858, 0.0051020407
      %v3030 = vmul.f32 %v2862, 0.0051020407
      %v3031 = vmul.f32 %v2866, 0.0051020407
      %v3032 = vmul.f32 %v2870, 0.0051020407
      %v3033 = vmul.f32 %v2874, 0.0051020407
      %v3034 = vmul.f32 %v2878, 0.0051020407
      %v3035 = vmul.f32 %v2882, 0.0051020407
      %v3036 = vmul.f32 %v2886, 0.0051020407
      %v3037 = vmul.f32 %v2890, 0.0051020407
      %v3038 = vmul.f32 %v2894, 0.0051020407
      %v3039 = vmul.f32 %v2898, 0.0051020407
      %v3040 = vmul.f32 %v2902, 0.0051020407
      %v3041 = vmul.f32 %v2906, 0.0051020407
      %v3042 = vmul.f32 %v2910, 0.0051020407
      %v3043 = vmul.f32 %v2914, 0.0051020407
      %v3044 = vmul.f32 %v2918, 0.0051020407
      %v3045 = vmul.f32 %v2922, 0.0051020407
      %v3046 = vmul.f32 %v2926, 0.0051020407
      %v3047 = vmul.f32 %v2930, 0.0051020407
      %v3048 = vmul.f32 %v2934, 0.0051020407
      %v3049 = vmul.f32 %v2938, 0.0051020407
      %v3050 = vmul.f32 %v2942, 0.0051020407
      %v3051 = vmul.f32 %v2946, 0.0051020407
      %v3052 = vmul.f32 %v2950, 0.0051020407
      %v3053 = vmul.f32 %v2954, 0.0051020407
      %v3054 = vmul.f32 %v2958, 0.0051020407
      %v3055 = vmul.f32 %v2962, 0.0051020407
      %v3056 = vmul.f32 %v2966, 0.0051020407
      %v3057 = vmul.f32 %v2970, 0.0051020407
      %v3058 = vmul.f32 %v2974, 0.0051020407
      %v3059 = vmul.f32 %v2978, 0.0051020407
      %v3060 = vmul.f32 %v2982, 0.0051020407
      %v3061 = vmul.f32 %v2986, 0.0051020407
      %v3062 = vmul.f32 %v2990, 0.0051020407
      %v3063 = vmul.f32 %v2994, 0.0051020407
      %v3064 = vmul.f32 %v2998, 0.0051020407
      %v3065 = vmul.f32 %v3002, 0.0051020407
      %v3066 = vmul.f32 %v3006, 0.0051020407
      %v3067 = vadd.f32 %v3007, 0.001
      %v3068 = vadd.f32 %v3008, 0.001
      %v3069 = vadd.f32 %v3009, 0.001
      %v3070 = vadd.f32 %v3010, 0.001
      %v3071 = vadd.f32 %v3011, 0.001
      %v3072 = vadd.f32 %v3012, 0.001
      %v3073 = vadd.f32 %v3013, 0.001
      %v3074 = vadd.f32 %v3014, 0.001
      %v3075 = vadd.f32 %v3015, 0.001
      %v3076 = vadd.f32 %v3016, 0.001
      %v3077 = vadd.f32 %v3017, 0.001
      %v3078 = vadd.f32 %v3018, 0.001
      %v3079 = vadd.f32 %v3019, 0.001
      %v3080 = vadd.f32 %v3020, 0.001
      %v3081 = vadd.f32 %v3021, 0.001
      %v3082 = vadd.f32 %v3022, 0.001
      %v3083 = vadd.f32 %v3023, 0.001
      %v3084 = vadd.f32 %v3024, 0.001
      %v3085 = vadd.f32 %v3025, 0.001
      %v3086 = vadd.f32 %v3026, 0.001
      %v3087 = vadd.f32 %v3027, 0.001
      %v3088 = vadd.f32 %v3028, 0.001
      %v3089 = vadd.f32 %v3029, 0.001
      %v3090 = vadd.f32 %v3030, 0.001
      %v3091 = vadd.f32 %v3031, 0.001
      %v3092 = vadd.f32 %v3032, 0.001
      %v3093 = vadd.f32 %v3033, 0.001
      %v3094 = vadd.f32 %v3034, 0.001
      %v3095 = vadd.f32 %v3035, 0.001
      %v3096 = vadd.f32 %v3036, 0.001
      %v3097 = vadd.f32 %v3037, 0.001
      %v3098 = vadd.f32 %v3038, 0.001
      %v3099 = vadd.f32 %v3039, 0.001
      %v3100 = vadd.f32 %v3040, 0.001
      %v3101 = vadd.f32 %v3041, 0.001
      %v3102 = vadd.f32 %v3042, 0.001
      %v3103 = vadd.f32 %v3043, 0.001
      %v3104 = vadd.f32 %v3044, 0.001
      %v3105 = vadd.f32 %v3045, 0.001
      %v3106 = vadd.f32 %v3046, 0.001
      %v3107 = vadd.f32 %v3047, 0.001
      %v3108 = vadd.f32 %v3048, 0.001
      %v3109 = vadd.f32 %v3049, 0.001
      %v3110 = vadd.f32 %v3050, 0.001
      %v3111 = vadd.f32 %v3051, 0.001
      %v3112 = vadd.f32 %v3052, 0.001
      %v3113 = vadd.f32 %v3053, 0.001
      %v3114 = vadd.f32 %v3054, 0.001
      %v3115 = vadd.f32 %v3055, 0.001
      %v3116 = vadd.f32 %v3056, 0.001
      %v3117 = vadd.f32 %v3057, 0.001
      %v3118 = vadd.f32 %v3058, 0.001
      %v3119 = vadd.f32 %v3059, 0.001
      %v3120 = vadd.f32 %v3060, 0.001
      %v3121 = vadd.f32 %v3061, 0.001
      %v3122 = vadd.f32 %v3062, 0.001
      %v3123 = vadd.f32 %v3063, 0.001
      %v3124 = vadd.f32 %v3064, 0.001
      %v3125 = vadd.f32 %v3065, 0.001
      %v3126 = vadd.f32 %v3066, 0.001
      %v3127 = vrsqrt.pop %v3067
      %v3128 = vmul.f32 %v3127, %v3067
      %v3129 = vmul.f32 %v3128, %v3127
      %v3130 = vmul.f32 0.5, %v3129
      %v3131 = vsub.f32 1.5, %v3130
      %v3132 = vmul.f32 %v3127, %v3131
      %vm3133 = vweird.f32 %v3067
      %vm3134 = vweird.f32 %v3127
      %vm3135 = vmor %vm3133, %vm3134
      %v3136 = vsel %vm3135, %v3127, %v3132
      %v3137 = vrsqrt.pop %v3068
      %v3138 = vmul.f32 %v3137, %v3068
      %v3139 = vmul.f32 %v3138, %v3137
      %v3140 = vmul.f32 0.5, %v3139
      %v3141 = vsub.f32 1.5, %v3140
      %v3142 = vmul.f32 %v3137, %v3141
      %vm3143 = vweird.f32 %v3068
      %vm3144 = vweird.f32 %v3137
      %vm3145 = vmor %vm3143, %vm3144
      %v3146 = vsel %vm3145, %v3137, %v3142
      %v3147 = vrsqrt.pop %v3069
      %v3148 = vmul.f32 %v3147, %v3069
      %v3149 = vmul.f32 %v3148, %v3147
      %v3150 = vmul.f32 0.5, %v3149
      %v3151 = vsub.f32 1.5, %v3150
      %v3152 = vmul.f32 %v3147, %v3151
      %vm3153 = vweird.f32 %v3069
      %vm3154 = vweird.f32 %v3147
      %vm3155 = vmor %vm3153, %vm3154
      %v3156 = vsel %vm3155, %v3147, %v3152
      %v3157 = vrsqrt.pop %v3070
      %v3158 = vmul.f32 %v3157, %v3070
      %v3159 = vmul.f32 %v3158, %v3157
      %v3160 = vmul.f32 0.5, %v3159
      %v3161 = vsub.f32 1.5, %v3160
      %v3162 = vmul.f32 %v3157, %v3161
      %vm3163 = vweird.f32 %v3070
      %vm3164 = vweird.f32 %v3157
      %vm3165 = vmor %vm3163, %vm3164
      %v3166 = vsel %vm3165, %v3157, %v3162
      %v3167 = vrsqrt.pop %v3071
      %v3168 = vmul.f32 %v3167, %v3071
      %v3169 = vmul.f32 %v3168, %v3167
      %v3170 = vmul.f32 0.5, %v3169
      %v3171 = vsub.f32 1.5, %v3170
      %v3172 = vmul.f32 %v3167, %v3171
      %vm3173 = vweird.f32 %v3071
      %vm3174 = vweird.f32 %v3167
      %vm3175 = vmor %vm3173, %vm3174
      %v3176 = vsel %vm3175, %v3167, %v3172
      %v3177 = vrsqrt.pop %v3072
      %v3178 = vmul.f32 %v3177, %v3072
      %v3179 = vmul.f32 %v3178, %v3177
      %v3180 = vmul.f32 0.5, %v3179
      %v3181 = vsub.f32 1.5, %v3180
      %v3182 = vmul.f32 %v3177, %v3181
      %vm3183 = vweird.f32 %v3072
      %vm3184 = vweird.f32 %v3177
      %vm3185 = vmor %vm3183, %vm3184
      %v3186 = vsel %vm3185, %v3177, %v3182
      %v3187 = vrsqrt.pop %v3073
      %v3188 = vmul.f32 %v3187, %v3073
      %v3189 = vmul.f32 %v3188, %v3187
      %v3190 = vmul.f32 0.5, %v3189
      %v3191 = vsub.f32 1.5, %v3190
      %v3192 = vmul.f32 %v3187, %v3191
      %vm3193 = vweird.f32 %v3073
      %vm3194 = vweird.f32 %v3187
      %vm3195 = vmor %vm3193, %vm3194
      %v3196 = vsel %vm3195, %v3187, %v3192
      %v3197 = vrsqrt.pop %v3074
      %v3198 = vmul.f32 %v3197, %v3074
      %v3199 = vmul.f32 %v3198, %v3197
      %v3200 = vmul.f32 0.5, %v3199
      %v3201 = vsub.f32 1.5, %v3200
      %v3202 = vmul.f32 %v3197, %v3201
      %vm3203 = vweird.f32 %v3074
      %vm3204 = vweird.f32 %v3197
      %vm3205 = vmor %vm3203, %vm3204
      %v3206 = vsel %vm3205, %v3197, %v3202
      %v3207 = vrsqrt.pop %v3075
      %v3208 = vmul.f32 %v3207, %v3075
      %v3209 = vmul.f32 %v3208, %v3207
      %v3210 = vmul.f32 0.5, %v3209
      %v3211 = vsub.f32 1.5, %v3210
      %v3212 = vmul.f32 %v3207, %v3211
      %vm3213 = vweird.f32 %v3075
      %vm3214 = vweird.f32 %v3207
      %vm3215 = vmor %vm3213, %vm3214
      %v3216 = vsel %vm3215, %v3207, %v3212
      %v3217 = vrsqrt.pop %v3076
      %v3218 = vmul.f32 %v3217, %v3076
      %v3219 = vmul.f32 %v3218, %v3217
      %v3220 = vmul.f32 0.5, %v3219
      %v3221 = vsub.f32 1.5, %v3220
      %v3222 = vmul.f32 %v3217, %v3221
      %vm3223 = vweird.f32 %v3076
      %vm3224 = vweird.f32 %v3217
      %vm3225 = vmor %vm3223, %vm3224
      %v3226 = vsel %vm3225, %v3217, %v3222
      %v3227 = vrsqrt.pop %v3077
      %v3228 = vmul.f32 %v3227, %v3077
      %v3229 = vmul.f32 %v3228, %v3227
      %v3230 = vmul.f32 0.5, %v3229
      %v3231 = vsub.f32 1.5, %v3230
      %v3232 = vmul.f32 %v3227, %v3231
      %vm3233 = vweird.f32 %v3077
      %vm3234 = vweird.f32 %v3227
      %vm3235 = vmor %vm3233, %vm3234
      %v3236 = vsel %vm3235, %v3227, %v3232
      %v3237 = vrsqrt.pop %v3078
      %v3238 = vmul.f32 %v3237, %v3078
      %v3239 = vmul.f32 %v3238, %v3237
      %v3240 = vmul.f32 0.5, %v3239
      %v3241 = vsub.f32 1.5, %v3240
      %v3242 = vmul.f32 %v3237, %v3241
      %vm3243 = vweird.f32 %v3078
      %vm3244 = vweird.f32 %v3237
      %vm3245 = vmor %vm3243, %vm3244
      %v3246 = vsel %vm3245, %v3237, %v3242
      %v3247 = vrsqrt.pop %v3079
      %v3248 = vmul.f32 %v3247, %v3079
      %v3249 = vmul.f32 %v3248, %v3247
      %v3250 = vmul.f32 0.5, %v3249
      %v3251 = vsub.f32 1.5, %v3250
      %v3252 = vmul.f32 %v3247, %v3251
      %vm3253 = vweird.f32 %v3079
      %vm3254 = vweird.f32 %v3247
      %vm3255 = vmor %vm3253, %vm3254
      %v3256 = vsel %vm3255, %v3247, %v3252
      %v3257 = vrsqrt.pop %v3080
      %v3258 = vmul.f32 %v3257, %v3080
      %v3259 = vmul.f32 %v3258, %v3257
      %v3260 = vmul.f32 0.5, %v3259
      %v3261 = vsub.f32 1.5, %v3260
      %v3262 = vmul.f32 %v3257, %v3261
      %vm3263 = vweird.f32 %v3080
      %vm3264 = vweird.f32 %v3257
      %vm3265 = vmor %vm3263, %vm3264
      %v3266 = vsel %vm3265, %v3257, %v3262
      %v3267 = vrsqrt.pop %v3081
      %v3268 = vmul.f32 %v3267, %v3081
      %v3269 = vmul.f32 %v3268, %v3267
      %v3270 = vmul.f32 0.5, %v3269
      %v3271 = vsub.f32 1.5, %v3270
      %v3272 = vmul.f32 %v3267, %v3271
      %vm3273 = vweird.f32 %v3081
      %vm3274 = vweird.f32 %v3267
      %vm3275 = vmor %vm3273, %vm3274
      %v3276 = vsel %vm3275, %v3267, %v3272
      %v3277 = vrsqrt.pop %v3082
      %v3278 = vmul.f32 %v3277, %v3082
      %v3279 = vmul.f32 %v3278, %v3277
      %v3280 = vmul.f32 0.5, %v3279
      %v3281 = vsub.f32 1.5, %v3280
      %v3282 = vmul.f32 %v3277, %v3281
      %vm3283 = vweird.f32 %v3082
      %vm3284 = vweird.f32 %v3277
      %vm3285 = vmor %vm3283, %vm3284
      %v3286 = vsel %vm3285, %v3277, %v3282
      %v3287 = vrsqrt.pop %v3083
      %v3288 = vmul.f32 %v3287, %v3083
      %v3289 = vmul.f32 %v3288, %v3287
      %v3290 = vmul.f32 0.5, %v3289
      %v3291 = vsub.f32 1.5, %v3290
      %v3292 = vmul.f32 %v3287, %v3291
      %vm3293 = vweird.f32 %v3083
      %vm3294 = vweird.f32 %v3287
      %vm3295 = vmor %vm3293, %vm3294
      %v3296 = vsel %vm3295, %v3287, %v3292
      %v3297 = vrsqrt.pop %v3084
      %v3298 = vmul.f32 %v3297, %v3084
      %v3299 = vmul.f32 %v3298, %v3297
      %v3300 = vmul.f32 0.5, %v3299
      %v3301 = vsub.f32 1.5, %v3300
      %v3302 = vmul.f32 %v3297, %v3301
      %vm3303 = vweird.f32 %v3084
      %vm3304 = vweird.f32 %v3297
      %vm3305 = vmor %vm3303, %vm3304
      %v3306 = vsel %vm3305, %v3297, %v3302
      %v3307 = vrsqrt.pop %v3085
      %v3308 = vmul.f32 %v3307, %v3085
      %v3309 = vmul.f32 %v3308, %v3307
      %v3310 = vmul.f32 0.5, %v3309
      %v3311 = vsub.f32 1.5, %v3310
      %v3312 = vmul.f32 %v3307, %v3311
      %vm3313 = vweird.f32 %v3085
      %vm3314 = vweird.f32 %v3307
      %vm3315 = vmor %vm3313, %vm3314
      %v3316 = vsel %vm3315, %v3307, %v3312
      %v3317 = vrsqrt.pop %v3086
      %v3318 = vmul.f32 %v3317, %v3086
      %v3319 = vmul.f32 %v3318, %v3317
      %v3320 = vmul.f32 0.5, %v3319
      %v3321 = vsub.f32 1.5, %v3320
      %v3322 = vmul.f32 %v3317, %v3321
      %vm3323 = vweird.f32 %v3086
      %vm3324 = vweird.f32 %v3317
      %vm3325 = vmor %vm3323, %vm3324
      %v3326 = vsel %vm3325, %v3317, %v3322
      %v3327 = vrsqrt.pop %v3087
      %v3328 = vmul.f32 %v3327, %v3087
      %v3329 = vmul.f32 %v3328, %v3327
      %v3330 = vmul.f32 0.5, %v3329
      %v3331 = vsub.f32 1.5, %v3330
      %v3332 = vmul.f32 %v3327, %v3331
      %vm3333 = vweird.f32 %v3087
      %vm3334 = vweird.f32 %v3327
      %vm3335 = vmor %vm3333, %vm3334
      %v3336 = vsel %vm3335, %v3327, %v3332
      %v3337 = vrsqrt.pop %v3088
      %v3338 = vmul.f32 %v3337, %v3088
      %v3339 = vmul.f32 %v3338, %v3337
      %v3340 = vmul.f32 0.5, %v3339
      %v3341 = vsub.f32 1.5, %v3340
      %v3342 = vmul.f32 %v3337, %v3341
      %vm3343 = vweird.f32 %v3088
      %vm3344 = vweird.f32 %v3337
      %vm3345 = vmor %vm3343, %vm3344
      %v3346 = vsel %vm3345, %v3337, %v3342
      %v3347 = vrsqrt.pop %v3089
      %v3348 = vmul.f32 %v3347, %v3089
      %v3349 = vmul.f32 %v3348, %v3347
      %v3350 = vmul.f32 0.5, %v3349
      %v3351 = vsub.f32 1.5, %v3350
      %v3352 = vmul.f32 %v3347, %v3351
      %vm3353 = vweird.f32 %v3089
      %vm3354 = vweird.f32 %v3347
      %vm3355 = vmor %vm3353, %vm3354
      %v3356 = vsel %vm3355, %v3347, %v3352
      %v3357 = vrsqrt.pop %v3090
      %v3358 = vmul.f32 %v3357, %v3090
      %v3359 = vmul.f32 %v3358, %v3357
      %v3360 = vmul.f32 0.5, %v3359
      %v3361 = vsub.f32 1.5, %v3360
      %v3362 = vmul.f32 %v3357, %v3361
      %vm3363 = vweird.f32 %v3090
      %vm3364 = vweird.f32 %v3357
      %vm3365 = vmor %vm3363, %vm3364
      %v3366 = vsel %vm3365, %v3357, %v3362
      %v3367 = vrsqrt.pop %v3091
      %v3368 = vmul.f32 %v3367, %v3091
      %v3369 = vmul.f32 %v3368, %v3367
      %v3370 = vmul.f32 0.5, %v3369
      %v3371 = vsub.f32 1.5, %v3370
      %v3372 = vmul.f32 %v3367, %v3371
      %vm3373 = vweird.f32 %v3091
      %vm3374 = vweird.f32 %v3367
      %vm3375 = vmor %vm3373, %vm3374
      %v3376 = vsel %vm3375, %v3367, %v3372
      %v3377 = vrsqrt.pop %v3092
      %v3378 = vmul.f32 %v3377, %v3092
      %v3379 = vmul.f32 %v3378, %v3377
      %v3380 = vmul.f32 0.5, %v3379
      %v3381 = vsub.f32 1.5, %v3380
      %v3382 = vmul.f32 %v3377, %v3381
      %vm3383 = vweird.f32 %v3092
      %vm3384 = vweird.f32 %v3377
      %vm3385 = vmor %vm3383, %vm3384
      %v3386 = vsel %vm3385, %v3377, %v3382
      %v3387 = vrsqrt.pop %v3093
      %v3388 = vmul.f32 %v3387, %v3093
      %v3389 = vmul.f32 %v3388, %v3387
      %v3390 = vmul.f32 0.5, %v3389
      %v3391 = vsub.f32 1.5, %v3390
      %v3392 = vmul.f32 %v3387, %v3391
      %vm3393 = vweird.f32 %v3093
      %vm3394 = vweird.f32 %v3387
      %vm3395 = vmor %vm3393, %vm3394
      %v3396 = vsel %vm3395, %v3387, %v3392
      %v3397 = vrsqrt.pop %v3094
      %v3398 = vmul.f32 %v3397, %v3094
      %v3399 = vmul.f32 %v3398, %v3397
      %v3400 = vmul.f32 0.5, %v3399
      %v3401 = vsub.f32 1.5, %v3400
      %v3402 = vmul.f32 %v3397, %v3401
      %vm3403 = vweird.f32 %v3094
      %vm3404 = vweird.f32 %v3397
      %vm3405 = vmor %vm3403, %vm3404
      %v3406 = vsel %vm3405, %v3397, %v3402
      %v3407 = vrsqrt.pop %v3095
      %v3408 = vmul.f32 %v3407, %v3095
      %v3409 = vmul.f32 %v3408, %v3407
      %v3410 = vmul.f32 0.5, %v3409
      %v3411 = vsub.f32 1.5, %v3410
      %v3412 = vmul.f32 %v3407, %v3411
      %vm3413 = vweird.f32 %v3095
      %vm3414 = vweird.f32 %v3407
      %vm3415 = vmor %vm3413, %vm3414
      %v3416 = vsel %vm3415, %v3407, %v3412
      %v3417 = vrsqrt.pop %v3096
      %v3418 = vmul.f32 %v3417, %v3096
      %v3419 = vmul.f32 %v3418, %v3417
      %v3420 = vmul.f32 0.5, %v3419
      %v3421 = vsub.f32 1.5, %v3420
      %v3422 = vmul.f32 %v3417, %v3421
      %vm3423 = vweird.f32 %v3096
      %vm3424 = vweird.f32 %v3417
      %vm3425 = vmor %vm3423, %vm3424
      %v3426 = vsel %vm3425, %v3417, %v3422
      %v3427 = vrsqrt.pop %v3097
      %v3428 = vmul.f32 %v3427, %v3097
      %v3429 = vmul.f32 %v3428, %v3427
      %v3430 = vmul.f32 0.5, %v3429
      %v3431 = vsub.f32 1.5, %v3430
      %v3432 = vmul.f32 %v3427, %v3431
      %vm3433 = vweird.f32 %v3097
      %vm3434 = vweird.f32 %v3427
      %vm3435 = vmor %vm3433, %vm3434
      %v3436 = vsel %vm3435, %v3427, %v3432
      %v3437 = vrsqrt.pop %v3098
      %v3438 = vmul.f32 %v3437, %v3098
      %v3439 = vmul.f32 %v3438, %v3437
      %v3440 = vmul.f32 0.5, %v3439
      %v3441 = vsub.f32 1.5, %v3440
      %v3442 = vmul.f32 %v3437, %v3441
      %vm3443 = vweird.f32 %v3098
      %vm3444 = vweird.f32 %v3437
      %vm3445 = vmor %vm3443, %vm3444
      %v3446 = vsel %vm3445, %v3437, %v3442
      %v3447 = vrsqrt.pop %v3099
      %v3448 = vmul.f32 %v3447, %v3099
      %v3449 = vmul.f32 %v3448, %v3447
      %v3450 = vmul.f32 0.5, %v3449
      %v3451 = vsub.f32 1.5, %v3450
      %v3452 = vmul.f32 %v3447, %v3451
      %vm3453 = vweird.f32 %v3099
      %vm3454 = vweird.f32 %v3447
      %vm3455 = vmor %vm3453, %vm3454
      %v3456 = vsel %vm3455, %v3447, %v3452
      %v3457 = vrsqrt.pop %v3100
      %v3458 = vmul.f32 %v3457, %v3100
      %v3459 = vmul.f32 %v3458, %v3457
      %v3460 = vmul.f32 0.5, %v3459
      %v3461 = vsub.f32 1.5, %v3460
      %v3462 = vmul.f32 %v3457, %v3461
      %vm3463 = vweird.f32 %v3100
      %vm3464 = vweird.f32 %v3457
      %vm3465 = vmor %vm3463, %vm3464
      %v3466 = vsel %vm3465, %v3457, %v3462
      %v3467 = vrsqrt.pop %v3101
      %v3468 = vmul.f32 %v3467, %v3101
      %v3469 = vmul.f32 %v3468, %v3467
      %v3470 = vmul.f32 0.5, %v3469
      %v3471 = vsub.f32 1.5, %v3470
      %v3472 = vmul.f32 %v3467, %v3471
      %vm3473 = vweird.f32 %v3101
      %vm3474 = vweird.f32 %v3467
      %vm3475 = vmor %vm3473, %vm3474
      %v3476 = vsel %vm3475, %v3467, %v3472
      %v3477 = vrsqrt.pop %v3102
      %v3478 = vmul.f32 %v3477, %v3102
      %v3479 = vmul.f32 %v3478, %v3477
      %v3480 = vmul.f32 0.5, %v3479
      %v3481 = vsub.f32 1.5, %v3480
      %v3482 = vmul.f32 %v3477, %v3481
      %vm3483 = vweird.f32 %v3102
      %vm3484 = vweird.f32 %v3477
      %vm3485 = vmor %vm3483, %vm3484
      %v3486 = vsel %vm3485, %v3477, %v3482
      %v3487 = vrsqrt.pop %v3103
      %v3488 = vmul.f32 %v3487, %v3103
      %v3489 = vmul.f32 %v3488, %v3487
      %v3490 = vmul.f32 0.5, %v3489
      %v3491 = vsub.f32 1.5, %v3490
      %v3492 = vmul.f32 %v3487, %v3491
      %vm3493 = vweird.f32 %v3103
      %vm3494 = vweird.f32 %v3487
      %vm3495 = vmor %vm3493, %vm3494
      %v3496 = vsel %vm3495, %v3487, %v3492
      %v3497 = vrsqrt.pop %v3104
      %v3498 = vmul.f32 %v3497, %v3104
      %v3499 = vmul.f32 %v3498, %v3497
      %v3500 = vmul.f32 0.5, %v3499
      %v3501 = vsub.f32 1.5, %v3500
      %v3502 = vmul.f32 %v3497, %v3501
      %vm3503 = vweird.f32 %v3104
      %vm3504 = vweird.f32 %v3497
      %vm3505 = vmor %vm3503, %vm3504
      %v3506 = vsel %vm3505, %v3497, %v3502
      %v3507 = vrsqrt.pop %v3105
      %v3508 = vmul.f32 %v3507, %v3105
      %v3509 = vmul.f32 %v3508, %v3507
      %v3510 = vmul.f32 0.5, %v3509
      %v3511 = vsub.f32 1.5, %v3510
      %v3512 = vmul.f32 %v3507, %v3511
      %vm3513 = vweird.f32 %v3105
      %vm3514 = vweird.f32 %v3507
      %vm3515 = vmor %vm3513, %vm3514
      %v3516 = vsel %vm3515, %v3507, %v3512
      %v3517 = vrsqrt.pop %v3106
      %v3518 = vmul.f32 %v3517, %v3106
      %v3519 = vmul.f32 %v3518, %v3517
      %v3520 = vmul.f32 0.5, %v3519
      %v3521 = vsub.f32 1.5, %v3520
      %v3522 = vmul.f32 %v3517, %v3521
      %vm3523 = vweird.f32 %v3106
      %vm3524 = vweird.f32 %v3517
      %vm3525 = vmor %vm3523, %vm3524
      %v3526 = vsel %vm3525, %v3517, %v3522
      %v3527 = vrsqrt.pop %v3107
      %v3528 = vmul.f32 %v3527, %v3107
      %v3529 = vmul.f32 %v3528, %v3527
      %v3530 = vmul.f32 0.5, %v3529
      %v3531 = vsub.f32 1.5, %v3530
      %v3532 = vmul.f32 %v3527, %v3531
      %vm3533 = vweird.f32 %v3107
      %vm3534 = vweird.f32 %v3527
      %vm3535 = vmor %vm3533, %vm3534
      %v3536 = vsel %vm3535, %v3527, %v3532
      %v3537 = vrsqrt.pop %v3108
      %v3538 = vmul.f32 %v3537, %v3108
      %v3539 = vmul.f32 %v3538, %v3537
      %v3540 = vmul.f32 0.5, %v3539
      %v3541 = vsub.f32 1.5, %v3540
      %v3542 = vmul.f32 %v3537, %v3541
      %vm3543 = vweird.f32 %v3108
      %vm3544 = vweird.f32 %v3537
      %vm3545 = vmor %vm3543, %vm3544
      %v3546 = vsel %vm3545, %v3537, %v3542
      %v3547 = vrsqrt.pop %v3109
      %v3548 = vmul.f32 %v3547, %v3109
      %v3549 = vmul.f32 %v3548, %v3547
      %v3550 = vmul.f32 0.5, %v3549
      %v3551 = vsub.f32 1.5, %v3550
      %v3552 = vmul.f32 %v3547, %v3551
      %vm3553 = vweird.f32 %v3109
      %vm3554 = vweird.f32 %v3547
      %vm3555 = vmor %vm3553, %vm3554
      %v3556 = vsel %vm3555, %v3547, %v3552
      %v3557 = vrsqrt.pop %v3110
      %v3558 = vmul.f32 %v3557, %v3110
      %v3559 = vmul.f32 %v3558, %v3557
      %v3560 = vmul.f32 0.5, %v3559
      %v3561 = vsub.f32 1.5, %v3560
      %v3562 = vmul.f32 %v3557, %v3561
      %vm3563 = vweird.f32 %v3110
      %vm3564 = vweird.f32 %v3557
      %vm3565 = vmor %vm3563, %vm3564
      %v3566 = vsel %vm3565, %v3557, %v3562
      %v3567 = vrsqrt.pop %v3111
      %v3568 = vmul.f32 %v3567, %v3111
      %v3569 = vmul.f32 %v3568, %v3567
      %v3570 = vmul.f32 0.5, %v3569
      %v3571 = vsub.f32 1.5, %v3570
      %v3572 = vmul.f32 %v3567, %v3571
      %vm3573 = vweird.f32 %v3111
      %vm3574 = vweird.f32 %v3567
      %vm3575 = vmor %vm3573, %vm3574
      %v3576 = vsel %vm3575, %v3567, %v3572
      %v3577 = vrsqrt.pop %v3112
      %v3578 = vmul.f32 %v3577, %v3112
      %v3579 = vmul.f32 %v3578, %v3577
      %v3580 = vmul.f32 0.5, %v3579
      %v3581 = vsub.f32 1.5, %v3580
      %v3582 = vmul.f32 %v3577, %v3581
      %vm3583 = vweird.f32 %v3112
      %vm3584 = vweird.f32 %v3577
      %vm3585 = vmor %vm3583, %vm3584
      %v3586 = vsel %vm3585, %v3577, %v3582
      %v3587 = vrsqrt.pop %v3113
      %v3588 = vmul.f32 %v3587, %v3113
      %v3589 = vmul.f32 %v3588, %v3587
      %v3590 = vmul.f32 0.5, %v3589
      %v3591 = vsub.f32 1.5, %v3590
      %v3592 = vmul.f32 %v3587, %v3591
      %vm3593 = vweird.f32 %v3113
      %vm3594 = vweird.f32 %v3587
      %vm3595 = vmor %vm3593, %vm3594
      %v3596 = vsel %vm3595, %v3587, %v3592
      %v3597 = vrsqrt.pop %v3114
      %v3598 = vmul.f32 %v3597, %v3114
      %v3599 = vmul.f32 %v3598, %v3597
      %v3600 = vmul.f32 0.5, %v3599
      %v3601 = vsub.f32 1.5, %v3600
      %v3602 = vmul.f32 %v3597, %v3601
      %vm3603 = vweird.f32 %v3114
      %vm3604 = vweird.f32 %v3597
      %vm3605 = vmor %vm3603, %vm3604
      %v3606 = vsel %vm3605, %v3597, %v3602
      %v3607 = vrsqrt.pop %v3115
      %v3608 = vmul.f32 %v3607, %v3115
      %v3609 = vmul.f32 %v3608, %v3607
      %v3610 = vmul.f32 0.5, %v3609
      %v3611 = vsub.f32 1.5, %v3610
      %v3612 = vmul.f32 %v3607, %v3611
      %vm3613 = vweird.f32 %v3115
      %vm3614 = vweird.f32 %v3607
      %vm3615 = vmor %vm3613, %vm3614
      %v3616 = vsel %vm3615, %v3607, %v3612
      %v3617 = vrsqrt.pop %v3116
      %v3618 = vmul.f32 %v3617, %v3116
      %v3619 = vmul.f32 %v3618, %v3617
      %v3620 = vmul.f32 0.5, %v3619
      %v3621 = vsub.f32 1.5, %v3620
      %v3622 = vmul.f32 %v3617, %v3621
      %vm3623 = vweird.f32 %v3116
      %vm3624 = vweird.f32 %v3617
      %vm3625 = vmor %vm3623, %vm3624
      %v3626 = vsel %vm3625, %v3617, %v3622
      %v3627 = vrsqrt.pop %v3117
      %v3628 = vmul.f32 %v3627, %v3117
      %v3629 = vmul.f32 %v3628, %v3627
      %v3630 = vmul.f32 0.5, %v3629
      %v3631 = vsub.f32 1.5, %v3630
      %v3632 = vmul.f32 %v3627, %v3631
      %vm3633 = vweird.f32 %v3117
      %vm3634 = vweird.f32 %v3627
      %vm3635 = vmor %vm3633, %vm3634
      %v3636 = vsel %vm3635, %v3627, %v3632
      %v3637 = vrsqrt.pop %v3118
      %v3638 = vmul.f32 %v3637, %v3118
      %v3639 = vmul.f32 %v3638, %v3637
      %v3640 = vmul.f32 0.5, %v3639
      %v3641 = vsub.f32 1.5, %v3640
      %v3642 = vmul.f32 %v3637, %v3641
      %vm3643 = vweird.f32 %v3118
      %vm3644 = vweird.f32 %v3637
      %vm3645 = vmor %vm3643, %vm3644
      %v3646 = vsel %vm3645, %v3637, %v3642
      %v3647 = vrsqrt.pop %v3119
      %v3648 = vmul.f32 %v3647, %v3119
      %v3649 = vmul.f32 %v3648, %v3647
      %v3650 = vmul.f32 0.5, %v3649
      %v3651 = vsub.f32 1.5, %v3650
      %v3652 = vmul.f32 %v3647, %v3651
      %vm3653 = vweird.f32 %v3119
      %vm3654 = vweird.f32 %v3647
      %vm3655 = vmor %vm3653, %vm3654
      %v3656 = vsel %vm3655, %v3647, %v3652
      %v3657 = vrsqrt.pop %v3120
      %v3658 = vmul.f32 %v3657, %v3120
      %v3659 = vmul.f32 %v3658, %v3657
      %v3660 = vmul.f32 0.5, %v3659
      %v3661 = vsub.f32 1.5, %v3660
      %v3662 = vmul.f32 %v3657, %v3661
      %vm3663 = vweird.f32 %v3120
      %vm3664 = vweird.f32 %v3657
      %vm3665 = vmor %vm3663, %vm3664
      %v3666 = vsel %vm3665, %v3657, %v3662
      %v3667 = vrsqrt.pop %v3121
      %v3668 = vmul.f32 %v3667, %v3121
      %v3669 = vmul.f32 %v3668, %v3667
      %v3670 = vmul.f32 0.5, %v3669
      %v3671 = vsub.f32 1.5, %v3670
      %v3672 = vmul.f32 %v3667, %v3671
      %vm3673 = vweird.f32 %v3121
      %vm3674 = vweird.f32 %v3667
      %vm3675 = vmor %vm3673, %vm3674
      %v3676 = vsel %vm3675, %v3667, %v3672
      %v3677 = vrsqrt.pop %v3122
      %v3678 = vmul.f32 %v3677, %v3122
      %v3679 = vmul.f32 %v3678, %v3677
      %v3680 = vmul.f32 0.5, %v3679
      %v3681 = vsub.f32 1.5, %v3680
      %v3682 = vmul.f32 %v3677, %v3681
      %vm3683 = vweird.f32 %v3122
      %vm3684 = vweird.f32 %v3677
      %vm3685 = vmor %vm3683, %vm3684
      %v3686 = vsel %vm3685, %v3677, %v3682
      %v3687 = vrsqrt.pop %v3123
      %v3688 = vmul.f32 %v3687, %v3123
      %v3689 = vmul.f32 %v3688, %v3687
      %v3690 = vmul.f32 0.5, %v3689
      %v3691 = vsub.f32 1.5, %v3690
      %v3692 = vmul.f32 %v3687, %v3691
      %vm3693 = vweird.f32 %v3123
      %vm3694 = vweird.f32 %v3687
      %vm3695 = vmor %vm3693, %vm3694
      %v3696 = vsel %vm3695, %v3687, %v3692
      %v3697 = vrsqrt.pop %v3124
      %v3698 = vmul.f32 %v3697, %v3124
      %v3699 = vmul.f32 %v3698, %v3697
      %v3700 = vmul.f32 0.5, %v3699
      %v3701 = vsub.f32 1.5, %v3700
      %v3702 = vmul.f32 %v3697, %v3701
      %vm3703 = vweird.f32 %v3124
      %vm3704 = vweird.f32 %v3697
      %vm3705 = vmor %vm3703, %vm3704
      %v3706 = vsel %vm3705, %v3697, %v3702
      %v3707 = vrsqrt.pop %v3125
      %v3708 = vmul.f32 %v3707, %v3125
      %v3709 = vmul.f32 %v3708, %v3707
      %v3710 = vmul.f32 0.5, %v3709
      %v3711 = vsub.f32 1.5, %v3710
      %v3712 = vmul.f32 %v3707, %v3711
      %vm3713 = vweird.f32 %v3125
      %vm3714 = vweird.f32 %v3707
      %vm3715 = vmor %vm3713, %vm3714
      %v3716 = vsel %vm3715, %v3707, %v3712
      %v3717 = vrsqrt.pop %v3126
      %v3718 = vmul.f32 %v3717, %v3126
      %v3719 = vmul.f32 %v3718, %v3717
      %v3720 = vmul.f32 0.5, %v3719
      %v3721 = vsub.f32 1.5, %v3720
      %v3722 = vmul.f32 %v3717, %v3721
      %vm3723 = vweird.f32 %v3126
      %vm3724 = vweird.f32 %v3717
      %vm3725 = vmor %vm3723, %vm3724
      %v3726 = vsel %vm3725, %v3717, %v3722
      %v3727 = vmul.f32 %v2167, %v3136
      %v3728 = vmul.f32 %v2168, %v3146
      %v3729 = vmul.f32 %v2169, %v3156
      %v3730 = vmul.f32 %v2170, %v3166
      %v3731 = vmul.f32 %v2171, %v3176
      %v3732 = vmul.f32 %v2172, %v3186
      %v3733 = vmul.f32 %v2173, %v3196
      %v3734 = vmul.f32 %v2174, %v3206
      %v3735 = vmul.f32 %v2175, %v3216
      %v3736 = vmul.f32 %v2176, %v3226
      %v3737 = vmul.f32 %v2177, %v3236
      %v3738 = vmul.f32 %v2178, %v3246
      %v3739 = vmul.f32 %v2179, %v3256
      %v3740 = vmul.f32 %v2180, %v3266
      %v3741 = vmul.f32 %v2181, %v3276
      %v3742 = vmul.f32 %v2182, %v3286
      %v3743 = vmul.f32 %v2183, %v3296
      %v3744 = vmul.f32 %v2184, %v3306
      %v3745 = vmul.f32 %v2185, %v3316
      %v3746 = vmul.f32 %v2186, %v3326
      %v3747 = vmul.f32 %v2187, %v3336
      %v3748 = vmul.f32 %v2188, %v3346
      %v3749 = vmul.f32 %v2189, %v3356
      %v3750 = vmul.f32 %v2190, %v3366
      %v3751 = vmul.f32 %v2191, %v3376
      %v3752 = vmul.f32 %v2192, %v3386
      %v3753 = vmul.f32 %v2193, %v3396
      %v3754 = vmul.f32 %v2194, %v3406
      %v3755 = vmul.f32 %v2195, %v3416
      %v3756 = vmul.f32 %v2196, %v3426
      %v3757 = vmul.f32 %v2197, %v3436
      %v3758 = vmul.f32 %v2198, %v3446
      %v3759 = vmul.f32 %v2199, %v3456
      %v3760 = vmul.f32 %v2200, %v3466
      %v3761 = vmul.f32 %v2201, %v3476
      %v3762 = vmul.f32 %v2202, %v3486
      %v3763 = vmul.f32 %v2203, %v3496
      %v3764 = vmul.f32 %v2204, %v3506
      %v3765 = vmul.f32 %v2205, %v3516
      %v3766 = vmul.f32 %v2206, %v3526
      %v3767 = vmul.f32 %v2207, %v3536
      %v3768 = vmul.f32 %v2208, %v3546
      %v3769 = vmul.f32 %v2209, %v3556
      %v3770 = vmul.f32 %v2210, %v3566
      %v3771 = vmul.f32 %v2211, %v3576
      %v3772 = vmul.f32 %v2212, %v3586
      %v3773 = vmul.f32 %v2213, %v3596
      %v3774 = vmul.f32 %v2214, %v3606
      %v3775 = vmul.f32 %v2215, %v3616
      %v3776 = vmul.f32 %v2216, %v3626
      %v3777 = vmul.f32 %v2217, %v3636
      %v3778 = vmul.f32 %v2218, %v3646
      %v3779 = vmul.f32 %v2219, %v3656
      %v3780 = vmul.f32 %v2220, %v3666
      %v3781 = vmul.f32 %v2221, %v3676
      %v3782 = vmul.f32 %v2222, %v3686
      %v3783 = vmul.f32 %v2223, %v3696
      %v3784 = vmul.f32 %v2224, %v3706
      %v3785 = vmul.f32 %v2225, %v3716
      %v3786 = vmul.f32 %v2226, %v3726
      %3788 = vset.pattern.permute.xlu0 0
      %3789 = vperm.xlu0 %3788, %v3727
      %v3790 = vpop.permute.xlu0 %3789
      %3793 = vset.pattern.permute.xlu0 0
      %3794 = vperm.xlu0 %3793, %v3728
      %v3795 = vpop.permute.xlu0 %3794
      %3798 = vset.pattern.permute.xlu0 0
      %3799 = vperm.xlu0 %3798, %v3729
      %v3800 = vpop.permute.xlu0 %3799
      %3803 = vset.pattern.permute.xlu0 0
      %3804 = vperm.xlu0 %3803, %v3730
      %v3805 = vpop.permute.xlu0 %3804
      %3808 = vset.pattern.permute.xlu0 0
      %3809 = vperm.xlu0 %3808, %v3731
      %v3810 = vpop.permute.xlu0 %3809
      %3813 = vset.pattern.permute.xlu0 0
      %3814 = vperm.xlu0 %3813, %v3732
      %v3815 = vpop.permute.xlu0 %3814
      %3818 = vset.pattern.permute.xlu0 0
      %3819 = vperm.xlu0 %3818, %v3733
      %v3820 = vpop.permute.xlu0 %3819
      %3823 = vset.pattern.permute.xlu0 0
      %3824 = vperm.xlu0 %3823, %v3734
      %v3825 = vpop.permute.xlu0 %3824
      %3828 = vset.pattern.permute.xlu0 0
      %3829 = vperm.xlu0 %3828, %v3735
      %v3830 = vpop.permute.xlu0 %3829
      %3833 = vset.pattern.permute.xlu0 0
      %3834 = vperm.xlu0 %3833, %v3736
      %v3835 = vpop.permute.xlu0 %3834
      %3838 = vset.pattern.permute.xlu0 0
      %3839 = vperm.xlu0 %3838, %v3737
      %v3840 = vpop.permute.xlu0 %3839
      %3843 = vset.pattern.permute.xlu0 0
      %3844 = vperm.xlu0 %3843, %v3738
      %v3845 = vpop.permute.xlu0 %3844
      %3848 = vset.pattern.permute.xlu0 0
      %3849 = vperm.xlu0 %3848, %v3739
      %v3850 = vpop.permute.xlu0 %3849
      %3853 = vset.pattern.permute.xlu0 0
      %3854 = vperm.xlu0 %3853, %v3740
      %v3855 = vpop.permute.xlu0 %3854
      %3858 = vset.pattern.permute.xlu0 0
      %3859 = vperm.xlu0 %3858, %v3741
      %v3860 = vpop.permute.xlu0 %3859
      %3863 = vset.pattern.permute.xlu0 0
      %3864 = vperm.xlu0 %3863, %v3742
      %v3865 = vpop.permute.xlu0 %3864
      %3868 = vset.pattern.permute.xlu0 0
      %3869 = vperm.xlu0 %3868, %v3743
      %v3870 = vpop.permute.xlu0 %3869
      %3873 = vset.pattern.permute.xlu0 0
      %3874 = vperm.xlu0 %3873, %v3744
      %v3875 = vpop.permute.xlu0 %3874
      %3878 = vset.pattern.permute.xlu0 0
      %3879 = vperm.xlu0 %3878, %v3745
      %v3880 = vpop.permute.xlu0 %3879
      %3883 = vset.pattern.permute.xlu0 0
      %3884 = vperm.xlu0 %3883, %v3746
      %v3885 = vpop.permute.xlu0 %3884
      %3888 = vset.pattern.permute.xlu0 0
      %3889 = vperm.xlu0 %3888, %v3747
      %v3890 = vpop.permute.xlu0 %3889
      %3893 = vset.pattern.permute.xlu0 0
      %3894 = vperm.xlu0 %3893, %v3748
      %v3895 = vpop.permute.xlu0 %3894
      %3898 = vset.pattern.permute.xlu0 0
      %3899 = vperm.xlu0 %3898, %v3749
      %v3900 = vpop.permute.xlu0 %3899
      %3903 = vset.pattern.permute.xlu0 0
      %3904 = vperm.xlu0 %3903, %v3750
      %v3905 = vpop.permute.xlu0 %3904
      %3908 = vset.pattern.permute.xlu0 0
      %3909 = vperm.xlu0 %3908, %v3751
      %v3910 = vpop.permute.xlu0 %3909
      %3913 = vset.pattern.permute.xlu0 0
      %3914 = vperm.xlu0 %3913, %v3752
      %v3915 = vpop.permute.xlu0 %3914
      %3918 = vset.pattern.permute.xlu0 0
      %3919 = vperm.xlu0 %3918, %v3753
      %v3920 = vpop.permute.xlu0 %3919
      %3923 = vset.pattern.permute.xlu0 0
      %3924 = vperm.xlu0 %3923, %v3754
      %v3925 = vpop.permute.xlu0 %3924
      %3928 = vset.pattern.permute.xlu0 0
      %3929 = vperm.xlu0 %3928, %v3755
      %v3930 = vpop.permute.xlu0 %3929
      %3933 = vset.pattern.permute.xlu0 0
      %3934 = vperm.xlu0 %3933, %v3756
      %v3935 = vpop.permute.xlu0 %3934
      %3938 = vset.pattern.permute.xlu0 0
      %3939 = vperm.xlu0 %3938, %v3757
      %v3940 = vpop.permute.xlu0 %3939
      %3943 = vset.pattern.permute.xlu0 0
      %3944 = vperm.xlu0 %3943, %v3758
      %v3945 = vpop.permute.xlu0 %3944
      %3948 = vset.pattern.permute.xlu0 0
      %3949 = vperm.xlu0 %3948, %v3759
      %v3950 = vpop.permute.xlu0 %3949
      %3953 = vset.pattern.permute.xlu0 0
      %3954 = vperm.xlu0 %3953, %v3760
      %v3955 = vpop.permute.xlu0 %3954
      %3958 = vset.pattern.permute.xlu0 0
      %3959 = vperm.xlu0 %3958, %v3761
      %v3960 = vpop.permute.xlu0 %3959
      %3963 = vset.pattern.permute.xlu0 0
      %3964 = vperm.xlu0 %3963, %v3762
      %v3965 = vpop.permute.xlu0 %3964
      %3968 = vset.pattern.permute.xlu0 0
      %3969 = vperm.xlu0 %3968, %v3763
      %v3970 = vpop.permute.xlu0 %3969
      %3973 = vset.pattern.permute.xlu0 0
      %3974 = vperm.xlu0 %3973, %v3764
      %v3975 = vpop.permute.xlu0 %3974
      %3978 = vset.pattern.permute.xlu0 0
      %3979 = vperm.xlu0 %3978, %v3765
      %v3980 = vpop.permute.xlu0 %3979
      %3983 = vset.pattern.permute.xlu0 0
      %3984 = vperm.xlu0 %3983, %v3766
      %v3985 = vpop.permute.xlu0 %3984
      %3988 = vset.pattern.permute.xlu0 0
      %3989 = vperm.xlu0 %3988, %v3767
      %v3990 = vpop.permute.xlu0 %3989
      %3993 = vset.pattern.permute.xlu0 0
      %3994 = vperm.xlu0 %3993, %v3768
      %v3995 = vpop.permute.xlu0 %3994
      %3998 = vset.pattern.permute.xlu0 0
      %3999 = vperm.xlu0 %3998, %v3769
      %v4000 = vpop.permute.xlu0 %3999
      %4003 = vset.pattern.permute.xlu0 0
      %4004 = vperm.xlu0 %4003, %v3770
      %v4005 = vpop.permute.xlu0 %4004
      %4008 = vset.pattern.permute.xlu0 0
      %4009 = vperm.xlu0 %4008, %v3771
      %v4010 = vpop.permute.xlu0 %4009
      %4013 = vset.pattern.permute.xlu0 0
      %4014 = vperm.xlu0 %4013, %v3772
      %v4015 = vpop.permute.xlu0 %4014
      %4018 = vset.pattern.permute.xlu0 0
      %4019 = vperm.xlu0 %4018, %v3773
      %v4020 = vpop.permute.xlu0 %4019
      %4023 = vset.pattern.permute.xlu0 0
      %4024 = vperm.xlu0 %4023, %v3774
      %v4025 = vpop.permute.xlu0 %4024
      %4028 = vset.pattern.permute.xlu0 0
      %4029 = vperm.xlu0 %4028, %v3775
      %v4030 = vpop.permute.xlu0 %4029
      %4033 = vset.pattern.permute.xlu0 0
      %4034 = vperm.xlu0 %4033, %v3776
      %v4035 = vpop.permute.xlu0 %4034
      %4038 = vset.pattern.permute.xlu0 0
      %4039 = vperm.xlu0 %4038, %v3777
      %v4040 = vpop.permute.xlu0 %4039
      %4043 = vset.pattern.permute.xlu0 0
      %4044 = vperm.xlu0 %4043, %v3778
      %v4045 = vpop.permute.xlu0 %4044
      %4048 = vset.pattern.permute.xlu0 0
      %4049 = vperm.xlu0 %4048, %v3779
      %v4050 = vpop.permute.xlu0 %4049
      %4053 = vset.pattern.permute.xlu0 0
      %4054 = vperm.xlu0 %4053, %v3780
      %v4055 = vpop.permute.xlu0 %4054
      %4058 = vset.pattern.permute.xlu0 0
      %4059 = vperm.xlu0 %4058, %v3781
      %v4060 = vpop.permute.xlu0 %4059
      %4063 = vset.pattern.permute.xlu0 0
      %4064 = vperm.xlu0 %4063, %v3782
      %v4065 = vpop.permute.xlu0 %4064
      %4068 = vset.pattern.permute.xlu0 0
      %4069 = vperm.xlu0 %4068, %v3783
      %v4070 = vpop.permute.xlu0 %4069
      %4073 = vset.pattern.permute.xlu0 0
      %4074 = vperm.xlu0 %4073, %v3784
      %v4075 = vpop.permute.xlu0 %4074
      %4078 = vset.pattern.permute.xlu0 0
      %4079 = vperm.xlu0 %4078, %v3785
      %v4080 = vpop.permute.xlu0 %4079
      %4083 = vset.pattern.permute.xlu0 0
      %4084 = vperm.xlu0 %4083, %v3786
      %v4085 = vpop.permute.xlu0 %4084
      %v4087 = vmul.f32 %v2527, %v3790
      %v4088 = vmul.f32 %v2528, %v3790
      %v4089 = vmul.f32 %v2529, %v3795
      %v4090 = vmul.f32 %v2530, %v3795
      %v4091 = vmul.f32 %v2531, %v3800
      %v4092 = vmul.f32 %v2532, %v3800
      %v4093 = vmul.f32 %v2533, %v3805
      %v4094 = vmul.f32 %v2534, %v3805
      %v4095 = vmul.f32 %v2535, %v3810
      %v4096 = vmul.f32 %v2536, %v3810
      %v4097 = vmul.f32 %v2537, %v3815
      %v4098 = vmul.f32 %v2538, %v3815
      %v4099 = vmul.f32 %v2539, %v3820
      %v4100 = vmul.f32 %v2540, %v3820
      %v4101 = vmul.f32 %v2541, %v3825
      %v4102 = vmul.f32 %v2542, %v3825
      %v4103 = vmul.f32 %v2543, %v3830
      %v4104 = vmul.f32 %v2544, %v3830
      %v4105 = vmul.f32 %v2545, %v3835
      %v4106 = vmul.f32 %v2546, %v3835
      %v4107 = vmul.f32 %v2547, %v3840
      %v4108 = vmul.f32 %v2548, %v3840
      %v4109 = vmul.f32 %v2549, %v3845
      %v4110 = vmul.f32 %v2550, %v3845
      %v4111 = vmul.f32 %v2551, %v3850
      %v4112 = vmul.f32 %v2552, %v3850
      %v4113 = vmul.f32 %v2553, %v3855
      %v4114 = vmul.f32 %v2554, %v3855
      %v4115 = vmul.f32 %v2555, %v3860
      %v4116 = vmul.f32 %v2556, %v3860
      %v4117 = vmul.f32 %v2557, %v3865
      %v4118 = vmul.f32 %v2558, %v3865
      %v4119 = vmul.f32 %v2559, %v3870
      %v4120 = vmul.f32 %v2560, %v3870
      %v4121 = vmul.f32 %v2561, %v3875
      %v4122 = vmul.f32 %v2562, %v3875
      %v4123 = vmul.f32 %v2563, %v3880
      %v4124 = vmul.f32 %v2564, %v3880
      %v4125 = vmul.f32 %v2565, %v3885
      %v4126 = vmul.f32 %v2566, %v3885
      %v4127 = vmul.f32 %v2567, %v3890
      %v4128 = vmul.f32 %v2568, %v3890
      %v4129 = vmul.f32 %v2569, %v3895
      %v4130 = vmul.f32 %v2570, %v3895
      %v4131 = vmul.f32 %v2571, %v3900
      %v4132 = vmul.f32 %v2572, %v3900
      %v4133 = vmul.f32 %v2573, %v3905
      %v4134 = vmul.f32 %v2574, %v3905
      %v4135 = vmul.f32 %v2575, %v3910
      %v4136 = vmul.f32 %v2576, %v3910
      %v4137 = vmul.f32 %v2577, %v3915
      %v4138 = vmul.f32 %v2578, %v3915
      %v4139 = vmul.f32 %v2579, %v3920
      %v4140 = vmul.f32 %v2580, %v3920
      %v4141 = vmul.f32 %v2581, %v3925
      %v4142 = vmul.f32 %v2582, %v3925
      %v4143 = vmul.f32 %v2583, %v3930
      %v4144 = vmul.f32 %v2584, %v3930
      %v4145 = vmul.f32 %v2585, %v3935
      %v4146 = vmul.f32 %v2586, %v3935
      %v4147 = vmul.f32 %v2587, %v3940
      %v4148 = vmul.f32 %v2588, %v3940
      %v4149 = vmul.f32 %v2589, %v3945
      %v4150 = vmul.f32 %v2590, %v3945
      %v4151 = vmul.f32 %v2591, %v3950
      %v4152 = vmul.f32 %v2592, %v3950
      %v4153 = vmul.f32 %v2593, %v3955
      %v4154 = vmul.f32 %v2594, %v3955
      %v4155 = vmul.f32 %v2595, %v3960
      %v4156 = vmul.f32 %v2596, %v3960
      %v4157 = vmul.f32 %v2597, %v3965
      %v4158 = vmul.f32 %v2598, %v3965
      %v4159 = vmul.f32 %v2599, %v3970
      %v4160 = vmul.f32 %v2600, %v3970
      %v4161 = vmul.f32 %v2601, %v3975
      %v4162 = vmul.f32 %v2602, %v3975
      %v4163 = vmul.f32 %v2603, %v3980
      %v4164 = vmul.f32 %v2604, %v3980
      %v4165 = vmul.f32 %v2605, %v3985
      %v4166 = vmul.f32 %v2606, %v3985
      %v4167 = vmul.f32 %v2607, %v3990
      %v4168 = vmul.f32 %v2608, %v3990
      %v4169 = vmul.f32 %v2609, %v3995
      %v4170 = vmul.f32 %v2610, %v3995
      %v4171 = vmul.f32 %v2611, %v4000
      %v4172 = vmul.f32 %v2612, %v4000
      %v4173 = vmul.f32 %v2613, %v4005
      %v4174 = vmul.f32 %v2614, %v4005
      %v4175 = vmul.f32 %v2615, %v4010
      %v4176 = vmul.f32 %v2616, %v4010
      %v4177 = vmul.f32 %v2617, %v4015
      %v4178 = vmul.f32 %v2618, %v4015
      %v4179 = vmul.f32 %v2619, %v4020
      %v4180 = vmul.f32 %v2620, %v4020
      %v4181 = vmul.f32 %v2621, %v4025
      %v4182 = vmul.f32 %v2622, %v4025
      %v4183 = vmul.f32 %v2623, %v4030
      %v4184 = vmul.f32 %v2624, %v4030
      %v4185 = vmul.f32 %v2625, %v4035
      %v4186 = vmul.f32 %v2626, %v4035
      %v4187 = vmul.f32 %v2627, %v4040
      %v4188 = vmul.f32 %v2628, %v4040
      %v4189 = vmul.f32 %v2629, %v4045
      %v4190 = vmul.f32 %v2630, %v4045
      %v4191 = vmul.f32 %v2631, %v4050
      %v4192 = vmul.f32 %v2632, %v4050
      %v4193 = vmul.f32 %v2633, %v4055
      %v4194 = vmul.f32 %v2634, %v4055
      %v4195 = vmul.f32 %v2635, %v4060
      %v4196 = vmul.f32 %v2636, %v4060
      %v4197 = vmul.f32 %v2637, %v4065
      %v4198 = vmul.f32 %v2638, %v4065
      %v4199 = vmul.f32 %v2639, %v4070
      %v4200 = vmul.f32 %v2640, %v4070
      %v4201 = vmul.f32 %v2641, %v4075
      %v4202 = vmul.f32 %v2642, %v4075
      %v4203 = vmul.f32 %v2643, %v4080
      %v4204 = vmul.f32 %v2644, %v4080
      %v4205 = vmul.f32 %v2645, %v4085
      %v4206 = vmul.f32 %v2646, %v4085
      %4208 = vset.pattern.permute.xlu0 1
      %4209 = vperm.xlu0 %4208, %v2167
      %v4210 = vpop.permute.xlu0 %4209
      %4213 = vset.pattern.permute.xlu0 1
      %4214 = vperm.xlu0 %4213, %v2168
      %v4215 = vpop.permute.xlu0 %4214
      %4218 = vset.pattern.permute.xlu0 1
      %4219 = vperm.xlu0 %4218, %v2169
      %v4220 = vpop.permute.xlu0 %4219
      %4223 = vset.pattern.permute.xlu0 1
      %4224 = vperm.xlu0 %4223, %v2170
      %v4225 = vpop.permute.xlu0 %4224
      %4228 = vset.pattern.permute.xlu0 1
      %4229 = vperm.xlu0 %4228, %v2171
      %v4230 = vpop.permute.xlu0 %4229
      %4233 = vset.pattern.permute.xlu0 1
      %4234 = vperm.xlu0 %4233, %v2172
      %v4235 = vpop.permute.xlu0 %4234
      %4238 = vset.pattern.permute.xlu0 1
      %4239 = vperm.xlu0 %4238, %v2173
      %v4240 = vpop.permute.xlu0 %4239
      %4243 = vset.pattern.permute.xlu0 1
      %4244 = vperm.xlu0 %4243, %v2174
      %v4245 = vpop.permute.xlu0 %4244
      %4248 = vset.pattern.permute.xlu0 1
      %4249 = vperm.xlu0 %4248, %v2175
      %v4250 = vpop.permute.xlu0 %4249
      %4253 = vset.pattern.permute.xlu0 1
      %4254 = vperm.xlu0 %4253, %v2176
      %v4255 = vpop.permute.xlu0 %4254
      %4258 = vset.pattern.permute.xlu0 1
      %4259 = vperm.xlu0 %4258, %v2177
      %v4260 = vpop.permute.xlu0 %4259
      %4263 = vset.pattern.permute.xlu0 1
      %4264 = vperm.xlu0 %4263, %v2178
      %v4265 = vpop.permute.xlu0 %4264
      %4268 = vset.pattern.permute.xlu0 1
      %4269 = vperm.xlu0 %4268, %v2179
      %v4270 = vpop.permute.xlu0 %4269
      %4273 = vset.pattern.permute.xlu0 1
      %4274 = vperm.xlu0 %4273, %v2180
      %v4275 = vpop.permute.xlu0 %4274
      %4278 = vset.pattern.permute.xlu0 1
      %4279 = vperm.xlu0 %4278, %v2181
      %v4280 = vpop.permute.xlu0 %4279
      %4283 = vset.pattern.permute.xlu0 1
      %4284 = vperm.xlu0 %4283, %v2182
      %v4285 = vpop.permute.xlu0 %4284
      %4288 = vset.pattern.permute.xlu0 1
      %4289 = vperm.xlu0 %4288, %v2183
      %v4290 = vpop.permute.xlu0 %4289
      %4293 = vset.pattern.permute.xlu0 1
      %4294 = vperm.xlu0 %4293, %v2184
      %v4295 = vpop.permute.xlu0 %4294
      %4298 = vset.pattern.permute.xlu0 1
      %4299 = vperm.xlu0 %4298, %v2185
      %v4300 = vpop.permute.xlu0 %4299
      %4303 = vset.pattern.permute.xlu0 1
      %4304 = vperm.xlu0 %4303, %v2186
      %v4305 = vpop.permute.xlu0 %4304
      %4308 = vset.pattern.permute.xlu0 1
      %4309 = vperm.xlu0 %4308, %v2187
      %v4310 = vpop.permute.xlu0 %4309
      %4313 = vset.pattern.permute.xlu0 1
      %4314 = vperm.xlu0 %4313, %v2188
      %v4315 = vpop.permute.xlu0 %4314
      %4318 = vset.pattern.permute.xlu0 1
      %4319 = vperm.xlu0 %4318, %v2189
      %v4320 = vpop.permute.xlu0 %4319
      %4323 = vset.pattern.permute.xlu0 1
      %4324 = vperm.xlu0 %4323, %v2190
      %v4325 = vpop.permute.xlu0 %4324
      %4328 = vset.pattern.permute.xlu0 1
      %4329 = vperm.xlu0 %4328, %v2191
      %v4330 = vpop.permute.xlu0 %4329
      %4333 = vset.pattern.permute.xlu0 1
      %4334 = vperm.xlu0 %4333, %v2192
      %v4335 = vpop.permute.xlu0 %4334
      %4338 = vset.pattern.permute.xlu0 1
      %4339 = vperm.xlu0 %4338, %v2193
      %v4340 = vpop.permute.xlu0 %4339
      %4343 = vset.pattern.permute.xlu0 1
      %4344 = vperm.xlu0 %4343, %v2194
      %v4345 = vpop.permute.xlu0 %4344
      %4348 = vset.pattern.permute.xlu0 1
      %4349 = vperm.xlu0 %4348, %v2195
      %v4350 = vpop.permute.xlu0 %4349
      %4353 = vset.pattern.permute.xlu0 1
      %4354 = vperm.xlu0 %4353, %v2196
      %v4355 = vpop.permute.xlu0 %4354
      %4358 = vset.pattern.permute.xlu0 1
      %4359 = vperm.xlu0 %4358, %v2197
      %v4360 = vpop.permute.xlu0 %4359
      %4363 = vset.pattern.permute.xlu0 1
      %4364 = vperm.xlu0 %4363, %v2198
      %v4365 = vpop.permute.xlu0 %4364
      %4368 = vset.pattern.permute.xlu0 1
      %4369 = vperm.xlu0 %4368, %v2199
      %v4370 = vpop.permute.xlu0 %4369
      %4373 = vset.pattern.permute.xlu0 1
      %4374 = vperm.xlu0 %4373, %v2200
      %v4375 = vpop.permute.xlu0 %4374
      %4378 = vset.pattern.permute.xlu0 1
      %4379 = vperm.xlu0 %4378, %v2201
      %v4380 = vpop.permute.xlu0 %4379
      %4383 = vset.pattern.permute.xlu0 1
      %4384 = vperm.xlu0 %4383, %v2202
      %v4385 = vpop.permute.xlu0 %4384
      %4388 = vset.pattern.permute.xlu0 1
      %4389 = vperm.xlu0 %4388, %v2203
      %v4390 = vpop.permute.xlu0 %4389
      %4393 = vset.pattern.permute.xlu0 1
      %4394 = vperm.xlu0 %4393, %v2204
      %v4395 = vpop.permute.xlu0 %4394
      %4398 = vset.pattern.permute.xlu0 1
      %4399 = vperm.xlu0 %4398, %v2205
      %v4400 = vpop.permute.xlu0 %4399
      %4403 = vset.pattern.permute.xlu0 1
      %4404 = vperm.xlu0 %4403, %v2206
      %v4405 = vpop.permute.xlu0 %4404
      %4408 = vset.pattern.permute.xlu0 1
      %4409 = vperm.xlu0 %4408, %v2207
      %v4410 = vpop.permute.xlu0 %4409
      %4413 = vset.pattern.permute.xlu0 1
      %4414 = vperm.xlu0 %4413, %v2208
      %v4415 = vpop.permute.xlu0 %4414
      %4418 = vset.pattern.permute.xlu0 1
      %4419 = vperm.xlu0 %4418, %v2209
      %v4420 = vpop.permute.xlu0 %4419
      %4423 = vset.pattern.permute.xlu0 1
      %4424 = vperm.xlu0 %4423, %v2210
      %v4425 = vpop.permute.xlu0 %4424
      %4428 = vset.pattern.permute.xlu0 1
      %4429 = vperm.xlu0 %4428, %v2211
      %v4430 = vpop.permute.xlu0 %4429
      %4433 = vset.pattern.permute.xlu0 1
      %4434 = vperm.xlu0 %4433, %v2212
      %v4435 = vpop.permute.xlu0 %4434
      %4438 = vset.pattern.permute.xlu0 1
      %4439 = vperm.xlu0 %4438, %v2213
      %v4440 = vpop.permute.xlu0 %4439
      %4443 = vset.pattern.permute.xlu0 1
      %4444 = vperm.xlu0 %4443, %v2214
      %v4445 = vpop.permute.xlu0 %4444
      %4448 = vset.pattern.permute.xlu0 1
      %4449 = vperm.xlu0 %4448, %v2215
      %v4450 = vpop.permute.xlu0 %4449
      %4453 = vset.pattern.permute.xlu0 1
      %4454 = vperm.xlu0 %4453, %v2216
      %v4455 = vpop.permute.xlu0 %4454
      %4458 = vset.pattern.permute.xlu0 1
      %4459 = vperm.xlu0 %4458, %v2217
      %v4460 = vpop.permute.xlu0 %4459
      %4463 = vset.pattern.permute.xlu0 1
      %4464 = vperm.xlu0 %4463, %v2218
      %v4465 = vpop.permute.xlu0 %4464
      %4468 = vset.pattern.permute.xlu0 1
      %4469 = vperm.xlu0 %4468, %v2219
      %v4470 = vpop.permute.xlu0 %4469
      %4473 = vset.pattern.permute.xlu0 1
      %4474 = vperm.xlu0 %4473, %v2220
      %v4475 = vpop.permute.xlu0 %4474
      %4478 = vset.pattern.permute.xlu0 1
      %4479 = vperm.xlu0 %4478, %v2221
      %v4480 = vpop.permute.xlu0 %4479
      %4483 = vset.pattern.permute.xlu0 1
      %4484 = vperm.xlu0 %4483, %v2222
      %v4485 = vpop.permute.xlu0 %4484
      %4488 = vset.pattern.permute.xlu0 1
      %4489 = vperm.xlu0 %4488, %v2223
      %v4490 = vpop.permute.xlu0 %4489
      %4493 = vset.pattern.permute.xlu0 1
      %4494 = vperm.xlu0 %4493, %v2224
      %v4495 = vpop.permute.xlu0 %4494
      %4498 = vset.pattern.permute.xlu0 1
      %4499 = vperm.xlu0 %4498, %v2225
      %v4500 = vpop.permute.xlu0 %4499
      %4503 = vset.pattern.permute.xlu0 1
      %4504 = vperm.xlu0 %4503, %v2226
      %v4505 = vpop.permute.xlu0 %4504
      %v4507 = vadd.f32 %v4087, %v4210
      %v4508 = vadd.f32 %v4088, %v4210
      %v4509 = vadd.f32 %v4089, %v4215
      %v4510 = vadd.f32 %v4090, %v4215
      %v4511 = vadd.f32 %v4091, %v4220
      %v4512 = vadd.f32 %v4092, %v4220
      %v4513 = vadd.f32 %v4093, %v4225
      %v4514 = vadd.f32 %v4094, %v4225
      %v4515 = vadd.f32 %v4095, %v4230
      %v4516 = vadd.f32 %v4096, %v4230
      %v4517 = vadd.f32 %v4097, %v4235
      %v4518 = vadd.f32 %v4098, %v4235
      %v4519 = vadd.f32 %v4099, %v4240
      %v4520 = vadd.f32 %v4100, %v4240
      %v4521 = vadd.f32 %v4101, %v4245
      %v4522 = vadd.f32 %v4102, %v4245
      %v4523 = vadd.f32 %v4103, %v4250
      %v4524 = vadd.f32 %v4104, %v4250
      %v4525 = vadd.f32 %v4105, %v4255
      %v4526 = vadd.f32 %v4106, %v4255
      %v4527 = vadd.f32 %v4107, %v4260
      %v4528 = vadd.f32 %v4108, %v4260
      %v4529 = vadd.f32 %v4109, %v4265
      %v4530 = vadd.f32 %v4110, %v4265
      %v4531 = vadd.f32 %v4111, %v4270
      %v4532 = vadd.f32 %v4112, %v4270
      %v4533 = vadd.f32 %v4113, %v4275
      %v4534 = vadd.f32 %v4114, %v4275
      %v4535 = vadd.f32 %v4115, %v4280
      %v4536 = vadd.f32 %v4116, %v4280
      %v4537 = vadd.f32 %v4117, %v4285
      %v4538 = vadd.f32 %v4118, %v4285
      %v4539 = vadd.f32 %v4119, %v4290
      %v4540 = vadd.f32 %v4120, %v4290
      %v4541 = vadd.f32 %v4121, %v4295
      %v4542 = vadd.f32 %v4122, %v4295
      %v4543 = vadd.f32 %v4123, %v4300
      %v4544 = vadd.f32 %v4124, %v4300
      %v4545 = vadd.f32 %v4125, %v4305
      %v4546 = vadd.f32 %v4126, %v4305
      %v4547 = vadd.f32 %v4127, %v4310
      %v4548 = vadd.f32 %v4128, %v4310
      %v4549 = vadd.f32 %v4129, %v4315
      %v4550 = vadd.f32 %v4130, %v4315
      %v4551 = vadd.f32 %v4131, %v4320
      %v4552 = vadd.f32 %v4132, %v4320
      %v4553 = vadd.f32 %v4133, %v4325
      %v4554 = vadd.f32 %v4134, %v4325
      %v4555 = vadd.f32 %v4135, %v4330
      %v4556 = vadd.f32 %v4136, %v4330
      %v4557 = vadd.f32 %v4137, %v4335
      %v4558 = vadd.f32 %v4138, %v4335
      %v4559 = vadd.f32 %v4139, %v4340
      %v4560 = vadd.f32 %v4140, %v4340
      %v4561 = vadd.f32 %v4141, %v4345
      %v4562 = vadd.f32 %v4142, %v4345
      %v4563 = vadd.f32 %v4143, %v4350
      %v4564 = vadd.f32 %v4144, %v4350
      %v4565 = vadd.f32 %v4145, %v4355
      %v4566 = vadd.f32 %v4146, %v4355
      %v4567 = vadd.f32 %v4147, %v4360
      %v4568 = vadd.f32 %v4148, %v4360
      %v4569 = vadd.f32 %v4149, %v4365
      %v4570 = vadd.f32 %v4150, %v4365
      %v4571 = vadd.f32 %v4151, %v4370
      %v4572 = vadd.f32 %v4152, %v4370
      %v4573 = vadd.f32 %v4153, %v4375
      %v4574 = vadd.f32 %v4154, %v4375
      %v4575 = vadd.f32 %v4155, %v4380
      %v4576 = vadd.f32 %v4156, %v4380
      %v4577 = vadd.f32 %v4157, %v4385
      %v4578 = vadd.f32 %v4158, %v4385
      %v4579 = vadd.f32 %v4159, %v4390
      %v4580 = vadd.f32 %v4160, %v4390
      %v4581 = vadd.f32 %v4161, %v4395
      %v4582 = vadd.f32 %v4162, %v4395
      %v4583 = vadd.f32 %v4163, %v4400
      %v4584 = vadd.f32 %v4164, %v4400
      %v4585 = vadd.f32 %v4165, %v4405
      %v4586 = vadd.f32 %v4166, %v4405
      %v4587 = vadd.f32 %v4167, %v4410
      %v4588 = vadd.f32 %v4168, %v4410
      %v4589 = vadd.f32 %v4169, %v4415
      %v4590 = vadd.f32 %v4170, %v4415
      %v4591 = vadd.f32 %v4171, %v4420
      %v4592 = vadd.f32 %v4172, %v4420
      %v4593 = vadd.f32 %v4173, %v4425
      %v4594 = vadd.f32 %v4174, %v4425
      %v4595 = vadd.f32 %v4175, %v4430
      %v4596 = vadd.f32 %v4176, %v4430
      %v4597 = vadd.f32 %v4177, %v4435
      %v4598 = vadd.f32 %v4178, %v4435
      %v4599 = vadd.f32 %v4179, %v4440
      %v4600 = vadd.f32 %v4180, %v4440
      %v4601 = vadd.f32 %v4181, %v4445
      %v4602 = vadd.f32 %v4182, %v4445
      %v4603 = vadd.f32 %v4183, %v4450
      %v4604 = vadd.f32 %v4184, %v4450
      %v4605 = vadd.f32 %v4185, %v4455
      %v4606 = vadd.f32 %v4186, %v4455
      %v4607 = vadd.f32 %v4187, %v4460
      %v4608 = vadd.f32 %v4188, %v4460
      %v4609 = vadd.f32 %v4189, %v4465
      %v4610 = vadd.f32 %v4190, %v4465
      %v4611 = vadd.f32 %v4191, %v4470
      %v4612 = vadd.f32 %v4192, %v4470
      %v4613 = vadd.f32 %v4193, %v4475
      %v4614 = vadd.f32 %v4194, %v4475
      %v4615 = vadd.f32 %v4195, %v4480
      %v4616 = vadd.f32 %v4196, %v4480
      %v4617 = vadd.f32 %v4197, %v4485
      %v4618 = vadd.f32 %v4198, %v4485
      %v4619 = vadd.f32 %v4199, %v4490
      %v4620 = vadd.f32 %v4200, %v4490
      %v4621 = vadd.f32 %v4201, %v4495
      %v4622 = vadd.f32 %v4202, %v4495
      %v4623 = vadd.f32 %v4203, %v4500
      %v4624 = vadd.f32 %v4204, %v4500
      %v4625 = vadd.f32 %v4205, %v4505
      %v4626 = vadd.f32 %v4206, %v4505
      %4627 = vst [vmem:[%s226] sm:$0xff] %v4507
      %4628 = vst.msk [vmem:[%s226 + $0x8] sm:$0xff] %vm289, %v4508
      %4629 = vst [vmem:[%s226 + $0x10] sm:$0xff] %v4509
      %4630 = vst.msk [vmem:[%s226 + $0x18] sm:$0xff] %vm289, %v4510
      %4631 = vst [vmem:[%s226 + $0x20] sm:$0xff] %v4511
      %4632 = vst.msk [vmem:[%s226 + $0x28] sm:$0xff] %vm289, %v4512
      %4633 = vst [vmem:[%s226 + $0x30] sm:$0xff] %v4513
      %4634 = vst.msk [vmem:[%s226 + $0x38] sm:$0xff] %vm289, %v4514
      %4635 = vst [vmem:[%s226 + $0x40] sm:$0xff] %v4515
      %4636 = vst.msk [vmem:[%s226 + $0x48] sm:$0xff] %vm289, %v4516
      %4637 = vst [vmem:[%s226 + $0x50] sm:$0xff] %v4517
      %4638 = vst.msk [vmem:[%s226 + $0x58] sm:$0xff] %vm289, %v4518
      %4639 = vst [vmem:[%s226 + $0x60] sm:$0xff] %v4519
      %4640 = vst.msk [vmem:[%s226 + $0x68] sm:$0xff] %vm289, %v4520
      %4641 = vst [vmem:[%s226 + $0x70] sm:$0xff] %v4521
      %4642 = vst.msk [vmem:[%s226 + $0x78] sm:$0xff] %vm289, %v4522
      %4643 = vst [vmem:[%s226 + $0x80] sm:$0xff] %v4523
      %4644 = vst.msk [vmem:[%s226 + $0x88] sm:$0xff] %vm289, %v4524
      %4645 = vst [vmem:[%s226 + $0x90] sm:$0xff] %v4525
      %4646 = vst.msk [vmem:[%s226 + $0x98] sm:$0xff] %vm289, %v4526
      %4647 = vst [vmem:[%s226 + $0xa0] sm:$0xff] %v4527
      %4648 = vst.msk [vmem:[%s226 + $0xa8] sm:$0xff] %vm289, %v4528
      %4649 = vst [vmem:[%s226 + $0xb0] sm:$0xff] %v4529
      %4650 = vst.msk [vmem:[%s226 + $0xb8] sm:$0xff] %vm289, %v4530
      %4651 = vst [vmem:[%s226 + $0xc0] sm:$0xff] %v4531
      %4652 = vst.msk [vmem:[%s226 + $0xc8] sm:$0xff] %vm289, %v4532
      %4653 = vst [vmem:[%s226 + $0xd0] sm:$0xff] %v4533
      %4654 = vst.msk [vmem:[%s226 + $0xd8] sm:$0xff] %vm289, %v4534
      %4655 = vst [vmem:[%s226 + $0xe0] sm:$0xff] %v4535
      %4656 = vst.msk [vmem:[%s226 + $0xe8] sm:$0xff] %vm289, %v4536
      %4657 = vst [vmem:[%s226 + $0xf0] sm:$0xff] %v4537
      %4658 = vst.msk [vmem:[%s226 + $0xf8] sm:$0xff] %vm289, %v4538
      %4659 = vst [vmem:[%s226 + $0x100] sm:$0xff] %v4539
      %4660 = vst.msk [vmem:[%s226 + $0x108] sm:$0xff] %vm289, %v4540
      %4661 = vst [vmem:[%s226 + $0x110] sm:$0xff] %v4541
      %4662 = vst.msk [vmem:[%s226 + $0x118] sm:$0xff] %vm289, %v4542
      %4663 = vst [vmem:[%s226 + $0x120] sm:$0xff] %v4543
      %4664 = vst.msk [vmem:[%s226 + $0x128] sm:$0xff] %vm289, %v4544
      %4665 = vst [vmem:[%s226 + $0x130] sm:$0xff] %v4545
      %4666 = vst.msk [vmem:[%s226 + $0x138] sm:$0xff] %vm289, %v4546
      %4667 = vst [vmem:[%s226 + $0x140] sm:$0xff] %v4547
      %4668 = vst.msk [vmem:[%s226 + $0x148] sm:$0xff] %vm289, %v4548
      %4669 = vst [vmem:[%s226 + $0x150] sm:$0xff] %v4549
      %4670 = vst.msk [vmem:[%s226 + $0x158] sm:$0xff] %vm289, %v4550
      %4671 = vst [vmem:[%s226 + $0x160] sm:$0xff] %v4551
      %4672 = vst.msk [vmem:[%s226 + $0x168] sm:$0xff] %vm289, %v4552
      %4673 = vst [vmem:[%s226 + $0x170] sm:$0xff] %v4553
      %4674 = vst.msk [vmem:[%s226 + $0x178] sm:$0xff] %vm289, %v4554
      %4675 = vst [vmem:[%s226 + $0x180] sm:$0xff] %v4555
      %4676 = vst.msk [vmem:[%s226 + $0x188] sm:$0xff] %vm289, %v4556
      %4677 = vst [vmem:[%s226 + $0x190] sm:$0xff] %v4557
      %4678 = vst.msk [vmem:[%s226 + $0x198] sm:$0xff] %vm289, %v4558
      %4679 = vst [vmem:[%s226 + $0x1a0] sm:$0xff] %v4559
      %4680 = vst.msk [vmem:[%s226 + $0x1a8] sm:$0xff] %vm289, %v4560
      %4681 = vst [vmem:[%s226 + $0x1b0] sm:$0xff] %v4561
      %4682 = vst.msk [vmem:[%s226 + $0x1b8] sm:$0xff] %vm289, %v4562
      %4683 = vst [vmem:[%s226 + $0x1c0] sm:$0xff] %v4563
      %4684 = vst.msk [vmem:[%s226 + $0x1c8] sm:$0xff] %vm289, %v4564
      %4685 = vst [vmem:[%s226 + $0x1d0] sm:$0xff] %v4565
      %4686 = vst.msk [vmem:[%s226 + $0x1d8] sm:$0xff] %vm289, %v4566
      %4687 = vst [vmem:[%s226 + $0x1e0] sm:$0xff] %v4567
      %4688 = vst.msk [vmem:[%s226 + $0x1e8] sm:$0xff] %vm289, %v4568
      %4689 = vst [vmem:[%s226 + $0x1f0] sm:$0xff] %v4569
      %4690 = vst.msk [vmem:[%s226 + $0x1f8] sm:$0xff] %vm289, %v4570
      %4691 = vst [vmem:[%s226 + $0x200] sm:$0xff] %v4571
      %4692 = vst.msk [vmem:[%s226 + $0x208] sm:$0xff] %vm289, %v4572
      %4693 = vst [vmem:[%s226 + $0x210] sm:$0xff] %v4573
      %4694 = vst.msk [vmem:[%s226 + $0x218] sm:$0xff] %vm289, %v4574
      %4695 = vst [vmem:[%s226 + $0x220] sm:$0xff] %v4575
      %4696 = vst.msk [vmem:[%s226 + $0x228] sm:$0xff] %vm289, %v4576
      %4697 = vst [vmem:[%s226 + $0x230] sm:$0xff] %v4577
      %4698 = vst.msk [vmem:[%s226 + $0x238] sm:$0xff] %vm289, %v4578
      %4699 = vst [vmem:[%s226 + $0x240] sm:$0xff] %v4579
      %4700 = vst.msk [vmem:[%s226 + $0x248] sm:$0xff] %vm289, %v4580
      %4701 = vst [vmem:[%s226 + $0x250] sm:$0xff] %v4581
      %4702 = vst.msk [vmem:[%s226 + $0x258] sm:$0xff] %vm289, %v4582
      %4703 = vst [vmem:[%s226 + $0x260] sm:$0xff] %v4583
      %4704 = vst.msk [vmem:[%s226 + $0x268] sm:$0xff] %vm289, %v4584
      %4705 = vst [vmem:[%s226 + $0x270] sm:$0xff] %v4585
      %4706 = vst.msk [vmem:[%s226 + $0x278] sm:$0xff] %vm289, %v4586
      %4707 = vst [vmem:[%s226 + $0x280] sm:$0xff] %v4587
      %4708 = vst.msk [vmem:[%s226 + $0x288] sm:$0xff] %vm289, %v4588
      %4709 = vst [vmem:[%s226 + $0x290] sm:$0xff] %v4589
      %4710 = vst.msk [vmem:[%s226 + $0x298] sm:$0xff] %vm289, %v4590
      %4711 = vst [vmem:[%s226 + $0x2a0] sm:$0xff] %v4591
      %4712 = vst.msk [vmem:[%s226 + $0x2a8] sm:$0xff] %vm289, %v4592
      %4713 = vst [vmem:[%s226 + $0x2b0] sm:$0xff] %v4593
      %4714 = vst.msk [vmem:[%s226 + $0x2b8] sm:$0xff] %vm289, %v4594
      %4715 = vst [vmem:[%s226 + $0x2c0] sm:$0xff] %v4595
      %4716 = vst.msk [vmem:[%s226 + $0x2c8] sm:$0xff] %vm289, %v4596
      %4717 = vst [vmem:[%s226 + $0x2d0] sm:$0xff] %v4597
      %4718 = vst.msk [vmem:[%s226 + $0x2d8] sm:$0xff] %vm289, %v4598
      %4719 = vst [vmem:[%s226 + $0x2e0] sm:$0xff] %v4599
      %4720 = vst.msk [vmem:[%s226 + $0x2e8] sm:$0xff] %vm289, %v4600
      %4721 = vst [vmem:[%s226 + $0x2f0] sm:$0xff] %v4601
      %4722 = vst.msk [vmem:[%s226 + $0x2f8] sm:$0xff] %vm289, %v4602
      %4723 = vst [vmem:[%s226 + $0x300] sm:$0xff] %v4603
      %4724 = vst.msk [vmem:[%s226 + $0x308] sm:$0xff] %vm289, %v4604
      %4725 = vst [vmem:[%s226 + $0x310] sm:$0xff] %v4605
      %4726 = vst.msk [vmem:[%s226 + $0x318] sm:$0xff] %vm289, %v4606
      %4727 = vst [vmem:[%s226 + $0x320] sm:$0xff] %v4607
      %4728 = vst.msk [vmem:[%s226 + $0x328] sm:$0xff] %vm289, %v4608
      %4729 = vst [vmem:[%s226 + $0x330] sm:$0xff] %v4609
      %4730 = vst.msk [vmem:[%s226 + $0x338] sm:$0xff] %vm289, %v4610
      %4731 = vst [vmem:[%s226 + $0x340] sm:$0xff] %v4611
      %4732 = vst.msk [vmem:[%s226 + $0x348] sm:$0xff] %vm289, %v4612
      %4733 = vst [vmem:[%s226 + $0x350] sm:$0xff] %v4613
      %4734 = vst.msk [vmem:[%s226 + $0x358] sm:$0xff] %vm289, %v4614
      %4735 = vst [vmem:[%s226 + $0x360] sm:$0xff] %v4615
      %4736 = vst.msk [vmem:[%s226 + $0x368] sm:$0xff] %vm289, %v4616
      %4737 = vst [vmem:[%s226 + $0x370] sm:$0xff] %v4617
      %4738 = vst.msk [vmem:[%s226 + $0x378] sm:$0xff] %vm289, %v4618
      %4739 = vst [vmem:[%s226 + $0x380] sm:$0xff] %v4619
      %4740 = vst.msk [vmem:[%s226 + $0x388] sm:$0xff] %vm289, %v4620
      %4741 = vst [vmem:[%s226 + $0x390] sm:$0xff] %v4621
      %4742 = vst.msk [vmem:[%s226 + $0x398] sm:$0xff] %vm289, %v4622
      %4743 = vst [vmem:[%s226 + $0x3a0] sm:$0xff] %v4623
      %4744 = vst.msk [vmem:[%s226 + $0x3a8] sm:$0xff] %vm289, %v4624
      %4745 = vst [vmem:[%s226 + $0x3b0] sm:$0xff] %v4625
      %4746 = vst.msk [vmem:[%s226 + $0x3b8] sm:$0xff] %vm289, %v4626
      %s4747 = smul.u32 60, %s15
      %p4748 = scmp.lt.s32.totalorder %s4747, 119
      %s4749 = scalar_select %p4748, %s4747, 119
      %s4750 = smul.addr %s4749, 2
      %s4751 = smul.addr %s4750, 8
      %s4752 = scalar_lea.vmem %s4, %s4751
      // Predicated region
      $region37: #{tpu_custom_call.1} parent=35 // pred_check
        %p4753 = pneg %p127
      $region38: #{tpu_custom_call.1} parent=35 // pred_check_branch
        %4755 = sbr.rel (%p4753) target = $region40
      $region39: #{tpu_custom_call.1} parent=35 // pred_region
        %s4756 = smul.u32 60, %s15
      $region40: #{tpu_custom_call.1} parent=35 // pred_fallthru
        _
    $region36: #{tpu_custom_call.1} parent=5 // pred_fallthru
      _
    %p4757 = scmp.le.s32.totalorder 2, %s10
    // Predicated region
    $region41: #{tpu_custom_call.1} parent=5 // pred_check
      %p4758 = pneg %p4757
    $region42: #{tpu_custom_call.1} parent=5 // pred_check_branch
      %4760 = sbr.rel (%p4758) target = $region44
    $region43: #{tpu_custom_call.1} parent=5 // pred_region
      %s4761 = ssub.s32 %s10, 2
      // Predicated region
      $region45: #{tpu_custom_call.1} parent=43 // pred_check
        %p4762 = pneg %p133
      $region46: #{tpu_custom_call.1} parent=43 // pred_check_branch
        %4764 = sbr.rel (%p4762) target = $region48
      $region47: #{tpu_custom_call.1} parent=43 // pred_region
        %s4765 = smul.u32 60, %s16
        %p4766 = scmp.lt.s32.totalorder %s4765, 119
        %s4767 = scalar_select %p4766, %s4765, 119
        %s4768 = smul.addr %s4767, 2
        %s4769 = smul.addr %s4768, 8
        %s4770 = scalar_lea.vmem %s4, %s4769
      $region48: #{tpu_custom_call.1} parent=43 // pred_fallthru
        _
    $region44: #{tpu_custom_call.1} parent=5 // pred_fallthru
      _
  $region6: #{tpu_custom_call.1} parent=0 // loop_footer
    %s14 = sadd.s32 1, %s10
  $region7: #{tpu_custom_call.1} parent=0 // loop_footer_branch
    %9 = sbr.rel target = $region3
  $region8: #{tpu_custom_call.1} parent=0 // loop_exit
    _

</llo_original>
